<compile_context>
chip_gen: v5e
topology: v5e:2x2
jax: 0.10.0
libtpu: 0.0.40
codegen_flags: <defaults>
</compile_context>

<pallas_src>
import math

import jax
import jax.numpy as jnp
from jax.experimental import pallas as pl
from jax.experimental.pallas import tpu as pltpu


_TWO_PI = 2.0 * math.pi
_TARGET_ROWS = 4096                  # row-tile target (feedback: 2048-4096)
_VMEM_LIMIT = 48 * 1024 * 1024       # < v7x 64 MiB/TC with headroom; > default 16/32 MiB


def _round_up(n, m):
    return ((n + m - 1) // m) * m


def _tensorcores_per_chip():
    """Best-effort TensorCore count (2 on v7x, 1 on v5e/v6e). Defaults to 1."""
    try:
        info = pltpu.get_tpu_info()
        for attr in ("num_tensorcores", "tensorcores_per_chip", "num_cores", "core_count"):
            v = getattr(info, attr, None)
            if isinstance(v, int) and v > 0:
                return v
    except Exception:
        pass
    return 1


def _row_tiling(n_rows, target=_TARGET_ROWS):
    """Pick a row tile (multiple of 8). Split small inputs across >=2 grid steps
    only when there are >=2 TensorCores to shard across (v7x)."""
    cores = _tensorcores_per_chip()
    if cores > 1 and n_rows > 8:
        per_core = pl.cdiv(n_rows, cores)
        tile = min(target, _round_up(per_core, 8))
    else:
        tile = min(target, _round_up(n_rows, 8))
    return tile


def _dup_projection(B):
    """Bt2 = [B.T | B.T] and a quarter-phase offset so that
    sin(2*pi*(x@Bt2 + off)) == concat([sin(2*pi*x@B.T), cos(2*pi*x@B.T)], -1)."""
    mapping = B.shape[0]
    Bt = B.T.astype(jnp.float32)                                   # (in_f, mapping)
    Bt2 = jnp.concatenate([Bt, Bt], axis=1)                        # (in_f, 2*mapping)
    off = jnp.concatenate(
        [jnp.zeros((1, mapping), jnp.float32),
         jnp.full((1, mapping), 0.25, jnp.float32)], axis=1)       # (1, 2*mapping)
    return Bt2, off


# ---------------------------------------------------------------------------
# Gaussian Fourier Feature mapping (single lane-dense output, single sin)
# ---------------------------------------------------------------------------
def _gff_kernel(x_ref, bt2_ref, off_ref, feat_ref):
    # x_ref:   (tn, in_features)          VMEM
    # bt2_ref: (in_features, 2*mapping)   VMEM   (duplicated B.T, grid-invariant)
    # off_ref: (1, 2*mapping)             VMEM   (0 | 0.25 quarter-phase offset)
    # feat_ref:(tn, 2*mapping)            VMEM   (128-lane dense, unmasked store)
    t = jnp.dot(x_ref[...], bt2_ref[...], preferred_element_type=jnp.float32)
    t = t + off_ref[...]
    r = t - jnp.round(t)                  # |r| <= 0.5 -> trivial range reduction
    feat_ref[...] = jnp.sin(_TWO_PI * r).astype(feat_ref.dtype)


def gaussian_fourier_feature(x, B):
    """x: (N, in_features) f32; B: (mapping_size, in_features) f32 (frozen).

    Returns (N, 2*mapping_size) = concat([sin(2*pi*x@B.T), cos(2*pi*x@B.T)], -1).
    """
    N, in_features = x.shape
    mapping_size, in_features_b = B.shape
    assert in_features == in_features_b

    Bt2, off = _dup_projection(B)
    feat_w = 2 * mapping_size

    tn = _row_tiling(N)
    grid_n = pl.cdiv(N, tn)               # ragged last block: OOB rows dropped

    out = pl.pallas_call(
        _gff_kernel,
        out_shape=jax.ShapeDtypeStruct((N, feat_w), x.dtype),
        grid_spec=pltpu.PrefetchScalarGridSpec(
            num_scalar_prefetch=0,
            grid=(grid_n,),
            in_specs=[
                pl.BlockSpec((tn, in_features), lambda i: (i, 0)),
                pl.BlockSpec((in_features, feat_w), lambda i: (0, 0)),
                pl.BlockSpec((1, feat_w), lambda i: (0, 0)),
            ],
            out_specs=pl.BlockSpec((tn, feat_w), lambda i: (i, 0)),
        ),
        compiler_params=pltpu.CompilerParams(
            dimension_semantics=("parallel",),
            vmem_limit_bytes=_VMEM_LIMIT,
        ),
    )(x, Bt2, off)
    return out


# ---------------------------------------------------------------------------
# Fully fused FourierFeatureNetwork forward
# ---------------------------------------------------------------------------
def _ffn_kernel(x_ref, bt2_ref, off_ref, w1_ref, b1_ref,
                w2_ref, b2_ref, w3_ref, b3_ref, out_ref):
    t = jnp.dot(x_ref[...], bt2_ref[...], preferred_element_type=jnp.float32)
    t = t + off_ref[...]
    feat = jnp.sin(_TWO_PI * (t - jnp.round(t)))          # (tn, 2*mapping), in VMEM only
    h = jnp.dot(feat, w1_ref[...], preferred_element_type=jnp.float32) + b1_ref[...]
    h = jnp.maximum(h, 0.0)
    h = jnp.dot(h, w2_ref[...], preferred_element_type=jnp.float32) + b2_ref[...]
    h = jnp.maximum(h, 0.0)
    y = jnp.dot(h, w3_ref[...], preferred_element_type=jnp.float32) + b3_ref[...]
    out_ref[...] = y.astype(out_ref.dtype)


def fourier_feature_network(x, params):
    """Full FourierFeatureNetwork forward as one fused Pallas kernel.

    params: dict with B (mapping, in_f), W1 (2*mapping, hidden), b1 (hidden,),
            W2 (hidden, hidden), b2 (hidden,), W3 (hidden, out), b3 (out,).
    """
    B, W1, b1 = params["B"], params["W1"], params["b1"]
    W2, b2, W3, b3 = params["W2"], params["b2"], params["W3"], params["b3"]

    N, in_features = x.shape
    mapping_size = B.shape[0]
    hidden = W1.shape[1]
    out_features = W3.shape[1]
    assert W1.shape == (2 * mapping_size, hidden)

    Bt2, off = _dup_projection(B)
    feat_w = 2 * mapping_size
    b1r = b1.reshape(1, hidden)
    b2r = b2.reshape(1, hidden)
    b3r = b3.reshape(1, out_features)

    tn = _row_tiling(N)
    grid_n = pl.cdiv(N, tn)               # ragged last block: OOB rows dropped

    const = lambda i: (0, 0)   # grid-invariant weight/bias blocks (not re-fetched)

    out = pl.pallas_call(
        _ffn_kernel,
        out_shape=jax.ShapeDtypeStruct((N, out_features), x.dtype),
        grid_spec=pltpu.PrefetchScalarGridSpec(
            num_scalar_prefetch=0,
            grid=(grid_n,),
            in_specs=[
                pl.BlockSpec((tn, in_features), lambda i: (i, 0)),
                pl.BlockSpec((in_features, feat_w), const),
                pl.BlockSpec((1, feat_w), const),
                pl.BlockSpec((feat_w, hidden), const),
                pl.BlockSpec((1, hidden), const),
                pl.BlockSpec((hidden, hidden), const),
                pl.BlockSpec((1, hidden), const),
                pl.BlockSpec((hidden, out_features), const),
                pl.BlockSpec((1, out_features), const),
            ],
            out_specs=pl.BlockSpec((tn, out_features), lambda i: (i, 0)),
        ),
        compiler_params=pltpu.CompilerParams(
            dimension_semantics=("parallel",),
            vmem_limit_bytes=_VMEM_LIMIT,
        ),
    )(x, Bt2, off, W1, b1r, W2, b2r, W3, b3r)
    return out


# ---------------------------------------------------------------------------
# Pure-JAX references
# ---------------------------------------------------------------------------
def gaussian_fourier_feature_ref(x, B):
    x_proj = _TWO_PI * (x @ B.T)
    return jnp.concatenate([jnp.sin(x_proj), jnp.cos(x_proj)], axis=-1)


def fourier_feature_network_ref(x, params):
    f = gaussian_fourier_feature_ref(x, params["B"])
    h = jax.nn.relu(f @ params["W1"] + params["b1"])
    h = jax.nn.relu(h @ params["W2"] + params["b2"])
    return h @ params["W3"] + params["b3"]


if __name__ == "__main__":
    # Small shapes consistent with the module: N coordinate points of
    # in_features dims, mapping_size Fourier features, a small MLP on top.
    N = 200                   # deliberately not "nice" (exercises row tiling)
    in_features = 2
    mapping_size = 64
    hidden_features = 32
    out_features = 3
    scale = 10.0

    key = jax.random.PRNGKey(0)
    kx, kB, k1, k2, k3 = jax.random.split(key, 5)
    x = jax.random.normal(kx, (N, in_features), dtype=jnp.float32)

    # Frozen Gaussian projection, mirroring scale * randn(mapping, in_features).
    B = scale * jax.random.normal(kB, (mapping_size, in_features), dtype=jnp.float32)

    def linear_init(k, fan_in, fan_out):
        kw, kb = jax.random.split(k)
        bound = 1.0 / math.sqrt(fan_in)
        W = jax.random.uniform(kw, (fan_in, fan_out), jnp.float32, -bound, bound)
        b = jax.random.uniform(kb, (fan_out,), jnp.float32, -bound, bound)
        return W, b

    W1, b1 = linear_init(k1, 2 * mapping_size, hidden_features)
    W2, b2 = linear_init(k2, hidden_features, hidden_features)
    W3, b3 = linear_init(k3, hidden_features, out_features)
    params = dict(B=B, W1=W1, b1=b1, W2=W2, b2=b2, W3=W3, b3=b3)

    # 1) Fourier-feature mapping kernel (single sin, single lane-dense output).
    feats = jax.block_until_ready(gaussian_fourier_feature(x, B))
    feats_ref = gaussian_fourier_feature_ref(x, B)
    assert feats.shape == (N, 2 * mapping_size)
    assert jnp.allclose(feats, feats_ref, atol=1e-3, rtol=1e-3), "GFF mismatch"

    # 2) Full fused FourierFeatureNetwork forward.
    y = jax.block_until_ready(fourier_feature_network(x, params))
    y_ref = fourier_feature_network_ref(x, params)
    assert y.shape == (N, out_features)
    assert jnp.allclose(y, y_ref, atol=1e-3, rtol=1e-3), "network mismatch"

    print("KERNEL_OK")
</pallas_src>

<mosaic_0001>
module attributes {stable_mosaic.version = 11 : i64} {
  func.func @_gff_kernel(%arg0: i32, %arg1: memref<200x2xf32, #tpu.memory_space<vmem>>, %arg2: memref<2x128xf32, #tpu.memory_space<vmem>>, %arg3: memref<1x128xf32, #tpu.memory_space<vmem>>, %arg4: memref<200x128xf32, #tpu.memory_space<vmem>>) attributes {dimension_semantics = [#tpu.dimension_semantics<parallel>], iteration_bounds = array<i64: 1>, scalar_prefetch = 0 : i64, scratch_operands = 0 : i64, tpu.core_type = #tpu.core_type<tc>, window_params = [{transform_indices = @transform_0, window_bounds = array<i64: 200, 2>}, {pipeline_mode = #tpu.pipeline_mode<synchronous>, transform_indices = @transform_1, window_bounds = array<i64: 2, 128>}, {pipeline_mode = #tpu.pipeline_mode<synchronous>, transform_indices = @transform_2, window_bounds = array<i64: 1, 128>}, {transform_indices = @transform_3, window_bounds = array<i64: 200, 128>}]} {
    %c0 = arith.constant 0 : index
    %c0_0 = arith.constant 0 : index
    %0 = vector.load %arg1[%c0, %c0_0] : memref<200x2xf32, #tpu.memory_space<vmem>>, vector<200x2xf32>
    %c0_1 = arith.constant 0 : index
    %c0_2 = arith.constant 0 : index
    %1 = vector.load %arg2[%c0_1, %c0_2] : memref<2x128xf32, #tpu.memory_space<vmem>>, vector<2x128xf32>
    %cst = arith.constant dense<0.000000e+00> : vector<200x128xf32>
    %2 = tpu.matmul %0, %1, %cst {dimension_numbers = #tpu.dot_dimension_numbers<[1], [0], [0], [1], [0, 0, 1, 1], [], []>} : vector<200x2xf32>, vector<2x128xf32>, vector<200x128xf32> -> vector<200x128xf32>
    %c0_3 = arith.constant 0 : index
    %c0_4 = arith.constant 0 : index
    %3 = vector.load %arg3[%c0_3, %c0_4] : memref<1x128xf32, #tpu.memory_space<vmem>>, vector<1x128xf32>
    %4 = vector.broadcast %3 : vector<1x128xf32> to vector<200x128xf32>
    %5 = arith.addf %2, %4 : vector<200x128xf32>
    %6 = math.roundeven %5 : vector<200x128xf32>
    %7 = arith.subf %5, %6 : vector<200x128xf32>
    %cst_5 = arith.constant 6.28318548 : f32
    %8 = vector.broadcast %cst_5 : f32 to vector<200x128xf32>
    %9 = arith.mulf %8, %7 : vector<200x128xf32>
    %10 = math.sin %9 : vector<200x128xf32>
    %c0_6 = arith.constant 0 : index
    %c0_7 = arith.constant 0 : index
    %11 = vector.load %arg4[%c0_6, %c0_7] : memref<200x128xf32, #tpu.memory_space<vmem>>, vector<200x128xf32>
    tpu.vector_store %arg4[%c0_6, %c0_7], %10 {strides = array<i32>} : memref<200x128xf32, #tpu.memory_space<vmem>>, vector<200x128xf32>,
    return
  }
  func.func @transform_0(%arg0: i32) -> (i32, i32) {
    %c0_i32 = arith.constant 0 : i32
    %c0_i32_0 = arith.constant 0 : i32
    return %arg0, %c0_i32 : i32, i32
  }
  func.func @transform_1(%arg0: i32) -> (i32, i32) {
    %c0_i32 = arith.constant 0 : i32
    %c0_i32_0 = arith.constant 0 : i32
    %c0_i32_1 = arith.constant 0 : i32
    return %c0_i32, %c0_i32_0 : i32, i32
  }
  func.func @transform_2(%arg0: i32) -> (i32, i32) {
    %c0_i32 = arith.constant 0 : i32
    %c0_i32_0 = arith.constant 0 : i32
    %c0_i32_1 = arith.constant 0 : i32
    return %c0_i32, %c0_i32_0 : i32, i32
  }
  func.func @transform_3(%arg0: i32) -> (i32, i32) {
    %c0_i32 = arith.constant 0 : i32
    %c0_i32_0 = arith.constant 0 : i32
    return %arg0, %c0_i32 : i32, i32
  }
}

</mosaic_0001>

<llo_original>
// kernel: tpu_custom_call.1
$region0: #{tpu_custom_call.1}
  #allocation0 [shape = 'u32[]', space=smem, size = 0x4, offset = 0x4, fixed_abs, tag = 'smem constant byte address 0x4 - core index']
  #allocation1 [shape = 'u32[72,128]{1,0:T(1,128)}', space=vmem, size = 0x9000, scoped, tag = 'internal scratch']
  %s0 = inlined_call_operand.vmem [shape: f32[200,2], index: 0, kind: input, shape index: {}]
  %s1 = inlined_call_operand.vmem [shape: f32[2,128], index: 1, kind: input, shape index: {}]
  %s2 = inlined_call_operand.vmem [shape: f32[1,128], index: 2, kind: input, shape index: {}]
  %s3 = inlined_call_operand.hbm [shape: f32[200,128], index: 3, kind: output, shape index: {}]
  %s4 = sld [smem:[#allocation0]]
  $region22: #{tpu_custom_call.1} parent=0
    _
  %s6 = ssub.s32 1, %s4
  %s7 = scalar_select 0, %s6, %s4
  $region1: #{tpu_custom_call.1} parent=0
    #allocation2 [shape = 'u8[102400]{0}', space=vmem, size = 0x19000, scoped, tag = 'output window, operand 0, single buffered']
    #allocation3 [shape = 's32[1]{0}', space=sflag, size = 0x4, scoped, tag = 'scoped memory for tpu_custom_call.1']
    %8 = vsyncpa [#allocation3], 0
    // Predicated region
    $region2: #{tpu_custom_call.1} parent=1 // pred_check
      _
    $region3: #{tpu_custom_call.1} parent=1 // pred_check_branch
      %10 = sbr.rel (0) target = $region5
    $region4: #{tpu_custom_call.1} parent=1 // pred_region
      _
    $region5: #{tpu_custom_call.1} parent=1 // pred_fallthru
      _
    // Predicated region
    $region6: #{tpu_custom_call.1} parent=1 // pred_check
      _
    $region7: #{tpu_custom_call.1} parent=1 // pred_check_branch
      %12 = sbr.rel (0) target = $region9
    $region8: #{tpu_custom_call.1} parent=1 // pred_region
      _
    $region9: #{tpu_custom_call.1} parent=1 // pred_fallthru
      _
    // Predicated region
    $region10: #{tpu_custom_call.1} parent=1 // pred_check
      _
    $region11: #{tpu_custom_call.1} parent=1 // pred_check_branch
      %14 = sbr.rel (0) target = $region13
    $region12: #{tpu_custom_call.1} parent=1 // pred_region
      _
    $region13: #{tpu_custom_call.1} parent=1 // pred_fallthru
      _
    %v15 = vld [vmem:[%s0] sm:$0xff]
    %v16 = vld [vmem:[%s0 + $0x8] sm:$0xff]
    %v17 = vld [vmem:[%s0 + $0x10] sm:$0xff]
    %v18 = vld [vmem:[%s0 + $0x18] sm:$0xff]
    %v19 = vld [vmem:[%s0 + $0x20] sm:$0xff]
    %v20 = vld [vmem:[%s0 + $0x28] sm:$0xff]
    %v21 = vld [vmem:[%s0 + $0x30] sm:$0xff]
    %v22 = vld [vmem:[%s0 + $0x38] sm:$0xff]
    %v23 = vld [vmem:[%s0 + $0x40] sm:$0xff]
    %v24 = vld [vmem:[%s0 + $0x48] sm:$0xff]
    %v25 = vld [vmem:[%s0 + $0x50] sm:$0xff]
    %v26 = vld [vmem:[%s0 + $0x58] sm:$0xff]
    %v27 = vld [vmem:[%s0 + $0x60] sm:$0xff]
    %v28 = vld [vmem:[%s0 + $0x68] sm:$0xff]
    %v29 = vld [vmem:[%s0 + $0x70] sm:$0xff]
    %v30 = vld [vmem:[%s0 + $0x78] sm:$0xff]
    %v31 = vld [vmem:[%s0 + $0x80] sm:$0xff]
    %v32 = vld [vmem:[%s0 + $0x88] sm:$0xff]
    %v33 = vld [vmem:[%s0 + $0x90] sm:$0xff]
    %v34 = vld [vmem:[%s0 + $0x98] sm:$0xff]
    %v35 = vld [vmem:[%s0 + $0xa0] sm:$0xff]
    %v36 = vld [vmem:[%s0 + $0xa8] sm:$0xff]
    %v37 = vld [vmem:[%s0 + $0xb0] sm:$0xff]
    %v38 = vld [vmem:[%s0 + $0xb8] sm:$0xff]
    %v39 = vld [vmem:[%s0 + $0xc0] sm:$0xff]
    %v40 = vld [vmem:[%s1] sm:$0x3]
    %v41 = vld [vmem:[%s2] sm:$0x1]
    %v43 = vperm.slane %v41, 0
    %vm45 = vcmask 15360
    %v47 = vsel %vm45, %v15, 0
    %v50 = vsel %vm45, %v16, 0
    %v53 = vsel %vm45, %v17, 0
    %v56 = vsel %vm45, %v18, 0
    %v59 = vsel %vm45, %v19, 0
    %v62 = vsel %vm45, %v20, 0
    %v65 = vsel %vm45, %v21, 0
    %v68 = vsel %vm45, %v22, 0
    %v71 = vsel %vm45, %v23, 0
    %v74 = vsel %vm45, %v24, 0
    %v77 = vsel %vm45, %v25, 0
    %v80 = vsel %vm45, %v26, 0
    %v83 = vsel %vm45, %v27, 0
    %v86 = vsel %vm45, %v28, 0
    %v89 = vsel %vm45, %v29, 0
    %v92 = vsel %vm45, %v30, 0
    %v95 = vsel %vm45, %v31, 0
    %v98 = vsel %vm45, %v32, 0
    %v101 = vsel %vm45, %v33, 0
    %v104 = vsel %vm45, %v34, 0
    %v107 = vsel %vm45, %v35, 0
    %v110 = vsel %vm45, %v36, 0
    %v113 = vsel %vm45, %v37, 0
    %v116 = vsel %vm45, %v38, 0
    %v119 = vsel %vm45, %v39, 0
    %vm121 = vcmask 1041408
    %v123 = vsel %vm121, %v40, 0
    %125 = vmatpush.msra.mxu0 0.0
    %126 = vmatpush.msra.mxu0 0.0
    %127 = vmatpush.msra.mxu0 0.0
    %128 = vmatpush.msra.mxu0 0.0
    %129 = vmatpush.msra.mxu0 0.0
    %130 = vmatpush.msra.mxu0 0.0
    %131 = vmatpush.msra.mxu0 0.0
    %132 = vmatpush.msra.mxu0 0.0
    %133 = vmatpush.msra.mxu0 0.0
    %134 = vmatpush.msra.mxu0 0.0
    %135 = vmatpush.msra.mxu0 0.0
    %136 = vmatpush.msra.mxu0 0.0
    %137 = vmatpush.msra.mxu0 0.0
    %138 = vmatpush.msra.mxu0 0.0
    %139 = vmatpush.msra.mxu0 0.0
    %140 = vmatpush.msra.mxu0 %v123
    %141 = vmatmul.f32.gmra.mxu0 %v47
    %v142 = vpop.f32.mrf.mxu0
    %v143 = vadd.f32 %v43, %v142
    %144 = vmatmul.f32.gmra.mxu0 %v50
    %v145 = vpop.f32.mrf.mxu0
    %v146 = vadd.f32 %v43, %v145
    %147 = vmatmul.f32.gmra.mxu0 %v53
    %v148 = vpop.f32.mrf.mxu0
    %v149 = vadd.f32 %v43, %v148
    %150 = vmatmul.f32.gmra.mxu0 %v56
    %v151 = vpop.f32.mrf.mxu0
    %v152 = vadd.f32 %v43, %v151
    %153 = vmatmul.f32.gmra.mxu0 %v59
    %v154 = vpop.f32.mrf.mxu0
    %v155 = vadd.f32 %v43, %v154
    %156 = vmatmul.f32.gmra.mxu0 %v62
    %v157 = vpop.f32.mrf.mxu0
    %v158 = vadd.f32 %v43, %v157
    %159 = vmatmul.f32.gmra.mxu0 %v65
    %v160 = vpop.f32.mrf.mxu0
    %v161 = vadd.f32 %v43, %v160
    %162 = vmatmul.f32.gmra.mxu0 %v68
    %v163 = vpop.f32.mrf.mxu0
    %v164 = vadd.f32 %v43, %v163
    %165 = vmatmul.f32.gmra.mxu0 %v71
    %v166 = vpop.f32.mrf.mxu0
    %v167 = vadd.f32 %v43, %v166
    %168 = vmatmul.f32.gmra.mxu0 %v74
    %v169 = vpop.f32.mrf.mxu0
    %v170 = vadd.f32 %v43, %v169
    %171 = vmatmul.f32.gmra.mxu0 %v77
    %v172 = vpop.f32.mrf.mxu0
    %v173 = vadd.f32 %v43, %v172
    %174 = vmatmul.f32.gmra.mxu0 %v80
    %v175 = vpop.f32.mrf.mxu0
    %v176 = vadd.f32 %v43, %v175
    %177 = vmatmul.f32.gmra.mxu0 %v83
    %v178 = vpop.f32.mrf.mxu0
    %v179 = vadd.f32 %v43, %v178
    %180 = vmatmul.f32.gmra.mxu0 %v86
    %v181 = vpop.f32.mrf.mxu0
    %v182 = vadd.f32 %v43, %v181
    %183 = vmatmul.f32.gmra.mxu0 %v89
    %v184 = vpop.f32.mrf.mxu0
    %v185 = vadd.f32 %v43, %v184
    %186 = vmatmul.f32.gmra.mxu0 %v92
    %v187 = vpop.f32.mrf.mxu0
    %v188 = vadd.f32 %v43, %v187
    %189 = vmatmul.f32.gmra.mxu0 %v95
    %v190 = vpop.f32.mrf.mxu0
    %v191 = vadd.f32 %v43, %v190
    %192 = vmatmul.f32.gmra.mxu0 %v98
    %v193 = vpop.f32.mrf.mxu0
    %v194 = vadd.f32 %v43, %v193
    %195 = vmatmul.f32.gmra.mxu0 %v101
    %v196 = vpop.f32.mrf.mxu0
    %v197 = vadd.f32 %v43, %v196
    %198 = vmatmul.f32.gmra.mxu0 %v104
    %v199 = vpop.f32.mrf.mxu0
    %v200 = vadd.f32 %v43, %v199
    %201 = vmatmul.f32.gmra.mxu0 %v107
    %v202 = vpop.f32.mrf.mxu0
    %v203 = vadd.f32 %v43, %v202
    %204 = vmatmul.f32.gmra.mxu0 %v110
    %v205 = vpop.f32.mrf.mxu0
    %v206 = vadd.f32 %v43, %v205
    %207 = vmatmul.f32.gmra.mxu0 %v113
    %v208 = vpop.f32.mrf.mxu0
    %v209 = vadd.f32 %v43, %v208
    %210 = vmatmul.f32.gmra.mxu0 %v116
    %v211 = vpop.f32.mrf.mxu0
    %v212 = vadd.f32 %v43, %v211
    %213 = vmatmul.f32.gmra.mxu0 %v119
    %v214 = vpop.f32.mrf.mxu0
    %v215 = vadd.f32 %v43, %v214
    %216 = vdwg.mxu0
    %v217 = vround.ne.pseudo %v143
    %v218 = vround.ne.pseudo %v146
    %v219 = vround.ne.pseudo %v149
    %v220 = vround.ne.pseudo %v152
    %v221 = vround.ne.pseudo %v155
    %v222 = vround.ne.pseudo %v158
    %v223 = vround.ne.pseudo %v161
    %v224 = vround.ne.pseudo %v164
    %v225 = vround.ne.pseudo %v167
    %v226 = vround.ne.pseudo %v170
    %v227 = vround.ne.pseudo %v173
    %v228 = vround.ne.pseudo %v176
    %v229 = vround.ne.pseudo %v179
    %v230 = vround.ne.pseudo %v182
    %v231 = vround.ne.pseudo %v185
    %v232 = vround.ne.pseudo %v188
    %v233 = vround.ne.pseudo %v191
    %v234 = vround.ne.pseudo %v194
    %v235 = vround.ne.pseudo %v197
    %v236 = vround.ne.pseudo %v200
    %v237 = vround.ne.pseudo %v203
    %v238 = vround.ne.pseudo %v206
    %v239 = vround.ne.pseudo %v209
    %v240 = vround.ne.pseudo %v212
    %v241 = vround.ne.pseudo %v215
    %v242 = vsub.f32 %v143, %v217
    %v243 = vsub.f32 %v146, %v218
    %v244 = vsub.f32 %v149, %v219
    %v245 = vsub.f32 %v152, %v220
    %v246 = vsub.f32 %v155, %v221
    %v247 = vsub.f32 %v158, %v222
    %v248 = vsub.f32 %v161, %v223
    %v249 = vsub.f32 %v164, %v224
    %v250 = vsub.f32 %v167, %v225
    %v251 = vsub.f32 %v170, %v226
    %v252 = vsub.f32 %v173, %v227
    %v253 = vsub.f32 %v176, %v228
    %v254 = vsub.f32 %v179, %v229
    %v255 = vsub.f32 %v182, %v230
    %v256 = vsub.f32 %v185, %v231
    %v257 = vsub.f32 %v188, %v232
    %v258 = vsub.f32 %v191, %v233
    %v259 = vsub.f32 %v194, %v234
    %v260 = vsub.f32 %v197, %v235
    %v261 = vsub.f32 %v200, %v236
    %v262 = vsub.f32 %v203, %v237
    %v263 = vsub.f32 %v206, %v238
    %v264 = vsub.f32 %v209, %v239
    %v265 = vsub.f32 %v212, %v240
    %v266 = vsub.f32 %v215, %v241
    %v267 = vmul.f32 %v242, 6.2831855
    %v268 = vmul.f32 %v243, 6.2831855
    %v269 = vmul.f32 %v244, 6.2831855
    %v270 = vmul.f32 %v245, 6.2831855
    %v271 = vmul.f32 %v246, 6.2831855
    %v272 = vmul.f32 %v247, 6.2831855
    %v273 = vmul.f32 %v248, 6.2831855
    %v274 = vmul.f32 %v249, 6.2831855
    %v275 = vmul.f32 %v250, 6.2831855
    %v276 = vmul.f32 %v251, 6.2831855
    %v277 = vmul.f32 %v252, 6.2831855
    %v278 = vmul.f32 %v253, 6.2831855
    %v279 = vmul.f32 %v254, 6.2831855
    %v280 = vmul.f32 %v255, 6.2831855
    %v281 = vmul.f32 %v256, 6.2831855
    %v282 = vmul.f32 %v257, 6.2831855
    %v283 = vmul.f32 %v258, 6.2831855
    %v284 = vmul.f32 %v259, 6.2831855
    %v285 = vmul.f32 %v260, 6.2831855
    %v286 = vmul.f32 %v261, 6.2831855
    %v287 = vmul.f32 %v262, 6.2831855
    %v288 = vmul.f32 %v263, 6.2831855
    %v289 = vmul.f32 %v264, 6.2831855
    %v290 = vmul.f32 %v265, 6.2831855
    %v291 = vmul.f32 %v266, 6.2831855
    %v292 = vand.u32 2147483647, %v267
    %vm293 = vcmp.le.f32.partialorder %v292, 0.7853982
    %vm294 = vcmp.lt.s32.totalorder %v267, 0
    %v295 = vand.u32 %v267, 2139095040
    %v296 = vshrl.u32 %v295, 23
    %v297 = vsub.s32 %v296, 127
    %v298 = vand.u32 2147483647, %v267
    %v299 = vand.u32 %v298, 8388607
    %v300 = vor.u32 %v299, 8388608
    %v301 = vsub.s32 0, %v300
    %v302 = vadd.s32 %v297, 1
    %vm303 = vcmp.gt.s32.totalorder %v302, 0
    %v304 = vsel %vm303, %v302, 0
    %v305 = vshrl.u32 %v304, 5
    %v306 = vand.u32 %v304, 31
    %v307 = vsub.s32 32, %v306
    %v308 = vshrl.u32 683565275, %v307
    %v309 = vshll.u32 683565275, %v306
    %v310 = vshrl.u32 2475754826, %v307
    %v311 = vor.u32 %v309, %v310
    %v312 = vshll.u32 2475754826, %v306
    %v313 = vshrl.u32 2131351028, %v307
    %v314 = vor.u32 %v312, %v313
    %v315 = vshll.u32 2131351028, %v306
    %v316 = vshrl.u32 2102212464, %v307
    %v317 = vor.u32 %v315, %v316
    %v318 = vshll.u32 2102212464, %v306
    %v319 = vshrl.u32 920167782, %v307
    %v320 = vor.u32 %v318, %v319
    %v321 = vshll.u32 920167782, %v306
    %v322 = vshrl.u32 1326507024, %v307
    %v323 = vor.u32 %v321, %v322
    %vm324 = vcmp.lt.s32.totalorder %v305, 1
    %vm325 = vcmp.lt.s32.totalorder %v305, 2
    %vm326 = vcmp.lt.s32.totalorder %v305, 3
    %vm327 = vcmp.lt.s32.totalorder %v305, 4
    %v328 = vsel %vm324, %v308, %v311
    %v329 = vsel %vm327, %v317, 2102212464
    %v330 = vsel %vm326, %v314, %v329
    %v331 = vsel %vm325, %v328, %v330
    %v332 = vsel %vm324, %v311, %v314
    %v333 = vsel %vm327, %v320, 920167782
    %v334 = vsel %vm326, %v317, %v333
    %v335 = vsel %vm325, %v332, %v334
    %v336 = vsel %vm324, %v314, %v317
    %v337 = vsel %vm327, %v323, 1326507024
    %v338 = vsel %vm326, %v320, %v337
    %v339 = vsel %vm325, %v336, %v338
    %v340 = vshll.u32 %v300, 8
    %v341 = vand.u32 %v340, 65535
    %v342 = vshrl.u32 %v340, 16
    %v343 = vand.u32 %v339, 65535
    %v344 = vshrl.u32 %v339, 16
    %v345 = vmul.u32 %v341, %v343
    %v346 = vmul.u32 %v341, %v344
    %v347 = vmul.u32 %v342, %v343
    %v348 = vmul.u32 %v342, %v344
    %v349 = vshll.u32 %v346, 16
    %v350 = vshrl.u32 %v346, 16
    %v351 = vshll.u32 %v347, 16
    %v352 = vshrl.u32 %v347, 16
    %vm353 = vc.u32 %v345, %v349
    %v354 = vsel %vm353, 1, 0
    %v355 = vadd.s32 %v345, %v349
    %v356 = vadd.s32 %v348, %v354
    %vm357 = vc.u32 %v355, %v351
    %v358 = vsel %vm357, 1, 0
    %v359 = vadd.s32 %v355, %v351
    %v360 = vadd.s32 %v356, %v358
    %v361 = vadd.s32 %v360, %v350
    %v362 = vadd.s32 %v361, %v352
    %v363 = vand.u32 %v340, 65535
    %v364 = vshrl.u32 %v340, 16
    %v365 = vand.u32 %v335, 65535
    %v366 = vshrl.u32 %v335, 16
    %v367 = vmul.u32 %v363, %v365
    %v368 = vmul.u32 %v363, %v366
    %v369 = vmul.u32 %v364, %v365
    %v370 = vmul.u32 %v364, %v366
    %v371 = vshll.u32 %v368, 16
    %v372 = vshrl.u32 %v368, 16
    %v373 = vshll.u32 %v369, 16
    %v374 = vshrl.u32 %v369, 16
    %vm375 = vc.u32 %v367, %v371
    %v376 = vsel %vm375, 1, 0
    %v377 = vadd.s32 %v367, %v371
    %v378 = vadd.s32 %v370, %v376
    %vm379 = vc.u32 %v377, %v373
    %v380 = vsel %vm379, 1, 0
    %v381 = vadd.s32 %v377, %v373
    %v382 = vadd.s32 %v378, %v380
    %v383 = vadd.s32 %v382, %v372
    %v384 = vadd.s32 %v383, %v374
    %v385 = vmul.u32 %v340, %v331
    %v386 = vadd.s32 %v362, %v381
    %vm387 = vc.u32 %v362, %v381
    %v388 = vadd.s32 %v384, 1
    %v389 = vsel %vm387, %v388, %v384
    %v390 = vadd.s32 %v385, %v389
    %v391 = vadd.s32 %v390, 536870912
    %v392 = vshrl.u32 %v391, 30
    %v393 = vshll.u32 %v392, 30
    %v394 = vsub.s32 %v390, %v393
    %vm395 = vcmp.lt.s32.totalorder %v394, 0
    %v396 = vsub.s32 0, %v394
    %v397 = vsel %vm395, %v396, %v394
    %v398 = vclz %v397
    %v399 = vsub.s32 %v398, 2
    %vm400 = vcmp.gt.s32.totalorder 0, %v399
    %v401 = vsel %vm400, 0, %v399
    %v402 = vsub.s32 32, %v401
    %v403 = vshll.u32 %v394, %v401
    %v404 = vshrl.u32 %v386, %v402
    %v405 = vor.u32 %v403, %v404
    %v406 = vsub.s32 4294967266, %v401
    %v407 = vadd.s32 %v406, 127
    %v408 = vshll.u32 %v407, 23
    %v409 = vor.u32 4788187, %v408
    %v410 = vand.u32 2147483647, %v409
    %v412 = vcvt.s32.f32 %v405
    %v413 = vmul.f32 %v412, %v410
    %v414 = vxor.u32 %v413, 2147483648
    %v415 = vsel %vm294, %v414, %v413
    %v416 = vsub.s32 4, %v392
    %v417 = vsel %vm294, %v416, %v392
    %v418 = vsel %vm293, %v267, %v415
    %v419 = vsel %vm293, 0, %v417
    %v420 = vmul.f32 %v418, %v418
    %v421 = vmul.f32 %v420, -0.001358992
    %v422 = vadd.f32 %v421, 0.041655596
    %v423 = vmul.f32 %v420, %v422
    %v424 = vadd.f32 %v423, -0.4999988
    %v425 = vmul.f32 %v420, %v424
    %v426 = vadd.f32 1.0, %v425
    %v427 = vmul.f32 %v418, %v418
    %v428 = vmul.f32 %v427, -0.00019511016
    %v429 = vadd.f32 %v428, 0.008332121
    %v430 = vmul.f32 %v427, %v429
    %v431 = vadd.f32 %v430, -0.16666654
    %v432 = vmul.f32 %v427, %v431
    %v433 = vadd.f32 %v432, 1.0
    %v434 = vmul.f32 %v433, %v418
    %vm435 = vweird.f32 %v267
    %v436 = vadd.s32 %v419, 3
    %v437 = vand.u32 %v436, 3
    %vm438 = vcmp.lt.s32.totalorder %v437, 2
    %vm439 = vcmp.eq.s32.totalorder %v437, 0
    %v440 = vxor.u32 %v434, 2147483648
    %v441 = vsel %vm439, %v426, %v440
    %vm442 = vcmp.eq.s32.totalorder %v437, 2
    %v443 = vxor.u32 %v426, 2147483648
    %v444 = vsel %vm442, %v443, %v434
    %v445 = vsel %vm438, %v441, %v444
    %v446 = vsel %vm435, nan, %v445
    %v447 = vand.u32 2147483647, %v268
    %vm448 = vcmp.le.f32.partialorder %v447, 0.7853982
    %vm449 = vcmp.lt.s32.totalorder %v268, 0
    %v450 = vand.u32 %v268, 2139095040
    %v451 = vshrl.u32 %v450, 23
    %v452 = vsub.s32 %v451, 127
    %v453 = vand.u32 2147483647, %v268
    %v454 = vand.u32 %v453, 8388607
    %v455 = vor.u32 %v454, 8388608
    %v456 = vsub.s32 0, %v455
    %v457 = vadd.s32 %v452, 1
    %vm458 = vcmp.gt.s32.totalorder %v457, 0
    %v459 = vsel %vm458, %v457, 0
    %v460 = vshrl.u32 %v459, 5
    %v461 = vand.u32 %v459, 31
    %v462 = vsub.s32 32, %v461
    %v463 = vshrl.u32 683565275, %v462
    %v464 = vshll.u32 683565275, %v461
    %v465 = vshrl.u32 2475754826, %v462
    %v466 = vor.u32 %v464, %v465
    %v467 = vshll.u32 2475754826, %v461
    %v468 = vshrl.u32 2131351028, %v462
    %v469 = vor.u32 %v467, %v468
    %v470 = vshll.u32 2131351028, %v461
    %v471 = vshrl.u32 2102212464, %v462
    %v472 = vor.u32 %v470, %v471
    %v473 = vshll.u32 2102212464, %v461
    %v474 = vshrl.u32 920167782, %v462
    %v475 = vor.u32 %v473, %v474
    %v476 = vshll.u32 920167782, %v461
    %v477 = vshrl.u32 1326507024, %v462
    %v478 = vor.u32 %v476, %v477
    %vm479 = vcmp.lt.s32.totalorder %v460, 1
    %vm480 = vcmp.lt.s32.totalorder %v460, 2
    %vm481 = vcmp.lt.s32.totalorder %v460, 3
    %vm482 = vcmp.lt.s32.totalorder %v460, 4
    %v483 = vsel %vm479, %v463, %v466
    %v484 = vsel %vm482, %v472, 2102212464
    %v485 = vsel %vm481, %v469, %v484
    %v486 = vsel %vm480, %v483, %v485
    %v487 = vsel %vm479, %v466, %v469
    %v488 = vsel %vm482, %v475, 920167782
    %v489 = vsel %vm481, %v472, %v488
    %v490 = vsel %vm480, %v487, %v489
    %v491 = vsel %vm479, %v469, %v472
    %v492 = vsel %vm482, %v478, 1326507024
    %v493 = vsel %vm481, %v475, %v492
    %v494 = vsel %vm480, %v491, %v493
    %v495 = vshll.u32 %v455, 8
    %v496 = vand.u32 %v495, 65535
    %v497 = vshrl.u32 %v495, 16
    %v498 = vand.u32 %v494, 65535
    %v499 = vshrl.u32 %v494, 16
    %v500 = vmul.u32 %v496, %v498
    %v501 = vmul.u32 %v496, %v499
    %v502 = vmul.u32 %v497, %v498
    %v503 = vmul.u32 %v497, %v499
    %v504 = vshll.u32 %v501, 16
    %v505 = vshrl.u32 %v501, 16
    %v506 = vshll.u32 %v502, 16
    %v507 = vshrl.u32 %v502, 16
    %vm508 = vc.u32 %v500, %v504
    %v509 = vsel %vm508, 1, 0
    %v510 = vadd.s32 %v500, %v504
    %v511 = vadd.s32 %v503, %v509
    %vm512 = vc.u32 %v510, %v506
    %v513 = vsel %vm512, 1, 0
    %v514 = vadd.s32 %v510, %v506
    %v515 = vadd.s32 %v511, %v513
    %v516 = vadd.s32 %v515, %v505
    %v517 = vadd.s32 %v516, %v507
    %v518 = vand.u32 %v495, 65535
    %v519 = vshrl.u32 %v495, 16
    %v520 = vand.u32 %v490, 65535
    %v521 = vshrl.u32 %v490, 16
    %v522 = vmul.u32 %v518, %v520
    %v523 = vmul.u32 %v518, %v521
    %v524 = vmul.u32 %v519, %v520
    %v525 = vmul.u32 %v519, %v521
    %v526 = vshll.u32 %v523, 16
    %v527 = vshrl.u32 %v523, 16
    %v528 = vshll.u32 %v524, 16
    %v529 = vshrl.u32 %v524, 16
    %vm530 = vc.u32 %v522, %v526
    %v531 = vsel %vm530, 1, 0
    %v532 = vadd.s32 %v522, %v526
    %v533 = vadd.s32 %v525, %v531
    %vm534 = vc.u32 %v532, %v528
    %v535 = vsel %vm534, 1, 0
    %v536 = vadd.s32 %v532, %v528
    %v537 = vadd.s32 %v533, %v535
    %v538 = vadd.s32 %v537, %v527
    %v539 = vadd.s32 %v538, %v529
    %v540 = vmul.u32 %v495, %v486
    %v541 = vadd.s32 %v517, %v536
    %vm542 = vc.u32 %v517, %v536
    %v543 = vadd.s32 %v539, 1
    %v544 = vsel %vm542, %v543, %v539
    %v545 = vadd.s32 %v540, %v544
    %v546 = vadd.s32 %v545, 536870912
    %v547 = vshrl.u32 %v546, 30
    %v548 = vshll.u32 %v547, 30
    %v549 = vsub.s32 %v545, %v548
    %vm550 = vcmp.lt.s32.totalorder %v549, 0
    %v551 = vsub.s32 0, %v549
    %v552 = vsel %vm550, %v551, %v549
    %v553 = vclz %v552
    %v554 = vsub.s32 %v553, 2
    %vm555 = vcmp.gt.s32.totalorder 0, %v554
    %v556 = vsel %vm555, 0, %v554
    %v557 = vsub.s32 32, %v556
    %v558 = vshll.u32 %v549, %v556
    %v559 = vshrl.u32 %v541, %v557
    %v560 = vor.u32 %v558, %v559
    %v561 = vsub.s32 4294967266, %v556
    %v562 = vadd.s32 %v561, 127
    %v563 = vshll.u32 %v562, 23
    %v564 = vor.u32 4788187, %v563
    %v565 = vand.u32 2147483647, %v564
    %v567 = vcvt.s32.f32 %v560
    %v568 = vmul.f32 %v567, %v565
    %v569 = vxor.u32 %v568, 2147483648
    %v570 = vsel %vm449, %v569, %v568
    %v571 = vsub.s32 4, %v547
    %v572 = vsel %vm449, %v571, %v547
    %v573 = vsel %vm448, %v268, %v570
    %v574 = vsel %vm448, 0, %v572
    %v575 = vmul.f32 %v573, %v573
    %v576 = vmul.f32 %v575, -0.001358992
    %v577 = vadd.f32 %v576, 0.041655596
    %v578 = vmul.f32 %v575, %v577
    %v579 = vadd.f32 %v578, -0.4999988
    %v580 = vmul.f32 %v575, %v579
    %v581 = vadd.f32 1.0, %v580
    %v582 = vmul.f32 %v573, %v573
    %v583 = vmul.f32 %v582, -0.00019511016
    %v584 = vadd.f32 %v583, 0.008332121
    %v585 = vmul.f32 %v582, %v584
    %v586 = vadd.f32 %v585, -0.16666654
    %v587 = vmul.f32 %v582, %v586
    %v588 = vadd.f32 %v587, 1.0
    %v589 = vmul.f32 %v588, %v573
    %vm590 = vweird.f32 %v268
    %v591 = vadd.s32 %v574, 3
    %v592 = vand.u32 %v591, 3
    %vm593 = vcmp.lt.s32.totalorder %v592, 2
    %vm594 = vcmp.eq.s32.totalorder %v592, 0
    %v595 = vxor.u32 %v589, 2147483648
    %v596 = vsel %vm594, %v581, %v595
    %vm597 = vcmp.eq.s32.totalorder %v592, 2
    %v598 = vxor.u32 %v581, 2147483648
    %v599 = vsel %vm597, %v598, %v589
    %v600 = vsel %vm593, %v596, %v599
    %v601 = vsel %vm590, nan, %v600
    %v602 = vand.u32 2147483647, %v269
    %vm603 = vcmp.le.f32.partialorder %v602, 0.7853982
    %vm604 = vcmp.lt.s32.totalorder %v269, 0
    %v605 = vand.u32 %v269, 2139095040
    %v606 = vshrl.u32 %v605, 23
    %v607 = vsub.s32 %v606, 127
    %v608 = vand.u32 2147483647, %v269
    %v609 = vand.u32 %v608, 8388607
    %v610 = vor.u32 %v609, 8388608
    %v611 = vsub.s32 0, %v610
    %v612 = vadd.s32 %v607, 1
    %vm613 = vcmp.gt.s32.totalorder %v612, 0
    %v614 = vsel %vm613, %v612, 0
    %v615 = vshrl.u32 %v614, 5
    %v616 = vand.u32 %v614, 31
    %v617 = vsub.s32 32, %v616
    %v618 = vshrl.u32 683565275, %v617
    %v619 = vshll.u32 683565275, %v616
    %v620 = vshrl.u32 2475754826, %v617
    %v621 = vor.u32 %v619, %v620
    %v622 = vshll.u32 2475754826, %v616
    %v623 = vshrl.u32 2131351028, %v617
    %v624 = vor.u32 %v622, %v623
    %v625 = vshll.u32 2131351028, %v616
    %v626 = vshrl.u32 2102212464, %v617
    %v627 = vor.u32 %v625, %v626
    %v628 = vshll.u32 2102212464, %v616
    %v629 = vshrl.u32 920167782, %v617
    %v630 = vor.u32 %v628, %v629
    %v631 = vshll.u32 920167782, %v616
    %v632 = vshrl.u32 1326507024, %v617
    %v633 = vor.u32 %v631, %v632
    %vm634 = vcmp.lt.s32.totalorder %v615, 1
    %vm635 = vcmp.lt.s32.totalorder %v615, 2
    %vm636 = vcmp.lt.s32.totalorder %v615, 3
    %vm637 = vcmp.lt.s32.totalorder %v615, 4
    %v638 = vsel %vm634, %v618, %v621
    %v639 = vsel %vm637, %v627, 2102212464
    %v640 = vsel %vm636, %v624, %v639
    %v641 = vsel %vm635, %v638, %v640
    %v642 = vsel %vm634, %v621, %v624
    %v643 = vsel %vm637, %v630, 920167782
    %v644 = vsel %vm636, %v627, %v643
    %v645 = vsel %vm635, %v642, %v644
    %v646 = vsel %vm634, %v624, %v627
    %v647 = vsel %vm637, %v633, 1326507024
    %v648 = vsel %vm636, %v630, %v647
    %v649 = vsel %vm635, %v646, %v648
    %v650 = vshll.u32 %v610, 8
    %v651 = vand.u32 %v650, 65535
    %v652 = vshrl.u32 %v650, 16
    %v653 = vand.u32 %v649, 65535
    %v654 = vshrl.u32 %v649, 16
    %v655 = vmul.u32 %v651, %v653
    %v656 = vmul.u32 %v651, %v654
    %v657 = vmul.u32 %v652, %v653
    %v658 = vmul.u32 %v652, %v654
    %v659 = vshll.u32 %v656, 16
    %v660 = vshrl.u32 %v656, 16
    %v661 = vshll.u32 %v657, 16
    %v662 = vshrl.u32 %v657, 16
    %vm663 = vc.u32 %v655, %v659
    %v664 = vsel %vm663, 1, 0
    %v665 = vadd.s32 %v655, %v659
    %v666 = vadd.s32 %v658, %v664
    %vm667 = vc.u32 %v665, %v661
    %v668 = vsel %vm667, 1, 0
    %v669 = vadd.s32 %v665, %v661
    %v670 = vadd.s32 %v666, %v668
    %v671 = vadd.s32 %v670, %v660
    %v672 = vadd.s32 %v671, %v662
    %v673 = vand.u32 %v650, 65535
    %v674 = vshrl.u32 %v650, 16
    %v675 = vand.u32 %v645, 65535
    %v676 = vshrl.u32 %v645, 16
    %v677 = vmul.u32 %v673, %v675
    %v678 = vmul.u32 %v673, %v676
    %v679 = vmul.u32 %v674, %v675
    %v680 = vmul.u32 %v674, %v676
    %v681 = vshll.u32 %v678, 16
    %v682 = vshrl.u32 %v678, 16
    %v683 = vshll.u32 %v679, 16
    %v684 = vshrl.u32 %v679, 16
    %vm685 = vc.u32 %v677, %v681
    %v686 = vsel %vm685, 1, 0
    %v687 = vadd.s32 %v677, %v681
    %v688 = vadd.s32 %v680, %v686
    %vm689 = vc.u32 %v687, %v683
    %v690 = vsel %vm689, 1, 0
    %v691 = vadd.s32 %v687, %v683
    %v692 = vadd.s32 %v688, %v690
    %v693 = vadd.s32 %v692, %v682
    %v694 = vadd.s32 %v693, %v684
    %v695 = vmul.u32 %v650, %v641
    %v696 = vadd.s32 %v672, %v691
    %vm697 = vc.u32 %v672, %v691
    %v698 = vadd.s32 %v694, 1
    %v699 = vsel %vm697, %v698, %v694
    %v700 = vadd.s32 %v695, %v699
    %v701 = vadd.s32 %v700, 536870912
    %v702 = vshrl.u32 %v701, 30
    %v703 = vshll.u32 %v702, 30
    %v704 = vsub.s32 %v700, %v703
    %vm705 = vcmp.lt.s32.totalorder %v704, 0
    %v706 = vsub.s32 0, %v704
    %v707 = vsel %vm705, %v706, %v704
    %v708 = vclz %v707
    %v709 = vsub.s32 %v708, 2
    %vm710 = vcmp.gt.s32.totalorder 0, %v709
    %v711 = vsel %vm710, 0, %v709
    %v712 = vsub.s32 32, %v711
    %v713 = vshll.u32 %v704, %v711
    %v714 = vshrl.u32 %v696, %v712
    %v715 = vor.u32 %v713, %v714
    %v716 = vsub.s32 4294967266, %v711
    %v717 = vadd.s32 %v716, 127
    %v718 = vshll.u32 %v717, 23
    %v719 = vor.u32 4788187, %v718
    %v720 = vand.u32 2147483647, %v719
    %v722 = vcvt.s32.f32 %v715
    %v723 = vmul.f32 %v722, %v720
    %v724 = vxor.u32 %v723, 2147483648
    %v725 = vsel %vm604, %v724, %v723
    %v726 = vsub.s32 4, %v702
    %v727 = vsel %vm604, %v726, %v702
    %v728 = vsel %vm603, %v269, %v725
    %v729 = vsel %vm603, 0, %v727
    %v730 = vmul.f32 %v728, %v728
    %v731 = vmul.f32 %v730, -0.001358992
    %v732 = vadd.f32 %v731, 0.041655596
    %v733 = vmul.f32 %v730, %v732
    %v734 = vadd.f32 %v733, -0.4999988
    %v735 = vmul.f32 %v730, %v734
    %v736 = vadd.f32 1.0, %v735
    %v737 = vmul.f32 %v728, %v728
    %v738 = vmul.f32 %v737, -0.00019511016
    %v739 = vadd.f32 %v738, 0.008332121
    %v740 = vmul.f32 %v737, %v739
    %v741 = vadd.f32 %v740, -0.16666654
    %v742 = vmul.f32 %v737, %v741
    %v743 = vadd.f32 %v742, 1.0
    %v744 = vmul.f32 %v743, %v728
    %vm745 = vweird.f32 %v269
    %v746 = vadd.s32 %v729, 3
    %v747 = vand.u32 %v746, 3
    %vm748 = vcmp.lt.s32.totalorder %v747, 2
    %vm749 = vcmp.eq.s32.totalorder %v747, 0
    %v750 = vxor.u32 %v744, 2147483648
    %v751 = vsel %vm749, %v736, %v750
    %vm752 = vcmp.eq.s32.totalorder %v747, 2
    %v753 = vxor.u32 %v736, 2147483648
    %v754 = vsel %vm752, %v753, %v744
    %v755 = vsel %vm748, %v751, %v754
    %v756 = vsel %vm745, nan, %v755
    %v757 = vand.u32 2147483647, %v270
    %vm758 = vcmp.le.f32.partialorder %v757, 0.7853982
    %vm759 = vcmp.lt.s32.totalorder %v270, 0
    %v760 = vand.u32 %v270, 2139095040
    %v761 = vshrl.u32 %v760, 23
    %v762 = vsub.s32 %v761, 127
    %v763 = vand.u32 2147483647, %v270
    %v764 = vand.u32 %v763, 8388607
    %v765 = vor.u32 %v764, 8388608
    %v766 = vsub.s32 0, %v765
    %v767 = vadd.s32 %v762, 1
    %vm768 = vcmp.gt.s32.totalorder %v767, 0
    %v769 = vsel %vm768, %v767, 0
    %v770 = vshrl.u32 %v769, 5
    %v771 = vand.u32 %v769, 31
    %v772 = vsub.s32 32, %v771
    %v773 = vshrl.u32 683565275, %v772
    %v774 = vshll.u32 683565275, %v771
    %v775 = vshrl.u32 2475754826, %v772
    %v776 = vor.u32 %v774, %v775
    %v777 = vshll.u32 2475754826, %v771
    %v778 = vshrl.u32 2131351028, %v772
    %v779 = vor.u32 %v777, %v778
    %v780 = vshll.u32 2131351028, %v771
    %v781 = vshrl.u32 2102212464, %v772
    %v782 = vor.u32 %v780, %v781
    %v783 = vshll.u32 2102212464, %v771
    %v784 = vshrl.u32 920167782, %v772
    %v785 = vor.u32 %v783, %v784
    %v786 = vshll.u32 920167782, %v771
    %v787 = vshrl.u32 1326507024, %v772
    %v788 = vor.u32 %v786, %v787
    %vm789 = vcmp.lt.s32.totalorder %v770, 1
    %vm790 = vcmp.lt.s32.totalorder %v770, 2
    %vm791 = vcmp.lt.s32.totalorder %v770, 3
    %vm792 = vcmp.lt.s32.totalorder %v770, 4
    %v793 = vsel %vm789, %v773, %v776
    %v794 = vsel %vm792, %v782, 2102212464
    %v795 = vsel %vm791, %v779, %v794
    %v796 = vsel %vm790, %v793, %v795
    %v797 = vsel %vm789, %v776, %v779
    %v798 = vsel %vm792, %v785, 920167782
    %v799 = vsel %vm791, %v782, %v798
    %v800 = vsel %vm790, %v797, %v799
    %v801 = vsel %vm789, %v779, %v782
    %v802 = vsel %vm792, %v788, 1326507024
    %v803 = vsel %vm791, %v785, %v802
    %v804 = vsel %vm790, %v801, %v803
    %v805 = vshll.u32 %v765, 8
    %v806 = vand.u32 %v805, 65535
    %v807 = vshrl.u32 %v805, 16
    %v808 = vand.u32 %v804, 65535
    %v809 = vshrl.u32 %v804, 16
    %v810 = vmul.u32 %v806, %v808
    %v811 = vmul.u32 %v806, %v809
    %v812 = vmul.u32 %v807, %v808
    %v813 = vmul.u32 %v807, %v809
    %v814 = vshll.u32 %v811, 16
    %v815 = vshrl.u32 %v811, 16
    %v816 = vshll.u32 %v812, 16
    %v817 = vshrl.u32 %v812, 16
    %vm818 = vc.u32 %v810, %v814
    %v819 = vsel %vm818, 1, 0
    %v820 = vadd.s32 %v810, %v814
    %v821 = vadd.s32 %v813, %v819
    %vm822 = vc.u32 %v820, %v816
    %v823 = vsel %vm822, 1, 0
    %v824 = vadd.s32 %v820, %v816
    %v825 = vadd.s32 %v821, %v823
    %v826 = vadd.s32 %v825, %v815
    %v827 = vadd.s32 %v826, %v817
    %v828 = vand.u32 %v805, 65535
    %v829 = vshrl.u32 %v805, 16
    %v830 = vand.u32 %v800, 65535
    %v831 = vshrl.u32 %v800, 16
    %v832 = vmul.u32 %v828, %v830
    %v833 = vmul.u32 %v828, %v831
    %v834 = vmul.u32 %v829, %v830
    %v835 = vmul.u32 %v829, %v831
    %v836 = vshll.u32 %v833, 16
    %v837 = vshrl.u32 %v833, 16
    %v838 = vshll.u32 %v834, 16
    %v839 = vshrl.u32 %v834, 16
    %vm840 = vc.u32 %v832, %v836
    %v841 = vsel %vm840, 1, 0
    %v842 = vadd.s32 %v832, %v836
    %v843 = vadd.s32 %v835, %v841
    %vm844 = vc.u32 %v842, %v838
    %v845 = vsel %vm844, 1, 0
    %v846 = vadd.s32 %v842, %v838
    %v847 = vadd.s32 %v843, %v845
    %v848 = vadd.s32 %v847, %v837
    %v849 = vadd.s32 %v848, %v839
    %v850 = vmul.u32 %v805, %v796
    %v851 = vadd.s32 %v827, %v846
    %vm852 = vc.u32 %v827, %v846
    %v853 = vadd.s32 %v849, 1
    %v854 = vsel %vm852, %v853, %v849
    %v855 = vadd.s32 %v850, %v854
    %v856 = vadd.s32 %v855, 536870912
    %v857 = vshrl.u32 %v856, 30
    %v858 = vshll.u32 %v857, 30
    %v859 = vsub.s32 %v855, %v858
    %vm860 = vcmp.lt.s32.totalorder %v859, 0
    %v861 = vsub.s32 0, %v859
    %v862 = vsel %vm860, %v861, %v859
    %v863 = vclz %v862
    %v864 = vsub.s32 %v863, 2
    %vm865 = vcmp.gt.s32.totalorder 0, %v864
    %v866 = vsel %vm865, 0, %v864
    %v867 = vsub.s32 32, %v866
    %v868 = vshll.u32 %v859, %v866
    %v869 = vshrl.u32 %v851, %v867
    %v870 = vor.u32 %v868, %v869
    %v871 = vsub.s32 4294967266, %v866
    %v872 = vadd.s32 %v871, 127
    %v873 = vshll.u32 %v872, 23
    %v874 = vor.u32 4788187, %v873
    %v875 = vand.u32 2147483647, %v874
    %v877 = vcvt.s32.f32 %v870
    %v878 = vmul.f32 %v877, %v875
    %v879 = vxor.u32 %v878, 2147483648
    %v880 = vsel %vm759, %v879, %v878
    %v881 = vsub.s32 4, %v857
    %v882 = vsel %vm759, %v881, %v857
    %v883 = vsel %vm758, %v270, %v880
    %v884 = vsel %vm758, 0, %v882
    %v885 = vmul.f32 %v883, %v883
    %v886 = vmul.f32 %v885, -0.001358992
    %v887 = vadd.f32 %v886, 0.041655596
    %v888 = vmul.f32 %v885, %v887
    %v889 = vadd.f32 %v888, -0.4999988
    %v890 = vmul.f32 %v885, %v889
    %v891 = vadd.f32 1.0, %v890
    %v892 = vmul.f32 %v883, %v883
    %v893 = vmul.f32 %v892, -0.00019511016
    %v894 = vadd.f32 %v893, 0.008332121
    %v895 = vmul.f32 %v892, %v894
    %v896 = vadd.f32 %v895, -0.16666654
    %v897 = vmul.f32 %v892, %v896
    %v898 = vadd.f32 %v897, 1.0
    %v899 = vmul.f32 %v898, %v883
    %vm900 = vweird.f32 %v270
    %v901 = vadd.s32 %v884, 3
    %v902 = vand.u32 %v901, 3
    %vm903 = vcmp.lt.s32.totalorder %v902, 2
    %vm904 = vcmp.eq.s32.totalorder %v902, 0
    %v905 = vxor.u32 %v899, 2147483648
    %v906 = vsel %vm904, %v891, %v905
    %vm907 = vcmp.eq.s32.totalorder %v902, 2
    %v908 = vxor.u32 %v891, 2147483648
    %v909 = vsel %vm907, %v908, %v899
    %v910 = vsel %vm903, %v906, %v909
    %v911 = vsel %vm900, nan, %v910
    %v912 = vand.u32 2147483647, %v271
    %vm913 = vcmp.le.f32.partialorder %v912, 0.7853982
    %vm914 = vcmp.lt.s32.totalorder %v271, 0
    %v915 = vand.u32 %v271, 2139095040
    %v916 = vshrl.u32 %v915, 23
    %v917 = vsub.s32 %v916, 127
    %v918 = vand.u32 2147483647, %v271
    %v919 = vand.u32 %v918, 8388607
    %v920 = vor.u32 %v919, 8388608
    %v921 = vsub.s32 0, %v920
    %v922 = vadd.s32 %v917, 1
    %vm923 = vcmp.gt.s32.totalorder %v922, 0
    %v924 = vsel %vm923, %v922, 0
    %v925 = vshrl.u32 %v924, 5
    %v926 = vand.u32 %v924, 31
    %v927 = vsub.s32 32, %v926
    %v928 = vshrl.u32 683565275, %v927
    %v929 = vshll.u32 683565275, %v926
    %v930 = vshrl.u32 2475754826, %v927
    %v931 = vor.u32 %v929, %v930
    %v932 = vshll.u32 2475754826, %v926
    %v933 = vshrl.u32 2131351028, %v927
    %v934 = vor.u32 %v932, %v933
    %v935 = vshll.u32 2131351028, %v926
    %v936 = vshrl.u32 2102212464, %v927
    %v937 = vor.u32 %v935, %v936
    %v938 = vshll.u32 2102212464, %v926
    %v939 = vshrl.u32 920167782, %v927
    %v940 = vor.u32 %v938, %v939
    %v941 = vshll.u32 920167782, %v926
    %v942 = vshrl.u32 1326507024, %v927
    %v943 = vor.u32 %v941, %v942
    %vm944 = vcmp.lt.s32.totalorder %v925, 1
    %vm945 = vcmp.lt.s32.totalorder %v925, 2
    %vm946 = vcmp.lt.s32.totalorder %v925, 3
    %vm947 = vcmp.lt.s32.totalorder %v925, 4
    %v948 = vsel %vm944, %v928, %v931
    %v949 = vsel %vm947, %v937, 2102212464
    %v950 = vsel %vm946, %v934, %v949
    %v951 = vsel %vm945, %v948, %v950
    %v952 = vsel %vm944, %v931, %v934
    %v953 = vsel %vm947, %v940, 920167782
    %v954 = vsel %vm946, %v937, %v953
    %v955 = vsel %vm945, %v952, %v954
    %v956 = vsel %vm944, %v934, %v937
    %v957 = vsel %vm947, %v943, 1326507024
    %v958 = vsel %vm946, %v940, %v957
    %v959 = vsel %vm945, %v956, %v958
    %v960 = vshll.u32 %v920, 8
    %v961 = vand.u32 %v960, 65535
    %v962 = vshrl.u32 %v960, 16
    %v963 = vand.u32 %v959, 65535
    %v964 = vshrl.u32 %v959, 16
    %v965 = vmul.u32 %v961, %v963
    %v966 = vmul.u32 %v961, %v964
    %v967 = vmul.u32 %v962, %v963
    %v968 = vmul.u32 %v962, %v964
    %v969 = vshll.u32 %v966, 16
    %v970 = vshrl.u32 %v966, 16
    %v971 = vshll.u32 %v967, 16
    %v972 = vshrl.u32 %v967, 16
    %vm973 = vc.u32 %v965, %v969
    %v974 = vsel %vm973, 1, 0
    %v975 = vadd.s32 %v965, %v969
    %v976 = vadd.s32 %v968, %v974
    %vm977 = vc.u32 %v975, %v971
    %v978 = vsel %vm977, 1, 0
    %v979 = vadd.s32 %v975, %v971
    %v980 = vadd.s32 %v976, %v978
    %v981 = vadd.s32 %v980, %v970
    %v982 = vadd.s32 %v981, %v972
    %v983 = vand.u32 %v960, 65535
    %v984 = vshrl.u32 %v960, 16
    %v985 = vand.u32 %v955, 65535
    %v986 = vshrl.u32 %v955, 16
    %v987 = vmul.u32 %v983, %v985
    %v988 = vmul.u32 %v983, %v986
    %v989 = vmul.u32 %v984, %v985
    %v990 = vmul.u32 %v984, %v986
    %v991 = vshll.u32 %v988, 16
    %v992 = vshrl.u32 %v988, 16
    %v993 = vshll.u32 %v989, 16
    %v994 = vshrl.u32 %v989, 16
    %vm995 = vc.u32 %v987, %v991
    %v996 = vsel %vm995, 1, 0
    %v997 = vadd.s32 %v987, %v991
    %v998 = vadd.s32 %v990, %v996
    %vm999 = vc.u32 %v997, %v993
    %v1000 = vsel %vm999, 1, 0
    %v1001 = vadd.s32 %v997, %v993
    %v1002 = vadd.s32 %v998, %v1000
    %v1003 = vadd.s32 %v1002, %v992
    %v1004 = vadd.s32 %v1003, %v994
    %v1005 = vmul.u32 %v960, %v951
    %v1006 = vadd.s32 %v982, %v1001
    %vm1007 = vc.u32 %v982, %v1001
    %v1008 = vadd.s32 %v1004, 1
    %v1009 = vsel %vm1007, %v1008, %v1004
    %v1010 = vadd.s32 %v1005, %v1009
    %v1011 = vadd.s32 %v1010, 536870912
    %v1012 = vshrl.u32 %v1011, 30
    %v1013 = vshll.u32 %v1012, 30
    %v1014 = vsub.s32 %v1010, %v1013
    %vm1015 = vcmp.lt.s32.totalorder %v1014, 0
    %v1016 = vsub.s32 0, %v1014
    %v1017 = vsel %vm1015, %v1016, %v1014
    %v1018 = vclz %v1017
    %v1019 = vsub.s32 %v1018, 2
    %vm1020 = vcmp.gt.s32.totalorder 0, %v1019
    %v1021 = vsel %vm1020, 0, %v1019
    %v1022 = vsub.s32 32, %v1021
    %v1023 = vshll.u32 %v1014, %v1021
    %v1024 = vshrl.u32 %v1006, %v1022
    %v1025 = vor.u32 %v1023, %v1024
    %v1026 = vsub.s32 4294967266, %v1021
    %v1027 = vadd.s32 %v1026, 127
    %v1028 = vshll.u32 %v1027, 23
    %v1029 = vor.u32 4788187, %v1028
    %v1030 = vand.u32 2147483647, %v1029
    %v1032 = vcvt.s32.f32 %v1025
    %v1033 = vmul.f32 %v1032, %v1030
    %v1034 = vxor.u32 %v1033, 2147483648
    %v1035 = vsel %vm914, %v1034, %v1033
    %v1036 = vsub.s32 4, %v1012
    %v1037 = vsel %vm914, %v1036, %v1012
    %v1038 = vsel %vm913, %v271, %v1035
    %v1039 = vsel %vm913, 0, %v1037
    %v1040 = vmul.f32 %v1038, %v1038
    %v1041 = vmul.f32 %v1040, -0.001358992
    %v1042 = vadd.f32 %v1041, 0.041655596
    %v1043 = vmul.f32 %v1040, %v1042
    %v1044 = vadd.f32 %v1043, -0.4999988
    %v1045 = vmul.f32 %v1040, %v1044
    %v1046 = vadd.f32 1.0, %v1045
    %v1047 = vmul.f32 %v1038, %v1038
    %v1048 = vmul.f32 %v1047, -0.00019511016
    %v1049 = vadd.f32 %v1048, 0.008332121
    %v1050 = vmul.f32 %v1047, %v1049
    %v1051 = vadd.f32 %v1050, -0.16666654
    %v1052 = vmul.f32 %v1047, %v1051
    %v1053 = vadd.f32 %v1052, 1.0
    %v1054 = vmul.f32 %v1053, %v1038
    %vm1055 = vweird.f32 %v271
    %v1056 = vadd.s32 %v1039, 3
    %v1057 = vand.u32 %v1056, 3
    %vm1058 = vcmp.lt.s32.totalorder %v1057, 2
    %vm1059 = vcmp.eq.s32.totalorder %v1057, 0
    %v1060 = vxor.u32 %v1054, 2147483648
    %v1061 = vsel %vm1059, %v1046, %v1060
    %vm1062 = vcmp.eq.s32.totalorder %v1057, 2
    %v1063 = vxor.u32 %v1046, 2147483648
    %v1064 = vsel %vm1062, %v1063, %v1054
    %v1065 = vsel %vm1058, %v1061, %v1064
    %v1066 = vsel %vm1055, nan, %v1065
    %v1067 = vand.u32 2147483647, %v272
    %vm1068 = vcmp.le.f32.partialorder %v1067, 0.7853982
    %vm1069 = vcmp.lt.s32.totalorder %v272, 0
    %v1070 = vand.u32 %v272, 2139095040
    %v1071 = vshrl.u32 %v1070, 23
    %v1072 = vsub.s32 %v1071, 127
    %v1073 = vand.u32 2147483647, %v272
    %v1074 = vand.u32 %v1073, 8388607
    %v1075 = vor.u32 %v1074, 8388608
    %v1076 = vsub.s32 0, %v1075
    %v1077 = vadd.s32 %v1072, 1
    %vm1078 = vcmp.gt.s32.totalorder %v1077, 0
    %v1079 = vsel %vm1078, %v1077, 0
    %v1080 = vshrl.u32 %v1079, 5
    %v1081 = vand.u32 %v1079, 31
    %v1082 = vsub.s32 32, %v1081
    %v1083 = vshrl.u32 683565275, %v1082
    %v1084 = vshll.u32 683565275, %v1081
    %v1085 = vshrl.u32 2475754826, %v1082
    %v1086 = vor.u32 %v1084, %v1085
    %v1087 = vshll.u32 2475754826, %v1081
    %v1088 = vshrl.u32 2131351028, %v1082
    %v1089 = vor.u32 %v1087, %v1088
    %v1090 = vshll.u32 2131351028, %v1081
    %v1091 = vshrl.u32 2102212464, %v1082
    %v1092 = vor.u32 %v1090, %v1091
    %v1093 = vshll.u32 2102212464, %v1081
    %v1094 = vshrl.u32 920167782, %v1082
    %v1095 = vor.u32 %v1093, %v1094
    %v1096 = vshll.u32 920167782, %v1081
    %v1097 = vshrl.u32 1326507024, %v1082
    %v1098 = vor.u32 %v1096, %v1097
    %vm1099 = vcmp.lt.s32.totalorder %v1080, 1
    %vm1100 = vcmp.lt.s32.totalorder %v1080, 2
    %vm1101 = vcmp.lt.s32.totalorder %v1080, 3
    %vm1102 = vcmp.lt.s32.totalorder %v1080, 4
    %v1103 = vsel %vm1099, %v1083, %v1086
    %v1104 = vsel %vm1102, %v1092, 2102212464
    %v1105 = vsel %vm1101, %v1089, %v1104
    %v1106 = vsel %vm1100, %v1103, %v1105
    %v1107 = vsel %vm1099, %v1086, %v1089
    %v1108 = vsel %vm1102, %v1095, 920167782
    %v1109 = vsel %vm1101, %v1092, %v1108
    %v1110 = vsel %vm1100, %v1107, %v1109
    %v1111 = vsel %vm1099, %v1089, %v1092
    %v1112 = vsel %vm1102, %v1098, 1326507024
    %v1113 = vsel %vm1101, %v1095, %v1112
    %v1114 = vsel %vm1100, %v1111, %v1113
    %v1115 = vshll.u32 %v1075, 8
    %v1116 = vand.u32 %v1115, 65535
    %v1117 = vshrl.u32 %v1115, 16
    %v1118 = vand.u32 %v1114, 65535
    %v1119 = vshrl.u32 %v1114, 16
    %v1120 = vmul.u32 %v1116, %v1118
    %v1121 = vmul.u32 %v1116, %v1119
    %v1122 = vmul.u32 %v1117, %v1118
    %v1123 = vmul.u32 %v1117, %v1119
    %v1124 = vshll.u32 %v1121, 16
    %v1125 = vshrl.u32 %v1121, 16
    %v1126 = vshll.u32 %v1122, 16
    %v1127 = vshrl.u32 %v1122, 16
    %vm1128 = vc.u32 %v1120, %v1124
    %v1129 = vsel %vm1128, 1, 0
    %v1130 = vadd.s32 %v1120, %v1124
    %v1131 = vadd.s32 %v1123, %v1129
    %vm1132 = vc.u32 %v1130, %v1126
    %v1133 = vsel %vm1132, 1, 0
    %v1134 = vadd.s32 %v1130, %v1126
    %v1135 = vadd.s32 %v1131, %v1133
    %v1136 = vadd.s32 %v1135, %v1125
    %v1137 = vadd.s32 %v1136, %v1127
    %v1138 = vand.u32 %v1115, 65535
    %v1139 = vshrl.u32 %v1115, 16
    %v1140 = vand.u32 %v1110, 65535
    %v1141 = vshrl.u32 %v1110, 16
    %v1142 = vmul.u32 %v1138, %v1140
    %v1143 = vmul.u32 %v1138, %v1141
    %v1144 = vmul.u32 %v1139, %v1140
    %v1145 = vmul.u32 %v1139, %v1141
    %v1146 = vshll.u32 %v1143, 16
    %v1147 = vshrl.u32 %v1143, 16
    %v1148 = vshll.u32 %v1144, 16
    %v1149 = vshrl.u32 %v1144, 16
    %vm1150 = vc.u32 %v1142, %v1146
    %v1151 = vsel %vm1150, 1, 0
    %v1152 = vadd.s32 %v1142, %v1146
    %v1153 = vadd.s32 %v1145, %v1151
    %vm1154 = vc.u32 %v1152, %v1148
    %v1155 = vsel %vm1154, 1, 0
    %v1156 = vadd.s32 %v1152, %v1148
    %v1157 = vadd.s32 %v1153, %v1155
    %v1158 = vadd.s32 %v1157, %v1147
    %v1159 = vadd.s32 %v1158, %v1149
    %v1160 = vmul.u32 %v1115, %v1106
    %v1161 = vadd.s32 %v1137, %v1156
    %vm1162 = vc.u32 %v1137, %v1156
    %v1163 = vadd.s32 %v1159, 1
    %v1164 = vsel %vm1162, %v1163, %v1159
    %v1165 = vadd.s32 %v1160, %v1164
    %v1166 = vadd.s32 %v1165, 536870912
    %v1167 = vshrl.u32 %v1166, 30
    %v1168 = vshll.u32 %v1167, 30
    %v1169 = vsub.s32 %v1165, %v1168
    %vm1170 = vcmp.lt.s32.totalorder %v1169, 0
    %v1171 = vsub.s32 0, %v1169
    %v1172 = vsel %vm1170, %v1171, %v1169
    %v1173 = vclz %v1172
    %v1174 = vsub.s32 %v1173, 2
    %vm1175 = vcmp.gt.s32.totalorder 0, %v1174
    %v1176 = vsel %vm1175, 0, %v1174
    %v1177 = vsub.s32 32, %v1176
    %v1178 = vshll.u32 %v1169, %v1176
    %v1179 = vshrl.u32 %v1161, %v1177
    %v1180 = vor.u32 %v1178, %v1179
    %v1181 = vsub.s32 4294967266, %v1176
    %v1182 = vadd.s32 %v1181, 127
    %v1183 = vshll.u32 %v1182, 23
    %v1184 = vor.u32 4788187, %v1183
    %v1185 = vand.u32 2147483647, %v1184
    %v1187 = vcvt.s32.f32 %v1180
    %v1188 = vmul.f32 %v1187, %v1185
    %v1189 = vxor.u32 %v1188, 2147483648
    %v1190 = vsel %vm1069, %v1189, %v1188
    %v1191 = vsub.s32 4, %v1167
    %v1192 = vsel %vm1069, %v1191, %v1167
    %v1193 = vsel %vm1068, %v272, %v1190
    %v1194 = vsel %vm1068, 0, %v1192
    %v1195 = vmul.f32 %v1193, %v1193
    %v1196 = vmul.f32 %v1195, -0.001358992
    %v1197 = vadd.f32 %v1196, 0.041655596
    %v1198 = vmul.f32 %v1195, %v1197
    %v1199 = vadd.f32 %v1198, -0.4999988
    %v1200 = vmul.f32 %v1195, %v1199
    %v1201 = vadd.f32 1.0, %v1200
    %v1202 = vmul.f32 %v1193, %v1193
    %v1203 = vmul.f32 %v1202, -0.00019511016
    %v1204 = vadd.f32 %v1203, 0.008332121
    %v1205 = vmul.f32 %v1202, %v1204
    %v1206 = vadd.f32 %v1205, -0.16666654
    %v1207 = vmul.f32 %v1202, %v1206
    %v1208 = vadd.f32 %v1207, 1.0
    %v1209 = vmul.f32 %v1208, %v1193
    %vm1210 = vweird.f32 %v272
    %v1211 = vadd.s32 %v1194, 3
    %v1212 = vand.u32 %v1211, 3
    %vm1213 = vcmp.lt.s32.totalorder %v1212, 2
    %vm1214 = vcmp.eq.s32.totalorder %v1212, 0
    %v1215 = vxor.u32 %v1209, 2147483648
    %v1216 = vsel %vm1214, %v1201, %v1215
    %vm1217 = vcmp.eq.s32.totalorder %v1212, 2
    %v1218 = vxor.u32 %v1201, 2147483648
    %v1219 = vsel %vm1217, %v1218, %v1209
    %v1220 = vsel %vm1213, %v1216, %v1219
    %v1221 = vsel %vm1210, nan, %v1220
    %v1222 = vand.u32 2147483647, %v273
    %vm1223 = vcmp.le.f32.partialorder %v1222, 0.7853982
    %vm1224 = vcmp.lt.s32.totalorder %v273, 0
    %v1225 = vand.u32 %v273, 2139095040
    %v1226 = vshrl.u32 %v1225, 23
    %v1227 = vsub.s32 %v1226, 127
    %v1228 = vand.u32 2147483647, %v273
    %v1229 = vand.u32 %v1228, 8388607
    %v1230 = vor.u32 %v1229, 8388608
    %v1231 = vsub.s32 0, %v1230
    %v1232 = vadd.s32 %v1227, 1
    %vm1233 = vcmp.gt.s32.totalorder %v1232, 0
    %v1234 = vsel %vm1233, %v1232, 0
    %v1235 = vshrl.u32 %v1234, 5
    %v1236 = vand.u32 %v1234, 31
    %v1237 = vsub.s32 32, %v1236
    %v1238 = vshrl.u32 683565275, %v1237
    %v1239 = vshll.u32 683565275, %v1236
    %v1240 = vshrl.u32 2475754826, %v1237
    %v1241 = vor.u32 %v1239, %v1240
    %v1242 = vshll.u32 2475754826, %v1236
    %v1243 = vshrl.u32 2131351028, %v1237
    %v1244 = vor.u32 %v1242, %v1243
    %v1245 = vshll.u32 2131351028, %v1236
    %v1246 = vshrl.u32 2102212464, %v1237
    %v1247 = vor.u32 %v1245, %v1246
    %v1248 = vshll.u32 2102212464, %v1236
    %v1249 = vshrl.u32 920167782, %v1237
    %v1250 = vor.u32 %v1248, %v1249
    %v1251 = vshll.u32 920167782, %v1236
    %v1252 = vshrl.u32 1326507024, %v1237
    %v1253 = vor.u32 %v1251, %v1252
    %vm1254 = vcmp.lt.s32.totalorder %v1235, 1
    %vm1255 = vcmp.lt.s32.totalorder %v1235, 2
    %vm1256 = vcmp.lt.s32.totalorder %v1235, 3
    %vm1257 = vcmp.lt.s32.totalorder %v1235, 4
    %v1258 = vsel %vm1254, %v1238, %v1241
    %v1259 = vsel %vm1257, %v1247, 2102212464
    %v1260 = vsel %vm1256, %v1244, %v1259
    %v1261 = vsel %vm1255, %v1258, %v1260
    %v1262 = vsel %vm1254, %v1241, %v1244
    %v1263 = vsel %vm1257, %v1250, 920167782
    %v1264 = vsel %vm1256, %v1247, %v1263
    %v1265 = vsel %vm1255, %v1262, %v1264
    %v1266 = vsel %vm1254, %v1244, %v1247
    %v1267 = vsel %vm1257, %v1253, 1326507024
    %v1268 = vsel %vm1256, %v1250, %v1267
    %v1269 = vsel %vm1255, %v1266, %v1268
    %v1270 = vshll.u32 %v1230, 8
    %v1271 = vand.u32 %v1270, 65535
    %v1272 = vshrl.u32 %v1270, 16
    %v1273 = vand.u32 %v1269, 65535
    %v1274 = vshrl.u32 %v1269, 16
    %v1275 = vmul.u32 %v1271, %v1273
    %v1276 = vmul.u32 %v1271, %v1274
    %v1277 = vmul.u32 %v1272, %v1273
    %v1278 = vmul.u32 %v1272, %v1274
    %v1279 = vshll.u32 %v1276, 16
    %v1280 = vshrl.u32 %v1276, 16
    %v1281 = vshll.u32 %v1277, 16
    %v1282 = vshrl.u32 %v1277, 16
    %vm1283 = vc.u32 %v1275, %v1279
    %v1284 = vsel %vm1283, 1, 0
    %v1285 = vadd.s32 %v1275, %v1279
    %v1286 = vadd.s32 %v1278, %v1284
    %vm1287 = vc.u32 %v1285, %v1281
    %v1288 = vsel %vm1287, 1, 0
    %v1289 = vadd.s32 %v1285, %v1281
    %v1290 = vadd.s32 %v1286, %v1288
    %v1291 = vadd.s32 %v1290, %v1280
    %v1292 = vadd.s32 %v1291, %v1282
    %v1293 = vand.u32 %v1270, 65535
    %v1294 = vshrl.u32 %v1270, 16
    %v1295 = vand.u32 %v1265, 65535
    %v1296 = vshrl.u32 %v1265, 16
    %v1297 = vmul.u32 %v1293, %v1295
    %v1298 = vmul.u32 %v1293, %v1296
    %v1299 = vmul.u32 %v1294, %v1295
    %v1300 = vmul.u32 %v1294, %v1296
    %v1301 = vshll.u32 %v1298, 16
    %v1302 = vshrl.u32 %v1298, 16
    %v1303 = vshll.u32 %v1299, 16
    %v1304 = vshrl.u32 %v1299, 16
    %vm1305 = vc.u32 %v1297, %v1301
    %v1306 = vsel %vm1305, 1, 0
    %v1307 = vadd.s32 %v1297, %v1301
    %v1308 = vadd.s32 %v1300, %v1306
    %vm1309 = vc.u32 %v1307, %v1303
    %v1310 = vsel %vm1309, 1, 0
    %v1311 = vadd.s32 %v1307, %v1303
    %v1312 = vadd.s32 %v1308, %v1310
    %v1313 = vadd.s32 %v1312, %v1302
    %v1314 = vadd.s32 %v1313, %v1304
    %v1315 = vmul.u32 %v1270, %v1261
    %v1316 = vadd.s32 %v1292, %v1311
    %vm1317 = vc.u32 %v1292, %v1311
    %v1318 = vadd.s32 %v1314, 1
    %v1319 = vsel %vm1317, %v1318, %v1314
    %v1320 = vadd.s32 %v1315, %v1319
    %v1321 = vadd.s32 %v1320, 536870912
    %v1322 = vshrl.u32 %v1321, 30
    %v1323 = vshll.u32 %v1322, 30
    %v1324 = vsub.s32 %v1320, %v1323
    %vm1325 = vcmp.lt.s32.totalorder %v1324, 0
    %v1326 = vsub.s32 0, %v1324
    %v1327 = vsel %vm1325, %v1326, %v1324
    %v1328 = vclz %v1327
    %v1329 = vsub.s32 %v1328, 2
    %vm1330 = vcmp.gt.s32.totalorder 0, %v1329
    %v1331 = vsel %vm1330, 0, %v1329
    %v1332 = vsub.s32 32, %v1331
    %v1333 = vshll.u32 %v1324, %v1331
    %v1334 = vshrl.u32 %v1316, %v1332
    %v1335 = vor.u32 %v1333, %v1334
    %v1336 = vsub.s32 4294967266, %v1331
    %v1337 = vadd.s32 %v1336, 127
    %v1338 = vshll.u32 %v1337, 23
    %v1339 = vor.u32 4788187, %v1338
    %v1340 = vand.u32 2147483647, %v1339
    %v1342 = vcvt.s32.f32 %v1335
    %v1343 = vmul.f32 %v1342, %v1340
    %v1344 = vxor.u32 %v1343, 2147483648
    %v1345 = vsel %vm1224, %v1344, %v1343
    %v1346 = vsub.s32 4, %v1322
    %v1347 = vsel %vm1224, %v1346, %v1322
    %v1348 = vsel %vm1223, %v273, %v1345
    %v1349 = vsel %vm1223, 0, %v1347
    %v1350 = vmul.f32 %v1348, %v1348
    %v1351 = vmul.f32 %v1350, -0.001358992
    %v1352 = vadd.f32 %v1351, 0.041655596
    %v1353 = vmul.f32 %v1350, %v1352
    %v1354 = vadd.f32 %v1353, -0.4999988
    %v1355 = vmul.f32 %v1350, %v1354
    %v1356 = vadd.f32 1.0, %v1355
    %v1357 = vmul.f32 %v1348, %v1348
    %v1358 = vmul.f32 %v1357, -0.00019511016
    %v1359 = vadd.f32 %v1358, 0.008332121
    %v1360 = vmul.f32 %v1357, %v1359
    %v1361 = vadd.f32 %v1360, -0.16666654
    %v1362 = vmul.f32 %v1357, %v1361
    %v1363 = vadd.f32 %v1362, 1.0
    %v1364 = vmul.f32 %v1363, %v1348
    %vm1365 = vweird.f32 %v273
    %v1366 = vadd.s32 %v1349, 3
    %v1367 = vand.u32 %v1366, 3
    %vm1368 = vcmp.lt.s32.totalorder %v1367, 2
    %vm1369 = vcmp.eq.s32.totalorder %v1367, 0
    %v1370 = vxor.u32 %v1364, 2147483648
    %v1371 = vsel %vm1369, %v1356, %v1370
    %vm1372 = vcmp.eq.s32.totalorder %v1367, 2
    %v1373 = vxor.u32 %v1356, 2147483648
    %v1374 = vsel %vm1372, %v1373, %v1364
    %v1375 = vsel %vm1368, %v1371, %v1374
    %v1376 = vsel %vm1365, nan, %v1375
    %v1377 = vand.u32 2147483647, %v274
    %vm1378 = vcmp.le.f32.partialorder %v1377, 0.7853982
    %vm1379 = vcmp.lt.s32.totalorder %v274, 0
    %v1380 = vand.u32 %v274, 2139095040
    %v1381 = vshrl.u32 %v1380, 23
    %v1382 = vsub.s32 %v1381, 127
    %v1383 = vand.u32 2147483647, %v274
    %v1384 = vand.u32 %v1383, 8388607
    %v1385 = vor.u32 %v1384, 8388608
    %v1386 = vsub.s32 0, %v1385
    %v1387 = vadd.s32 %v1382, 1
    %vm1388 = vcmp.gt.s32.totalorder %v1387, 0
    %v1389 = vsel %vm1388, %v1387, 0
    %v1390 = vshrl.u32 %v1389, 5
    %v1391 = vand.u32 %v1389, 31
    %v1392 = vsub.s32 32, %v1391
    %v1393 = vshrl.u32 683565275, %v1392
    %v1394 = vshll.u32 683565275, %v1391
    %v1395 = vshrl.u32 2475754826, %v1392
    %v1396 = vor.u32 %v1394, %v1395
    %v1397 = vshll.u32 2475754826, %v1391
    %v1398 = vshrl.u32 2131351028, %v1392
    %v1399 = vor.u32 %v1397, %v1398
    %v1400 = vshll.u32 2131351028, %v1391
    %v1401 = vshrl.u32 2102212464, %v1392
    %v1402 = vor.u32 %v1400, %v1401
    %v1403 = vshll.u32 2102212464, %v1391
    %v1404 = vshrl.u32 920167782, %v1392
    %v1405 = vor.u32 %v1403, %v1404
    %v1406 = vshll.u32 920167782, %v1391
    %v1407 = vshrl.u32 1326507024, %v1392
    %v1408 = vor.u32 %v1406, %v1407
    %vm1409 = vcmp.lt.s32.totalorder %v1390, 1
    %vm1410 = vcmp.lt.s32.totalorder %v1390, 2
    %vm1411 = vcmp.lt.s32.totalorder %v1390, 3
    %vm1412 = vcmp.lt.s32.totalorder %v1390, 4
    %v1413 = vsel %vm1409, %v1393, %v1396
    %v1414 = vsel %vm1412, %v1402, 2102212464
    %v1415 = vsel %vm1411, %v1399, %v1414
    %v1416 = vsel %vm1410, %v1413, %v1415
    %v1417 = vsel %vm1409, %v1396, %v1399
    %v1418 = vsel %vm1412, %v1405, 920167782
    %v1419 = vsel %vm1411, %v1402, %v1418
    %v1420 = vsel %vm1410, %v1417, %v1419
    %v1421 = vsel %vm1409, %v1399, %v1402
    %v1422 = vsel %vm1412, %v1408, 1326507024
    %v1423 = vsel %vm1411, %v1405, %v1422
    %v1424 = vsel %vm1410, %v1421, %v1423
    %v1425 = vshll.u32 %v1385, 8
    %v1426 = vand.u32 %v1425, 65535
    %v1427 = vshrl.u32 %v1425, 16
    %v1428 = vand.u32 %v1424, 65535
    %v1429 = vshrl.u32 %v1424, 16
    %v1430 = vmul.u32 %v1426, %v1428
    %v1431 = vmul.u32 %v1426, %v1429
    %v1432 = vmul.u32 %v1427, %v1428
    %v1433 = vmul.u32 %v1427, %v1429
    %v1434 = vshll.u32 %v1431, 16
    %v1435 = vshrl.u32 %v1431, 16
    %v1436 = vshll.u32 %v1432, 16
    %v1437 = vshrl.u32 %v1432, 16
    %vm1438 = vc.u32 %v1430, %v1434
    %v1439 = vsel %vm1438, 1, 0
    %v1440 = vadd.s32 %v1430, %v1434
    %v1441 = vadd.s32 %v1433, %v1439
    %vm1442 = vc.u32 %v1440, %v1436
    %v1443 = vsel %vm1442, 1, 0
    %v1444 = vadd.s32 %v1440, %v1436
    %v1445 = vadd.s32 %v1441, %v1443
    %v1446 = vadd.s32 %v1445, %v1435
    %v1447 = vadd.s32 %v1446, %v1437
    %v1448 = vand.u32 %v1425, 65535
    %v1449 = vshrl.u32 %v1425, 16
    %v1450 = vand.u32 %v1420, 65535
    %v1451 = vshrl.u32 %v1420, 16
    %v1452 = vmul.u32 %v1448, %v1450
    %v1453 = vmul.u32 %v1448, %v1451
    %v1454 = vmul.u32 %v1449, %v1450
    %v1455 = vmul.u32 %v1449, %v1451
    %v1456 = vshll.u32 %v1453, 16
    %v1457 = vshrl.u32 %v1453, 16
    %v1458 = vshll.u32 %v1454, 16
    %v1459 = vshrl.u32 %v1454, 16
    %vm1460 = vc.u32 %v1452, %v1456
    %v1461 = vsel %vm1460, 1, 0
    %v1462 = vadd.s32 %v1452, %v1456
    %v1463 = vadd.s32 %v1455, %v1461
    %vm1464 = vc.u32 %v1462, %v1458
    %v1465 = vsel %vm1464, 1, 0
    %v1466 = vadd.s32 %v1462, %v1458
    %v1467 = vadd.s32 %v1463, %v1465
    %v1468 = vadd.s32 %v1467, %v1457
    %v1469 = vadd.s32 %v1468, %v1459
    %v1470 = vmul.u32 %v1425, %v1416
    %v1471 = vadd.s32 %v1447, %v1466
    %vm1472 = vc.u32 %v1447, %v1466
    %v1473 = vadd.s32 %v1469, 1
    %v1474 = vsel %vm1472, %v1473, %v1469
    %v1475 = vadd.s32 %v1470, %v1474
    %v1476 = vadd.s32 %v1475, 536870912
    %v1477 = vshrl.u32 %v1476, 30
    %v1478 = vshll.u32 %v1477, 30
    %v1479 = vsub.s32 %v1475, %v1478
    %vm1480 = vcmp.lt.s32.totalorder %v1479, 0
    %v1481 = vsub.s32 0, %v1479
    %v1482 = vsel %vm1480, %v1481, %v1479
    %v1483 = vclz %v1482
    %v1484 = vsub.s32 %v1483, 2
    %vm1485 = vcmp.gt.s32.totalorder 0, %v1484
    %v1486 = vsel %vm1485, 0, %v1484
    %v1487 = vsub.s32 32, %v1486
    %v1488 = vshll.u32 %v1479, %v1486
    %v1489 = vshrl.u32 %v1471, %v1487
    %v1490 = vor.u32 %v1488, %v1489
    %v1491 = vsub.s32 4294967266, %v1486
    %v1492 = vadd.s32 %v1491, 127
    %v1493 = vshll.u32 %v1492, 23
    %v1494 = vor.u32 4788187, %v1493
    %v1495 = vand.u32 2147483647, %v1494
    %v1497 = vcvt.s32.f32 %v1490
    %v1498 = vmul.f32 %v1497, %v1495
    %v1499 = vxor.u32 %v1498, 2147483648
    %v1500 = vsel %vm1379, %v1499, %v1498
    %v1501 = vsub.s32 4, %v1477
    %v1502 = vsel %vm1379, %v1501, %v1477
    %v1503 = vsel %vm1378, %v274, %v1500
    %v1504 = vsel %vm1378, 0, %v1502
    %v1505 = vmul.f32 %v1503, %v1503
    %v1506 = vmul.f32 %v1505, -0.001358992
    %v1507 = vadd.f32 %v1506, 0.041655596
    %v1508 = vmul.f32 %v1505, %v1507
    %v1509 = vadd.f32 %v1508, -0.4999988
    %v1510 = vmul.f32 %v1505, %v1509
    %v1511 = vadd.f32 1.0, %v1510
    %v1512 = vmul.f32 %v1503, %v1503
    %v1513 = vmul.f32 %v1512, -0.00019511016
    %v1514 = vadd.f32 %v1513, 0.008332121
    %v1515 = vmul.f32 %v1512, %v1514
    %v1516 = vadd.f32 %v1515, -0.16666654
    %v1517 = vmul.f32 %v1512, %v1516
    %v1518 = vadd.f32 %v1517, 1.0
    %v1519 = vmul.f32 %v1518, %v1503
    %vm1520 = vweird.f32 %v274
    %v1521 = vadd.s32 %v1504, 3
    %v1522 = vand.u32 %v1521, 3
    %vm1523 = vcmp.lt.s32.totalorder %v1522, 2
    %vm1524 = vcmp.eq.s32.totalorder %v1522, 0
    %v1525 = vxor.u32 %v1519, 2147483648
    %v1526 = vsel %vm1524, %v1511, %v1525
    %vm1527 = vcmp.eq.s32.totalorder %v1522, 2
    %v1528 = vxor.u32 %v1511, 2147483648
    %v1529 = vsel %vm1527, %v1528, %v1519
    %v1530 = vsel %vm1523, %v1526, %v1529
    %v1531 = vsel %vm1520, nan, %v1530
    %v1532 = vand.u32 2147483647, %v275
    %vm1533 = vcmp.le.f32.partialorder %v1532, 0.7853982
    %vm1534 = vcmp.lt.s32.totalorder %v275, 0
    %v1535 = vand.u32 %v275, 2139095040
    %v1536 = vshrl.u32 %v1535, 23
    %v1537 = vsub.s32 %v1536, 127
    %v1538 = vand.u32 2147483647, %v275
    %v1539 = vand.u32 %v1538, 8388607
    %v1540 = vor.u32 %v1539, 8388608
    %v1541 = vsub.s32 0, %v1540
    %v1542 = vadd.s32 %v1537, 1
    %vm1543 = vcmp.gt.s32.totalorder %v1542, 0
    %v1544 = vsel %vm1543, %v1542, 0
    %v1545 = vshrl.u32 %v1544, 5
    %v1546 = vand.u32 %v1544, 31
    %v1547 = vsub.s32 32, %v1546
    %v1548 = vshrl.u32 683565275, %v1547
    %v1549 = vshll.u32 683565275, %v1546
    %v1550 = vshrl.u32 2475754826, %v1547
    %v1551 = vor.u32 %v1549, %v1550
    %v1552 = vshll.u32 2475754826, %v1546
    %v1553 = vshrl.u32 2131351028, %v1547
    %v1554 = vor.u32 %v1552, %v1553
    %v1555 = vshll.u32 2131351028, %v1546
    %v1556 = vshrl.u32 2102212464, %v1547
    %v1557 = vor.u32 %v1555, %v1556
    %v1558 = vshll.u32 2102212464, %v1546
    %v1559 = vshrl.u32 920167782, %v1547
    %v1560 = vor.u32 %v1558, %v1559
    %v1561 = vshll.u32 920167782, %v1546
    %v1562 = vshrl.u32 1326507024, %v1547
    %v1563 = vor.u32 %v1561, %v1562
    %vm1564 = vcmp.lt.s32.totalorder %v1545, 1
    %vm1565 = vcmp.lt.s32.totalorder %v1545, 2
    %vm1566 = vcmp.lt.s32.totalorder %v1545, 3
    %vm1567 = vcmp.lt.s32.totalorder %v1545, 4
    %v1568 = vsel %vm1564, %v1548, %v1551
    %v1569 = vsel %vm1567, %v1557, 2102212464
    %v1570 = vsel %vm1566, %v1554, %v1569
    %v1571 = vsel %vm1565, %v1568, %v1570
    %v1572 = vsel %vm1564, %v1551, %v1554
    %v1573 = vsel %vm1567, %v1560, 920167782
    %v1574 = vsel %vm1566, %v1557, %v1573
    %v1575 = vsel %vm1565, %v1572, %v1574
    %v1576 = vsel %vm1564, %v1554, %v1557
    %v1577 = vsel %vm1567, %v1563, 1326507024
    %v1578 = vsel %vm1566, %v1560, %v1577
    %v1579 = vsel %vm1565, %v1576, %v1578
    %v1580 = vshll.u32 %v1540, 8
    %v1581 = vand.u32 %v1580, 65535
    %v1582 = vshrl.u32 %v1580, 16
    %v1583 = vand.u32 %v1579, 65535
    %v1584 = vshrl.u32 %v1579, 16
    %v1585 = vmul.u32 %v1581, %v1583
    %v1586 = vmul.u32 %v1581, %v1584
    %v1587 = vmul.u32 %v1582, %v1583
    %v1588 = vmul.u32 %v1582, %v1584
    %v1589 = vshll.u32 %v1586, 16
    %v1590 = vshrl.u32 %v1586, 16
    %v1591 = vshll.u32 %v1587, 16
    %v1592 = vshrl.u32 %v1587, 16
    %vm1593 = vc.u32 %v1585, %v1589
    %v1594 = vsel %vm1593, 1, 0
    %v1595 = vadd.s32 %v1585, %v1589
    %v1596 = vadd.s32 %v1588, %v1594
    %vm1597 = vc.u32 %v1595, %v1591
    %v1598 = vsel %vm1597, 1, 0
    %v1599 = vadd.s32 %v1595, %v1591
    %v1600 = vadd.s32 %v1596, %v1598
    %v1601 = vadd.s32 %v1600, %v1590
    %v1602 = vadd.s32 %v1601, %v1592
    %v1603 = vand.u32 %v1580, 65535
    %v1604 = vshrl.u32 %v1580, 16
    %v1605 = vand.u32 %v1575, 65535
    %v1606 = vshrl.u32 %v1575, 16
    %v1607 = vmul.u32 %v1603, %v1605
    %v1608 = vmul.u32 %v1603, %v1606
    %v1609 = vmul.u32 %v1604, %v1605
    %v1610 = vmul.u32 %v1604, %v1606
    %v1611 = vshll.u32 %v1608, 16
    %v1612 = vshrl.u32 %v1608, 16
    %v1613 = vshll.u32 %v1609, 16
    %v1614 = vshrl.u32 %v1609, 16
    %vm1615 = vc.u32 %v1607, %v1611
    %v1616 = vsel %vm1615, 1, 0
    %v1617 = vadd.s32 %v1607, %v1611
    %v1618 = vadd.s32 %v1610, %v1616
    %vm1619 = vc.u32 %v1617, %v1613
    %v1620 = vsel %vm1619, 1, 0
    %v1621 = vadd.s32 %v1617, %v1613
    %v1622 = vadd.s32 %v1618, %v1620
    %v1623 = vadd.s32 %v1622, %v1612
    %v1624 = vadd.s32 %v1623, %v1614
    %v1625 = vmul.u32 %v1580, %v1571
    %v1626 = vadd.s32 %v1602, %v1621
    %vm1627 = vc.u32 %v1602, %v1621
    %v1628 = vadd.s32 %v1624, 1
    %v1629 = vsel %vm1627, %v1628, %v1624
    %v1630 = vadd.s32 %v1625, %v1629
    %v1631 = vadd.s32 %v1630, 536870912
    %v1632 = vshrl.u32 %v1631, 30
    %v1633 = vshll.u32 %v1632, 30
    %v1634 = vsub.s32 %v1630, %v1633
    %vm1635 = vcmp.lt.s32.totalorder %v1634, 0
    %v1636 = vsub.s32 0, %v1634
    %v1637 = vsel %vm1635, %v1636, %v1634
    %v1638 = vclz %v1637
    %v1639 = vsub.s32 %v1638, 2
    %vm1640 = vcmp.gt.s32.totalorder 0, %v1639
    %v1641 = vsel %vm1640, 0, %v1639
    %v1642 = vsub.s32 32, %v1641
    %v1643 = vshll.u32 %v1634, %v1641
    %v1644 = vshrl.u32 %v1626, %v1642
    %v1645 = vor.u32 %v1643, %v1644
    %v1646 = vsub.s32 4294967266, %v1641
    %v1647 = vadd.s32 %v1646, 127
    %v1648 = vshll.u32 %v1647, 23
    %v1649 = vor.u32 4788187, %v1648
    %v1650 = vand.u32 2147483647, %v1649
    %v1652 = vcvt.s32.f32 %v1645
    %v1653 = vmul.f32 %v1652, %v1650
    %v1654 = vxor.u32 %v1653, 2147483648
    %v1655 = vsel %vm1534, %v1654, %v1653
    %v1656 = vsub.s32 4, %v1632
    %v1657 = vsel %vm1534, %v1656, %v1632
    %v1658 = vsel %vm1533, %v275, %v1655
    %v1659 = vsel %vm1533, 0, %v1657
    %v1660 = vmul.f32 %v1658, %v1658
    %v1661 = vmul.f32 %v1660, -0.001358992
    %v1662 = vadd.f32 %v1661, 0.041655596
    %v1663 = vmul.f32 %v1660, %v1662
    %v1664 = vadd.f32 %v1663, -0.4999988
    %v1665 = vmul.f32 %v1660, %v1664
    %v1666 = vadd.f32 1.0, %v1665
    %v1667 = vmul.f32 %v1658, %v1658
    %v1668 = vmul.f32 %v1667, -0.00019511016
    %v1669 = vadd.f32 %v1668, 0.008332121
    %v1670 = vmul.f32 %v1667, %v1669
    %v1671 = vadd.f32 %v1670, -0.16666654
    %v1672 = vmul.f32 %v1667, %v1671
    %v1673 = vadd.f32 %v1672, 1.0
    %v1674 = vmul.f32 %v1673, %v1658
    %vm1675 = vweird.f32 %v275
    %v1676 = vadd.s32 %v1659, 3
    %v1677 = vand.u32 %v1676, 3
    %vm1678 = vcmp.lt.s32.totalorder %v1677, 2
    %vm1679 = vcmp.eq.s32.totalorder %v1677, 0
    %v1680 = vxor.u32 %v1674, 2147483648
    %v1681 = vsel %vm1679, %v1666, %v1680
    %vm1682 = vcmp.eq.s32.totalorder %v1677, 2
    %v1683 = vxor.u32 %v1666, 2147483648
    %v1684 = vsel %vm1682, %v1683, %v1674
    %v1685 = vsel %vm1678, %v1681, %v1684
    %v1686 = vsel %vm1675, nan, %v1685
    %v1687 = vand.u32 2147483647, %v276
    %vm1688 = vcmp.le.f32.partialorder %v1687, 0.7853982
    %vm1689 = vcmp.lt.s32.totalorder %v276, 0
    %v1690 = vand.u32 %v276, 2139095040
    %v1691 = vshrl.u32 %v1690, 23
    %v1692 = vsub.s32 %v1691, 127
    %v1693 = vand.u32 2147483647, %v276
    %v1694 = vand.u32 %v1693, 8388607
    %v1695 = vor.u32 %v1694, 8388608
    %v1696 = vsub.s32 0, %v1695
    %v1697 = vadd.s32 %v1692, 1
    %vm1698 = vcmp.gt.s32.totalorder %v1697, 0
    %v1699 = vsel %vm1698, %v1697, 0
    %v1700 = vshrl.u32 %v1699, 5
    %v1701 = vand.u32 %v1699, 31
    %v1702 = vsub.s32 32, %v1701
    %v1703 = vshrl.u32 683565275, %v1702
    %v1704 = vshll.u32 683565275, %v1701
    %v1705 = vshrl.u32 2475754826, %v1702
    %v1706 = vor.u32 %v1704, %v1705
    %v1707 = vshll.u32 2475754826, %v1701
    %v1708 = vshrl.u32 2131351028, %v1702
    %v1709 = vor.u32 %v1707, %v1708
    %v1710 = vshll.u32 2131351028, %v1701
    %v1711 = vshrl.u32 2102212464, %v1702
    %v1712 = vor.u32 %v1710, %v1711
    %v1713 = vshll.u32 2102212464, %v1701
    %v1714 = vshrl.u32 920167782, %v1702
    %v1715 = vor.u32 %v1713, %v1714
    %v1716 = vshll.u32 920167782, %v1701
    %v1717 = vshrl.u32 1326507024, %v1702
    %v1718 = vor.u32 %v1716, %v1717
    %vm1719 = vcmp.lt.s32.totalorder %v1700, 1
    %vm1720 = vcmp.lt.s32.totalorder %v1700, 2
    %vm1721 = vcmp.lt.s32.totalorder %v1700, 3
    %vm1722 = vcmp.lt.s32.totalorder %v1700, 4
    %v1723 = vsel %vm1719, %v1703, %v1706
    %v1724 = vsel %vm1722, %v1712, 2102212464
    %v1725 = vsel %vm1721, %v1709, %v1724
    %v1726 = vsel %vm1720, %v1723, %v1725
    %v1727 = vsel %vm1719, %v1706, %v1709
    %v1728 = vsel %vm1722, %v1715, 920167782
    %v1729 = vsel %vm1721, %v1712, %v1728
    %v1730 = vsel %vm1720, %v1727, %v1729
    %v1731 = vsel %vm1719, %v1709, %v1712
    %v1732 = vsel %vm1722, %v1718, 1326507024
    %v1733 = vsel %vm1721, %v1715, %v1732
    %v1734 = vsel %vm1720, %v1731, %v1733
    %v1735 = vshll.u32 %v1695, 8
    %v1736 = vand.u32 %v1735, 65535
    %v1737 = vshrl.u32 %v1735, 16
    %v1738 = vand.u32 %v1734, 65535
    %v1739 = vshrl.u32 %v1734, 16
    %v1740 = vmul.u32 %v1736, %v1738
    %v1741 = vmul.u32 %v1736, %v1739
    %v1742 = vmul.u32 %v1737, %v1738
    %v1743 = vmul.u32 %v1737, %v1739
    %v1744 = vshll.u32 %v1741, 16
    %v1745 = vshrl.u32 %v1741, 16
    %v1746 = vshll.u32 %v1742, 16
    %v1747 = vshrl.u32 %v1742, 16
    %vm1748 = vc.u32 %v1740, %v1744
    %v1749 = vsel %vm1748, 1, 0
    %v1750 = vadd.s32 %v1740, %v1744
    %v1751 = vadd.s32 %v1743, %v1749
    %vm1752 = vc.u32 %v1750, %v1746
    %v1753 = vsel %vm1752, 1, 0
    %v1754 = vadd.s32 %v1750, %v1746
    %v1755 = vadd.s32 %v1751, %v1753
    %v1756 = vadd.s32 %v1755, %v1745
    %v1757 = vadd.s32 %v1756, %v1747
    %v1758 = vand.u32 %v1735, 65535
    %v1759 = vshrl.u32 %v1735, 16
    %v1760 = vand.u32 %v1730, 65535
    %v1761 = vshrl.u32 %v1730, 16
    %v1762 = vmul.u32 %v1758, %v1760
    %v1763 = vmul.u32 %v1758, %v1761
    %v1764 = vmul.u32 %v1759, %v1760
    %v1765 = vmul.u32 %v1759, %v1761
    %v1766 = vshll.u32 %v1763, 16
    %v1767 = vshrl.u32 %v1763, 16
    %v1768 = vshll.u32 %v1764, 16
    %v1769 = vshrl.u32 %v1764, 16
    %vm1770 = vc.u32 %v1762, %v1766
    %v1771 = vsel %vm1770, 1, 0
    %v1772 = vadd.s32 %v1762, %v1766
    %v1773 = vadd.s32 %v1765, %v1771
    %vm1774 = vc.u32 %v1772, %v1768
    %v1775 = vsel %vm1774, 1, 0
    %v1776 = vadd.s32 %v1772, %v1768
    %v1777 = vadd.s32 %v1773, %v1775
    %v1778 = vadd.s32 %v1777, %v1767
    %v1779 = vadd.s32 %v1778, %v1769
    %v1780 = vmul.u32 %v1735, %v1726
    %v1781 = vadd.s32 %v1757, %v1776
    %vm1782 = vc.u32 %v1757, %v1776
    %v1783 = vadd.s32 %v1779, 1
    %v1784 = vsel %vm1782, %v1783, %v1779
    %v1785 = vadd.s32 %v1780, %v1784
    %v1786 = vadd.s32 %v1785, 536870912
    %v1787 = vshrl.u32 %v1786, 30
    %v1788 = vshll.u32 %v1787, 30
    %v1789 = vsub.s32 %v1785, %v1788
    %vm1790 = vcmp.lt.s32.totalorder %v1789, 0
    %v1791 = vsub.s32 0, %v1789
    %v1792 = vsel %vm1790, %v1791, %v1789
    %v1793 = vclz %v1792
    %v1794 = vsub.s32 %v1793, 2
    %vm1795 = vcmp.gt.s32.totalorder 0, %v1794
    %v1796 = vsel %vm1795, 0, %v1794
    %v1797 = vsub.s32 32, %v1796
    %v1798 = vshll.u32 %v1789, %v1796
    %v1799 = vshrl.u32 %v1781, %v1797
    %v1800 = vor.u32 %v1798, %v1799
    %v1801 = vsub.s32 4294967266, %v1796
    %v1802 = vadd.s32 %v1801, 127
    %v1803 = vshll.u32 %v1802, 23
    %v1804 = vor.u32 4788187, %v1803
    %v1805 = vand.u32 2147483647, %v1804
    %v1807 = vcvt.s32.f32 %v1800
    %v1808 = vmul.f32 %v1807, %v1805
    %v1809 = vxor.u32 %v1808, 2147483648
    %v1810 = vsel %vm1689, %v1809, %v1808
    %v1811 = vsub.s32 4, %v1787
    %v1812 = vsel %vm1689, %v1811, %v1787
    %v1813 = vsel %vm1688, %v276, %v1810
    %v1814 = vsel %vm1688, 0, %v1812
    %v1815 = vmul.f32 %v1813, %v1813
    %v1816 = vmul.f32 %v1815, -0.001358992
    %v1817 = vadd.f32 %v1816, 0.041655596
    %v1818 = vmul.f32 %v1815, %v1817
    %v1819 = vadd.f32 %v1818, -0.4999988
    %v1820 = vmul.f32 %v1815, %v1819
    %v1821 = vadd.f32 1.0, %v1820
    %v1822 = vmul.f32 %v1813, %v1813
    %v1823 = vmul.f32 %v1822, -0.00019511016
    %v1824 = vadd.f32 %v1823, 0.008332121
    %v1825 = vmul.f32 %v1822, %v1824
    %v1826 = vadd.f32 %v1825, -0.16666654
    %v1827 = vmul.f32 %v1822, %v1826
    %v1828 = vadd.f32 %v1827, 1.0
    %v1829 = vmul.f32 %v1828, %v1813
    %vm1830 = vweird.f32 %v276
    %v1831 = vadd.s32 %v1814, 3
    %v1832 = vand.u32 %v1831, 3
    %vm1833 = vcmp.lt.s32.totalorder %v1832, 2
    %vm1834 = vcmp.eq.s32.totalorder %v1832, 0
    %v1835 = vxor.u32 %v1829, 2147483648
    %v1836 = vsel %vm1834, %v1821, %v1835
    %vm1837 = vcmp.eq.s32.totalorder %v1832, 2
    %v1838 = vxor.u32 %v1821, 2147483648
    %v1839 = vsel %vm1837, %v1838, %v1829
    %v1840 = vsel %vm1833, %v1836, %v1839
    %v1841 = vsel %vm1830, nan, %v1840
    %v1842 = vand.u32 2147483647, %v277
    %vm1843 = vcmp.le.f32.partialorder %v1842, 0.7853982
    %vm1844 = vcmp.lt.s32.totalorder %v277, 0
    %v1845 = vand.u32 %v277, 2139095040
    %v1846 = vshrl.u32 %v1845, 23
    %v1847 = vsub.s32 %v1846, 127
    %v1848 = vand.u32 2147483647, %v277
    %v1849 = vand.u32 %v1848, 8388607
    %v1850 = vor.u32 %v1849, 8388608
    %v1851 = vsub.s32 0, %v1850
    %v1852 = vadd.s32 %v1847, 1
    %vm1853 = vcmp.gt.s32.totalorder %v1852, 0
    %v1854 = vsel %vm1853, %v1852, 0
    %v1855 = vshrl.u32 %v1854, 5
    %v1856 = vand.u32 %v1854, 31
    %v1857 = vsub.s32 32, %v1856
    %v1858 = vshrl.u32 683565275, %v1857
    %v1859 = vshll.u32 683565275, %v1856
    %v1860 = vshrl.u32 2475754826, %v1857
    %v1861 = vor.u32 %v1859, %v1860
    %v1862 = vshll.u32 2475754826, %v1856
    %v1863 = vshrl.u32 2131351028, %v1857
    %v1864 = vor.u32 %v1862, %v1863
    %v1865 = vshll.u32 2131351028, %v1856
    %v1866 = vshrl.u32 2102212464, %v1857
    %v1867 = vor.u32 %v1865, %v1866
    %v1868 = vshll.u32 2102212464, %v1856
    %v1869 = vshrl.u32 920167782, %v1857
    %v1870 = vor.u32 %v1868, %v1869
    %v1871 = vshll.u32 920167782, %v1856
    %v1872 = vshrl.u32 1326507024, %v1857
    %v1873 = vor.u32 %v1871, %v1872
    %vm1874 = vcmp.lt.s32.totalorder %v1855, 1
    %vm1875 = vcmp.lt.s32.totalorder %v1855, 2
    %vm1876 = vcmp.lt.s32.totalorder %v1855, 3
    %vm1877 = vcmp.lt.s32.totalorder %v1855, 4
    %v1878 = vsel %vm1874, %v1858, %v1861
    %v1879 = vsel %vm1877, %v1867, 2102212464
    %v1880 = vsel %vm1876, %v1864, %v1879
    %v1881 = vsel %vm1875, %v1878, %v1880
    %v1882 = vsel %vm1874, %v1861, %v1864
    %v1883 = vsel %vm1877, %v1870, 920167782
    %v1884 = vsel %vm1876, %v1867, %v1883
    %v1885 = vsel %vm1875, %v1882, %v1884
    %v1886 = vsel %vm1874, %v1864, %v1867
    %v1887 = vsel %vm1877, %v1873, 1326507024
    %v1888 = vsel %vm1876, %v1870, %v1887
    %v1889 = vsel %vm1875, %v1886, %v1888
    %v1890 = vshll.u32 %v1850, 8
    %v1891 = vand.u32 %v1890, 65535
    %v1892 = vshrl.u32 %v1890, 16
    %v1893 = vand.u32 %v1889, 65535
    %v1894 = vshrl.u32 %v1889, 16
    %v1895 = vmul.u32 %v1891, %v1893
    %v1896 = vmul.u32 %v1891, %v1894
    %v1897 = vmul.u32 %v1892, %v1893
    %v1898 = vmul.u32 %v1892, %v1894
    %v1899 = vshll.u32 %v1896, 16
    %v1900 = vshrl.u32 %v1896, 16
    %v1901 = vshll.u32 %v1897, 16
    %v1902 = vshrl.u32 %v1897, 16
    %vm1903 = vc.u32 %v1895, %v1899
    %v1904 = vsel %vm1903, 1, 0
    %v1905 = vadd.s32 %v1895, %v1899
    %v1906 = vadd.s32 %v1898, %v1904
    %vm1907 = vc.u32 %v1905, %v1901
    %v1908 = vsel %vm1907, 1, 0
    %v1909 = vadd.s32 %v1905, %v1901
    %v1910 = vadd.s32 %v1906, %v1908
    %v1911 = vadd.s32 %v1910, %v1900
    %v1912 = vadd.s32 %v1911, %v1902
    %v1913 = vand.u32 %v1890, 65535
    %v1914 = vshrl.u32 %v1890, 16
    %v1915 = vand.u32 %v1885, 65535
    %v1916 = vshrl.u32 %v1885, 16
    %v1917 = vmul.u32 %v1913, %v1915
    %v1918 = vmul.u32 %v1913, %v1916
    %v1919 = vmul.u32 %v1914, %v1915
    %v1920 = vmul.u32 %v1914, %v1916
    %v1921 = vshll.u32 %v1918, 16
    %v1922 = vshrl.u32 %v1918, 16
    %v1923 = vshll.u32 %v1919, 16
    %v1924 = vshrl.u32 %v1919, 16
    %vm1925 = vc.u32 %v1917, %v1921
    %v1926 = vsel %vm1925, 1, 0
    %v1927 = vadd.s32 %v1917, %v1921
    %v1928 = vadd.s32 %v1920, %v1926
    %vm1929 = vc.u32 %v1927, %v1923
    %v1930 = vsel %vm1929, 1, 0
    %v1931 = vadd.s32 %v1927, %v1923
    %v1932 = vadd.s32 %v1928, %v1930
    %v1933 = vadd.s32 %v1932, %v1922
    %v1934 = vadd.s32 %v1933, %v1924
    %v1935 = vmul.u32 %v1890, %v1881
    %v1936 = vadd.s32 %v1912, %v1931
    %vm1937 = vc.u32 %v1912, %v1931
    %v1938 = vadd.s32 %v1934, 1
    %v1939 = vsel %vm1937, %v1938, %v1934
    %v1940 = vadd.s32 %v1935, %v1939
    %v1941 = vadd.s32 %v1940, 536870912
    %v1942 = vshrl.u32 %v1941, 30
    %v1943 = vshll.u32 %v1942, 30
    %v1944 = vsub.s32 %v1940, %v1943
    %vm1945 = vcmp.lt.s32.totalorder %v1944, 0
    %v1946 = vsub.s32 0, %v1944
    %v1947 = vsel %vm1945, %v1946, %v1944
    %v1948 = vclz %v1947
    %v1949 = vsub.s32 %v1948, 2
    %vm1950 = vcmp.gt.s32.totalorder 0, %v1949
    %v1951 = vsel %vm1950, 0, %v1949
    %v1952 = vsub.s32 32, %v1951
    %v1953 = vshll.u32 %v1944, %v1951
    %v1954 = vshrl.u32 %v1936, %v1952
    %v1955 = vor.u32 %v1953, %v1954
    %v1956 = vsub.s32 4294967266, %v1951
    %v1957 = vadd.s32 %v1956, 127
    %v1958 = vshll.u32 %v1957, 23
    %v1959 = vor.u32 4788187, %v1958
    %v1960 = vand.u32 2147483647, %v1959
    %v1962 = vcvt.s32.f32 %v1955
    %v1963 = vmul.f32 %v1962, %v1960
    %v1964 = vxor.u32 %v1963, 2147483648
    %v1965 = vsel %vm1844, %v1964, %v1963
    %v1966 = vsub.s32 4, %v1942
    %v1967 = vsel %vm1844, %v1966, %v1942
    %v1968 = vsel %vm1843, %v277, %v1965
    %v1969 = vsel %vm1843, 0, %v1967
    %v1970 = vmul.f32 %v1968, %v1968
    %v1971 = vmul.f32 %v1970, -0.001358992
    %v1972 = vadd.f32 %v1971, 0.041655596
    %v1973 = vmul.f32 %v1970, %v1972
    %v1974 = vadd.f32 %v1973, -0.4999988
    %v1975 = vmul.f32 %v1970, %v1974
    %v1976 = vadd.f32 1.0, %v1975
    %v1977 = vmul.f32 %v1968, %v1968
    %v1978 = vmul.f32 %v1977, -0.00019511016
    %v1979 = vadd.f32 %v1978, 0.008332121
    %v1980 = vmul.f32 %v1977, %v1979
    %v1981 = vadd.f32 %v1980, -0.16666654
    %v1982 = vmul.f32 %v1977, %v1981
    %v1983 = vadd.f32 %v1982, 1.0
    %v1984 = vmul.f32 %v1983, %v1968
    %vm1985 = vweird.f32 %v277
    %v1986 = vadd.s32 %v1969, 3
    %v1987 = vand.u32 %v1986, 3
    %vm1988 = vcmp.lt.s32.totalorder %v1987, 2
    %vm1989 = vcmp.eq.s32.totalorder %v1987, 0
    %v1990 = vxor.u32 %v1984, 2147483648
    %v1991 = vsel %vm1989, %v1976, %v1990
    %vm1992 = vcmp.eq.s32.totalorder %v1987, 2
    %v1993 = vxor.u32 %v1976, 2147483648
    %v1994 = vsel %vm1992, %v1993, %v1984
    %v1995 = vsel %vm1988, %v1991, %v1994
    %v1996 = vsel %vm1985, nan, %v1995
    %v1997 = vand.u32 2147483647, %v278
    %vm1998 = vcmp.le.f32.partialorder %v1997, 0.7853982
    %vm1999 = vcmp.lt.s32.totalorder %v278, 0
    %v2000 = vand.u32 %v278, 2139095040
    %v2001 = vshrl.u32 %v2000, 23
    %v2002 = vsub.s32 %v2001, 127
    %v2003 = vand.u32 2147483647, %v278
    %v2004 = vand.u32 %v2003, 8388607
    %v2005 = vor.u32 %v2004, 8388608
    %v2006 = vsub.s32 0, %v2005
    %v2007 = vadd.s32 %v2002, 1
    %vm2008 = vcmp.gt.s32.totalorder %v2007, 0
    %v2009 = vsel %vm2008, %v2007, 0
    %v2010 = vshrl.u32 %v2009, 5
    %v2011 = vand.u32 %v2009, 31
    %v2012 = vsub.s32 32, %v2011
    %v2013 = vshrl.u32 683565275, %v2012
    %v2014 = vshll.u32 683565275, %v2011
    %v2015 = vshrl.u32 2475754826, %v2012
    %v2016 = vor.u32 %v2014, %v2015
    %v2017 = vshll.u32 2475754826, %v2011
    %v2018 = vshrl.u32 2131351028, %v2012
    %v2019 = vor.u32 %v2017, %v2018
    %v2020 = vshll.u32 2131351028, %v2011
    %v2021 = vshrl.u32 2102212464, %v2012
    %v2022 = vor.u32 %v2020, %v2021
    %v2023 = vshll.u32 2102212464, %v2011
    %v2024 = vshrl.u32 920167782, %v2012
    %v2025 = vor.u32 %v2023, %v2024
    %v2026 = vshll.u32 920167782, %v2011
    %v2027 = vshrl.u32 1326507024, %v2012
    %v2028 = vor.u32 %v2026, %v2027
    %vm2029 = vcmp.lt.s32.totalorder %v2010, 1
    %vm2030 = vcmp.lt.s32.totalorder %v2010, 2
    %vm2031 = vcmp.lt.s32.totalorder %v2010, 3
    %vm2032 = vcmp.lt.s32.totalorder %v2010, 4
    %v2033 = vsel %vm2029, %v2013, %v2016
    %v2034 = vsel %vm2032, %v2022, 2102212464
    %v2035 = vsel %vm2031, %v2019, %v2034
    %v2036 = vsel %vm2030, %v2033, %v2035
    %v2037 = vsel %vm2029, %v2016, %v2019
    %v2038 = vsel %vm2032, %v2025, 920167782
    %v2039 = vsel %vm2031, %v2022, %v2038
    %v2040 = vsel %vm2030, %v2037, %v2039
    %v2041 = vsel %vm2029, %v2019, %v2022
    %v2042 = vsel %vm2032, %v2028, 1326507024
    %v2043 = vsel %vm2031, %v2025, %v2042
    %v2044 = vsel %vm2030, %v2041, %v2043
    %v2045 = vshll.u32 %v2005, 8
    %v2046 = vand.u32 %v2045, 65535
    %v2047 = vshrl.u32 %v2045, 16
    %v2048 = vand.u32 %v2044, 65535
    %v2049 = vshrl.u32 %v2044, 16
    %v2050 = vmul.u32 %v2046, %v2048
    %v2051 = vmul.u32 %v2046, %v2049
    %v2052 = vmul.u32 %v2047, %v2048
    %v2053 = vmul.u32 %v2047, %v2049
    %v2054 = vshll.u32 %v2051, 16
    %v2055 = vshrl.u32 %v2051, 16
    %v2056 = vshll.u32 %v2052, 16
    %v2057 = vshrl.u32 %v2052, 16
    %vm2058 = vc.u32 %v2050, %v2054
    %v2059 = vsel %vm2058, 1, 0
    %v2060 = vadd.s32 %v2050, %v2054
    %v2061 = vadd.s32 %v2053, %v2059
    %vm2062 = vc.u32 %v2060, %v2056
    %v2063 = vsel %vm2062, 1, 0
    %v2064 = vadd.s32 %v2060, %v2056
    %v2065 = vadd.s32 %v2061, %v2063
    %v2066 = vadd.s32 %v2065, %v2055
    %v2067 = vadd.s32 %v2066, %v2057
    %v2068 = vand.u32 %v2045, 65535
    %v2069 = vshrl.u32 %v2045, 16
    %v2070 = vand.u32 %v2040, 65535
    %v2071 = vshrl.u32 %v2040, 16
    %v2072 = vmul.u32 %v2068, %v2070
    %v2073 = vmul.u32 %v2068, %v2071
    %v2074 = vmul.u32 %v2069, %v2070
    %v2075 = vmul.u32 %v2069, %v2071
    %v2076 = vshll.u32 %v2073, 16
    %v2077 = vshrl.u32 %v2073, 16
    %v2078 = vshll.u32 %v2074, 16
    %v2079 = vshrl.u32 %v2074, 16
    %vm2080 = vc.u32 %v2072, %v2076
    %v2081 = vsel %vm2080, 1, 0
    %v2082 = vadd.s32 %v2072, %v2076
    %v2083 = vadd.s32 %v2075, %v2081
    %vm2084 = vc.u32 %v2082, %v2078
    %v2085 = vsel %vm2084, 1, 0
    %v2086 = vadd.s32 %v2082, %v2078
    %v2087 = vadd.s32 %v2083, %v2085
    %v2088 = vadd.s32 %v2087, %v2077
    %v2089 = vadd.s32 %v2088, %v2079
    %v2090 = vmul.u32 %v2045, %v2036
    %v2091 = vadd.s32 %v2067, %v2086
    %vm2092 = vc.u32 %v2067, %v2086
    %v2093 = vadd.s32 %v2089, 1
    %v2094 = vsel %vm2092, %v2093, %v2089
    %v2095 = vadd.s32 %v2090, %v2094
    %v2096 = vadd.s32 %v2095, 536870912
    %v2097 = vshrl.u32 %v2096, 30
    %v2098 = vshll.u32 %v2097, 30
    %v2099 = vsub.s32 %v2095, %v2098
    %vm2100 = vcmp.lt.s32.totalorder %v2099, 0
    %v2101 = vsub.s32 0, %v2099
    %v2102 = vsel %vm2100, %v2101, %v2099
    %v2103 = vclz %v2102
    %v2104 = vsub.s32 %v2103, 2
    %vm2105 = vcmp.gt.s32.totalorder 0, %v2104
    %v2106 = vsel %vm2105, 0, %v2104
    %v2107 = vsub.s32 32, %v2106
    %v2108 = vshll.u32 %v2099, %v2106
    %v2109 = vshrl.u32 %v2091, %v2107
    %v2110 = vor.u32 %v2108, %v2109
    %v2111 = vsub.s32 4294967266, %v2106
    %v2112 = vadd.s32 %v2111, 127
    %v2113 = vshll.u32 %v2112, 23
    %v2114 = vor.u32 4788187, %v2113
    %v2115 = vand.u32 2147483647, %v2114
    %v2117 = vcvt.s32.f32 %v2110
    %v2118 = vmul.f32 %v2117, %v2115
    %v2119 = vxor.u32 %v2118, 2147483648
    %v2120 = vsel %vm1999, %v2119, %v2118
    %v2121 = vsub.s32 4, %v2097
    %v2122 = vsel %vm1999, %v2121, %v2097
    %v2123 = vsel %vm1998, %v278, %v2120
    %v2124 = vsel %vm1998, 0, %v2122
    %v2125 = vmul.f32 %v2123, %v2123
    %v2126 = vmul.f32 %v2125, -0.001358992
    %v2127 = vadd.f32 %v2126, 0.041655596
    %v2128 = vmul.f32 %v2125, %v2127
    %v2129 = vadd.f32 %v2128, -0.4999988
    %v2130 = vmul.f32 %v2125, %v2129
    %v2131 = vadd.f32 1.0, %v2130
    %v2132 = vmul.f32 %v2123, %v2123
    %v2133 = vmul.f32 %v2132, -0.00019511016
    %v2134 = vadd.f32 %v2133, 0.008332121
    %v2135 = vmul.f32 %v2132, %v2134
    %v2136 = vadd.f32 %v2135, -0.16666654
    %v2137 = vmul.f32 %v2132, %v2136
    %v2138 = vadd.f32 %v2137, 1.0
    %v2139 = vmul.f32 %v2138, %v2123
    %vm2140 = vweird.f32 %v278
    %v2141 = vadd.s32 %v2124, 3
    %v2142 = vand.u32 %v2141, 3
    %vm2143 = vcmp.lt.s32.totalorder %v2142, 2
    %vm2144 = vcmp.eq.s32.totalorder %v2142, 0
    %v2145 = vxor.u32 %v2139, 2147483648
    %v2146 = vsel %vm2144, %v2131, %v2145
    %vm2147 = vcmp.eq.s32.totalorder %v2142, 2
    %v2148 = vxor.u32 %v2131, 2147483648
    %v2149 = vsel %vm2147, %v2148, %v2139
    %v2150 = vsel %vm2143, %v2146, %v2149
    %v2151 = vsel %vm2140, nan, %v2150
    %v2152 = vand.u32 2147483647, %v279
    %vm2153 = vcmp.le.f32.partialorder %v2152, 0.7853982
    %vm2154 = vcmp.lt.s32.totalorder %v279, 0
    %v2155 = vand.u32 %v279, 2139095040
    %v2156 = vshrl.u32 %v2155, 23
    %v2157 = vsub.s32 %v2156, 127
    %v2158 = vand.u32 2147483647, %v279
    %v2159 = vand.u32 %v2158, 8388607
    %v2160 = vor.u32 %v2159, 8388608
    %v2161 = vsub.s32 0, %v2160
    %v2162 = vadd.s32 %v2157, 1
    %vm2163 = vcmp.gt.s32.totalorder %v2162, 0
    %v2164 = vsel %vm2163, %v2162, 0
    %v2165 = vshrl.u32 %v2164, 5
    %v2166 = vand.u32 %v2164, 31
    %v2167 = vsub.s32 32, %v2166
    %v2168 = vshrl.u32 683565275, %v2167
    %v2169 = vshll.u32 683565275, %v2166
    %v2170 = vshrl.u32 2475754826, %v2167
    %v2171 = vor.u32 %v2169, %v2170
    %v2172 = vshll.u32 2475754826, %v2166
    %v2173 = vshrl.u32 2131351028, %v2167
    %v2174 = vor.u32 %v2172, %v2173
    %v2175 = vshll.u32 2131351028, %v2166
    %v2176 = vshrl.u32 2102212464, %v2167
    %v2177 = vor.u32 %v2175, %v2176
    %v2178 = vshll.u32 2102212464, %v2166
    %v2179 = vshrl.u32 920167782, %v2167
    %v2180 = vor.u32 %v2178, %v2179
    %v2181 = vshll.u32 920167782, %v2166
    %v2182 = vshrl.u32 1326507024, %v2167
    %v2183 = vor.u32 %v2181, %v2182
    %vm2184 = vcmp.lt.s32.totalorder %v2165, 1
    %vm2185 = vcmp.lt.s32.totalorder %v2165, 2
    %vm2186 = vcmp.lt.s32.totalorder %v2165, 3
    %vm2187 = vcmp.lt.s32.totalorder %v2165, 4
    %v2188 = vsel %vm2184, %v2168, %v2171
    %v2189 = vsel %vm2187, %v2177, 2102212464
    %v2190 = vsel %vm2186, %v2174, %v2189
    %v2191 = vsel %vm2185, %v2188, %v2190
    %v2192 = vsel %vm2184, %v2171, %v2174
    %v2193 = vsel %vm2187, %v2180, 920167782
    %v2194 = vsel %vm2186, %v2177, %v2193
    %v2195 = vsel %vm2185, %v2192, %v2194
    %v2196 = vsel %vm2184, %v2174, %v2177
    %v2197 = vsel %vm2187, %v2183, 1326507024
    %v2198 = vsel %vm2186, %v2180, %v2197
    %v2199 = vsel %vm2185, %v2196, %v2198
    %v2200 = vshll.u32 %v2160, 8
    %v2201 = vand.u32 %v2200, 65535
    %v2202 = vshrl.u32 %v2200, 16
    %v2203 = vand.u32 %v2199, 65535
    %v2204 = vshrl.u32 %v2199, 16
    %v2205 = vmul.u32 %v2201, %v2203
    %v2206 = vmul.u32 %v2201, %v2204
    %v2207 = vmul.u32 %v2202, %v2203
    %v2208 = vmul.u32 %v2202, %v2204
    %v2209 = vshll.u32 %v2206, 16
    %v2210 = vshrl.u32 %v2206, 16
    %v2211 = vshll.u32 %v2207, 16
    %v2212 = vshrl.u32 %v2207, 16
    %vm2213 = vc.u32 %v2205, %v2209
    %v2214 = vsel %vm2213, 1, 0
    %v2215 = vadd.s32 %v2205, %v2209
    %v2216 = vadd.s32 %v2208, %v2214
    %vm2217 = vc.u32 %v2215, %v2211
    %v2218 = vsel %vm2217, 1, 0
    %v2219 = vadd.s32 %v2215, %v2211
    %v2220 = vadd.s32 %v2216, %v2218
    %v2221 = vadd.s32 %v2220, %v2210
    %v2222 = vadd.s32 %v2221, %v2212
    %v2223 = vand.u32 %v2200, 65535
    %v2224 = vshrl.u32 %v2200, 16
    %v2225 = vand.u32 %v2195, 65535
    %v2226 = vshrl.u32 %v2195, 16
    %v2227 = vmul.u32 %v2223, %v2225
    %v2228 = vmul.u32 %v2223, %v2226
    %v2229 = vmul.u32 %v2224, %v2225
    %v2230 = vmul.u32 %v2224, %v2226
    %v2231 = vshll.u32 %v2228, 16
    %v2232 = vshrl.u32 %v2228, 16
    %v2233 = vshll.u32 %v2229, 16
    %v2234 = vshrl.u32 %v2229, 16
    %vm2235 = vc.u32 %v2227, %v2231
    %v2236 = vsel %vm2235, 1, 0
    %v2237 = vadd.s32 %v2227, %v2231
    %v2238 = vadd.s32 %v2230, %v2236
    %vm2239 = vc.u32 %v2237, %v2233
    %v2240 = vsel %vm2239, 1, 0
    %v2241 = vadd.s32 %v2237, %v2233
    %v2242 = vadd.s32 %v2238, %v2240
    %v2243 = vadd.s32 %v2242, %v2232
    %v2244 = vadd.s32 %v2243, %v2234
    %v2245 = vmul.u32 %v2200, %v2191
    %v2246 = vadd.s32 %v2222, %v2241
    %vm2247 = vc.u32 %v2222, %v2241
    %v2248 = vadd.s32 %v2244, 1
    %v2249 = vsel %vm2247, %v2248, %v2244
    %v2250 = vadd.s32 %v2245, %v2249
    %v2251 = vadd.s32 %v2250, 536870912
    %v2252 = vshrl.u32 %v2251, 30
    %v2253 = vshll.u32 %v2252, 30
    %v2254 = vsub.s32 %v2250, %v2253
    %vm2255 = vcmp.lt.s32.totalorder %v2254, 0
    %v2256 = vsub.s32 0, %v2254
    %v2257 = vsel %vm2255, %v2256, %v2254
    %v2258 = vclz %v2257
    %v2259 = vsub.s32 %v2258, 2
    %vm2260 = vcmp.gt.s32.totalorder 0, %v2259
    %v2261 = vsel %vm2260, 0, %v2259
    %v2262 = vsub.s32 32, %v2261
    %v2263 = vshll.u32 %v2254, %v2261
    %v2264 = vshrl.u32 %v2246, %v2262
    %v2265 = vor.u32 %v2263, %v2264
    %v2266 = vsub.s32 4294967266, %v2261
    %v2267 = vadd.s32 %v2266, 127
    %v2268 = vshll.u32 %v2267, 23
    %v2269 = vor.u32 4788187, %v2268
    %v2270 = vand.u32 2147483647, %v2269
    %v2272 = vcvt.s32.f32 %v2265
    %v2273 = vmul.f32 %v2272, %v2270
    %v2274 = vxor.u32 %v2273, 2147483648
    %v2275 = vsel %vm2154, %v2274, %v2273
    %v2276 = vsub.s32 4, %v2252
    %v2277 = vsel %vm2154, %v2276, %v2252
    %v2278 = vsel %vm2153, %v279, %v2275
    %v2279 = vsel %vm2153, 0, %v2277
    %v2280 = vmul.f32 %v2278, %v2278
    %v2281 = vmul.f32 %v2280, -0.001358992
    %v2282 = vadd.f32 %v2281, 0.041655596
    %v2283 = vmul.f32 %v2280, %v2282
    %v2284 = vadd.f32 %v2283, -0.4999988
    %v2285 = vmul.f32 %v2280, %v2284
    %v2286 = vadd.f32 1.0, %v2285
    %v2287 = vmul.f32 %v2278, %v2278
    %v2288 = vmul.f32 %v2287, -0.00019511016
    %v2289 = vadd.f32 %v2288, 0.008332121
    %v2290 = vmul.f32 %v2287, %v2289
    %v2291 = vadd.f32 %v2290, -0.16666654
    %v2292 = vmul.f32 %v2287, %v2291
    %v2293 = vadd.f32 %v2292, 1.0
    %v2294 = vmul.f32 %v2293, %v2278
    %vm2295 = vweird.f32 %v279
    %v2296 = vadd.s32 %v2279, 3
    %v2297 = vand.u32 %v2296, 3
    %vm2298 = vcmp.lt.s32.totalorder %v2297, 2
    %vm2299 = vcmp.eq.s32.totalorder %v2297, 0
    %v2300 = vxor.u32 %v2294, 2147483648
    %v2301 = vsel %vm2299, %v2286, %v2300
    %vm2302 = vcmp.eq.s32.totalorder %v2297, 2
    %v2303 = vxor.u32 %v2286, 2147483648
    %v2304 = vsel %vm2302, %v2303, %v2294
    %v2305 = vsel %vm2298, %v2301, %v2304
    %v2306 = vsel %vm2295, nan, %v2305
    %v2307 = vand.u32 2147483647, %v280
    %vm2308 = vcmp.le.f32.partialorder %v2307, 0.7853982
    %vm2309 = vcmp.lt.s32.totalorder %v280, 0
    %v2310 = vand.u32 %v280, 2139095040
    %v2311 = vshrl.u32 %v2310, 23
    %v2312 = vsub.s32 %v2311, 127
    %v2313 = vand.u32 2147483647, %v280
    %v2314 = vand.u32 %v2313, 8388607
    %v2315 = vor.u32 %v2314, 8388608
    %v2316 = vsub.s32 0, %v2315
    %v2317 = vadd.s32 %v2312, 1
    %vm2318 = vcmp.gt.s32.totalorder %v2317, 0
    %v2319 = vsel %vm2318, %v2317, 0
    %v2320 = vshrl.u32 %v2319, 5
    %v2321 = vand.u32 %v2319, 31
    %v2322 = vsub.s32 32, %v2321
    %v2323 = vshrl.u32 683565275, %v2322
    %v2324 = vshll.u32 683565275, %v2321
    %v2325 = vshrl.u32 2475754826, %v2322
    %v2326 = vor.u32 %v2324, %v2325
    %v2327 = vshll.u32 2475754826, %v2321
    %v2328 = vshrl.u32 2131351028, %v2322
    %v2329 = vor.u32 %v2327, %v2328
    %v2330 = vshll.u32 2131351028, %v2321
    %v2331 = vshrl.u32 2102212464, %v2322
    %v2332 = vor.u32 %v2330, %v2331
    %v2333 = vshll.u32 2102212464, %v2321
    %v2334 = vshrl.u32 920167782, %v2322
    %v2335 = vor.u32 %v2333, %v2334
    %v2336 = vshll.u32 920167782, %v2321
    %v2337 = vshrl.u32 1326507024, %v2322
    %v2338 = vor.u32 %v2336, %v2337
    %vm2339 = vcmp.lt.s32.totalorder %v2320, 1
    %vm2340 = vcmp.lt.s32.totalorder %v2320, 2
    %vm2341 = vcmp.lt.s32.totalorder %v2320, 3
    %vm2342 = vcmp.lt.s32.totalorder %v2320, 4
    %v2343 = vsel %vm2339, %v2323, %v2326
    %v2344 = vsel %vm2342, %v2332, 2102212464
    %v2345 = vsel %vm2341, %v2329, %v2344
    %v2346 = vsel %vm2340, %v2343, %v2345
    %v2347 = vsel %vm2339, %v2326, %v2329
    %v2348 = vsel %vm2342, %v2335, 920167782
    %v2349 = vsel %vm2341, %v2332, %v2348
    %v2350 = vsel %vm2340, %v2347, %v2349
    %v2351 = vsel %vm2339, %v2329, %v2332
    %v2352 = vsel %vm2342, %v2338, 1326507024
    %v2353 = vsel %vm2341, %v2335, %v2352
    %v2354 = vsel %vm2340, %v2351, %v2353
    %v2355 = vshll.u32 %v2315, 8
    %v2356 = vand.u32 %v2355, 65535
    %v2357 = vshrl.u32 %v2355, 16
    %v2358 = vand.u32 %v2354, 65535
    %v2359 = vshrl.u32 %v2354, 16
    %v2360 = vmul.u32 %v2356, %v2358
    %v2361 = vmul.u32 %v2356, %v2359
    %v2362 = vmul.u32 %v2357, %v2358
    %v2363 = vmul.u32 %v2357, %v2359
    %v2364 = vshll.u32 %v2361, 16
    %v2365 = vshrl.u32 %v2361, 16
    %v2366 = vshll.u32 %v2362, 16
    %v2367 = vshrl.u32 %v2362, 16
    %vm2368 = vc.u32 %v2360, %v2364
    %v2369 = vsel %vm2368, 1, 0
    %v2370 = vadd.s32 %v2360, %v2364
    %v2371 = vadd.s32 %v2363, %v2369
    %vm2372 = vc.u32 %v2370, %v2366
    %v2373 = vsel %vm2372, 1, 0
    %v2374 = vadd.s32 %v2370, %v2366
    %v2375 = vadd.s32 %v2371, %v2373
    %v2376 = vadd.s32 %v2375, %v2365
    %v2377 = vadd.s32 %v2376, %v2367
    %v2378 = vand.u32 %v2355, 65535
    %v2379 = vshrl.u32 %v2355, 16
    %v2380 = vand.u32 %v2350, 65535
    %v2381 = vshrl.u32 %v2350, 16
    %v2382 = vmul.u32 %v2378, %v2380
    %v2383 = vmul.u32 %v2378, %v2381
    %v2384 = vmul.u32 %v2379, %v2380
    %v2385 = vmul.u32 %v2379, %v2381
    %v2386 = vshll.u32 %v2383, 16
    %v2387 = vshrl.u32 %v2383, 16
    %v2388 = vshll.u32 %v2384, 16
    %v2389 = vshrl.u32 %v2384, 16
    %vm2390 = vc.u32 %v2382, %v2386
    %v2391 = vsel %vm2390, 1, 0
    %v2392 = vadd.s32 %v2382, %v2386
    %v2393 = vadd.s32 %v2385, %v2391
    %vm2394 = vc.u32 %v2392, %v2388
    %v2395 = vsel %vm2394, 1, 0
    %v2396 = vadd.s32 %v2392, %v2388
    %v2397 = vadd.s32 %v2393, %v2395
    %v2398 = vadd.s32 %v2397, %v2387
    %v2399 = vadd.s32 %v2398, %v2389
    %v2400 = vmul.u32 %v2355, %v2346
    %v2401 = vadd.s32 %v2377, %v2396
    %vm2402 = vc.u32 %v2377, %v2396
    %v2403 = vadd.s32 %v2399, 1
    %v2404 = vsel %vm2402, %v2403, %v2399
    %v2405 = vadd.s32 %v2400, %v2404
    %v2406 = vadd.s32 %v2405, 536870912
    %v2407 = vshrl.u32 %v2406, 30
    %v2408 = vshll.u32 %v2407, 30
    %v2409 = vsub.s32 %v2405, %v2408
    %vm2410 = vcmp.lt.s32.totalorder %v2409, 0
    %v2411 = vsub.s32 0, %v2409
    %v2412 = vsel %vm2410, %v2411, %v2409
    %v2413 = vclz %v2412
    %v2414 = vsub.s32 %v2413, 2
    %vm2415 = vcmp.gt.s32.totalorder 0, %v2414
    %v2416 = vsel %vm2415, 0, %v2414
    %v2417 = vsub.s32 32, %v2416
    %v2418 = vshll.u32 %v2409, %v2416
    %v2419 = vshrl.u32 %v2401, %v2417
    %v2420 = vor.u32 %v2418, %v2419
    %v2421 = vsub.s32 4294967266, %v2416
    %v2422 = vadd.s32 %v2421, 127
    %v2423 = vshll.u32 %v2422, 23
    %v2424 = vor.u32 4788187, %v2423
    %v2425 = vand.u32 2147483647, %v2424
    %v2427 = vcvt.s32.f32 %v2420
    %v2428 = vmul.f32 %v2427, %v2425
    %v2429 = vxor.u32 %v2428, 2147483648
    %v2430 = vsel %vm2309, %v2429, %v2428
    %v2431 = vsub.s32 4, %v2407
    %v2432 = vsel %vm2309, %v2431, %v2407
    %v2433 = vsel %vm2308, %v280, %v2430
    %v2434 = vsel %vm2308, 0, %v2432
    %v2435 = vmul.f32 %v2433, %v2433
    %v2436 = vmul.f32 %v2435, -0.001358992
    %v2437 = vadd.f32 %v2436, 0.041655596
    %v2438 = vmul.f32 %v2435, %v2437
    %v2439 = vadd.f32 %v2438, -0.4999988
    %v2440 = vmul.f32 %v2435, %v2439
    %v2441 = vadd.f32 1.0, %v2440
    %v2442 = vmul.f32 %v2433, %v2433
    %v2443 = vmul.f32 %v2442, -0.00019511016
    %v2444 = vadd.f32 %v2443, 0.008332121
    %v2445 = vmul.f32 %v2442, %v2444
    %v2446 = vadd.f32 %v2445, -0.16666654
    %v2447 = vmul.f32 %v2442, %v2446
    %v2448 = vadd.f32 %v2447, 1.0
    %v2449 = vmul.f32 %v2448, %v2433
    %vm2450 = vweird.f32 %v280
    %v2451 = vadd.s32 %v2434, 3
    %v2452 = vand.u32 %v2451, 3
    %vm2453 = vcmp.lt.s32.totalorder %v2452, 2
    %vm2454 = vcmp.eq.s32.totalorder %v2452, 0
    %v2455 = vxor.u32 %v2449, 2147483648
    %v2456 = vsel %vm2454, %v2441, %v2455
    %vm2457 = vcmp.eq.s32.totalorder %v2452, 2
    %v2458 = vxor.u32 %v2441, 2147483648
    %v2459 = vsel %vm2457, %v2458, %v2449
    %v2460 = vsel %vm2453, %v2456, %v2459
    %v2461 = vsel %vm2450, nan, %v2460
    %v2462 = vand.u32 2147483647, %v281
    %vm2463 = vcmp.le.f32.partialorder %v2462, 0.7853982
    %vm2464 = vcmp.lt.s32.totalorder %v281, 0
    %v2465 = vand.u32 %v281, 2139095040
    %v2466 = vshrl.u32 %v2465, 23
    %v2467 = vsub.s32 %v2466, 127
    %v2468 = vand.u32 2147483647, %v281
    %v2469 = vand.u32 %v2468, 8388607
    %v2470 = vor.u32 %v2469, 8388608
    %v2471 = vsub.s32 0, %v2470
    %v2472 = vadd.s32 %v2467, 1
    %vm2473 = vcmp.gt.s32.totalorder %v2472, 0
    %v2474 = vsel %vm2473, %v2472, 0
    %v2475 = vshrl.u32 %v2474, 5
    %v2476 = vand.u32 %v2474, 31
    %v2477 = vsub.s32 32, %v2476
    %v2478 = vshrl.u32 683565275, %v2477
    %v2479 = vshll.u32 683565275, %v2476
    %v2480 = vshrl.u32 2475754826, %v2477
    %v2481 = vor.u32 %v2479, %v2480
    %v2482 = vshll.u32 2475754826, %v2476
    %v2483 = vshrl.u32 2131351028, %v2477
    %v2484 = vor.u32 %v2482, %v2483
    %v2485 = vshll.u32 2131351028, %v2476
    %v2486 = vshrl.u32 2102212464, %v2477
    %v2487 = vor.u32 %v2485, %v2486
    %v2488 = vshll.u32 2102212464, %v2476
    %v2489 = vshrl.u32 920167782, %v2477
    %v2490 = vor.u32 %v2488, %v2489
    %v2491 = vshll.u32 920167782, %v2476
    %v2492 = vshrl.u32 1326507024, %v2477
    %v2493 = vor.u32 %v2491, %v2492
    %vm2494 = vcmp.lt.s32.totalorder %v2475, 1
    %vm2495 = vcmp.lt.s32.totalorder %v2475, 2
    %vm2496 = vcmp.lt.s32.totalorder %v2475, 3
    %vm2497 = vcmp.lt.s32.totalorder %v2475, 4
    %v2498 = vsel %vm2494, %v2478, %v2481
    %v2499 = vsel %vm2497, %v2487, 2102212464
    %v2500 = vsel %vm2496, %v2484, %v2499
    %v2501 = vsel %vm2495, %v2498, %v2500
    %v2502 = vsel %vm2494, %v2481, %v2484
    %v2503 = vsel %vm2497, %v2490, 920167782
    %v2504 = vsel %vm2496, %v2487, %v2503
    %v2505 = vsel %vm2495, %v2502, %v2504
    %v2506 = vsel %vm2494, %v2484, %v2487
    %v2507 = vsel %vm2497, %v2493, 1326507024
    %v2508 = vsel %vm2496, %v2490, %v2507
    %v2509 = vsel %vm2495, %v2506, %v2508
    %v2510 = vshll.u32 %v2470, 8
    %v2511 = vand.u32 %v2510, 65535
    %v2512 = vshrl.u32 %v2510, 16
    %v2513 = vand.u32 %v2509, 65535
    %v2514 = vshrl.u32 %v2509, 16
    %v2515 = vmul.u32 %v2511, %v2513
    %v2516 = vmul.u32 %v2511, %v2514
    %v2517 = vmul.u32 %v2512, %v2513
    %v2518 = vmul.u32 %v2512, %v2514
    %v2519 = vshll.u32 %v2516, 16
    %v2520 = vshrl.u32 %v2516, 16
    %v2521 = vshll.u32 %v2517, 16
    %v2522 = vshrl.u32 %v2517, 16
    %vm2523 = vc.u32 %v2515, %v2519
    %v2524 = vsel %vm2523, 1, 0
    %v2525 = vadd.s32 %v2515, %v2519
    %v2526 = vadd.s32 %v2518, %v2524
    %vm2527 = vc.u32 %v2525, %v2521
    %v2528 = vsel %vm2527, 1, 0
    %v2529 = vadd.s32 %v2525, %v2521
    %v2530 = vadd.s32 %v2526, %v2528
    %v2531 = vadd.s32 %v2530, %v2520
    %v2532 = vadd.s32 %v2531, %v2522
    %v2533 = vand.u32 %v2510, 65535
    %v2534 = vshrl.u32 %v2510, 16
    %v2535 = vand.u32 %v2505, 65535
    %v2536 = vshrl.u32 %v2505, 16
    %v2537 = vmul.u32 %v2533, %v2535
    %v2538 = vmul.u32 %v2533, %v2536
    %v2539 = vmul.u32 %v2534, %v2535
    %v2540 = vmul.u32 %v2534, %v2536
    %v2541 = vshll.u32 %v2538, 16
    %v2542 = vshrl.u32 %v2538, 16
    %v2543 = vshll.u32 %v2539, 16
    %v2544 = vshrl.u32 %v2539, 16
    %vm2545 = vc.u32 %v2537, %v2541
    %v2546 = vsel %vm2545, 1, 0
    %v2547 = vadd.s32 %v2537, %v2541
    %v2548 = vadd.s32 %v2540, %v2546
    %vm2549 = vc.u32 %v2547, %v2543
    %v2550 = vsel %vm2549, 1, 0
    %v2551 = vadd.s32 %v2547, %v2543
    %v2552 = vadd.s32 %v2548, %v2550
    %v2553 = vadd.s32 %v2552, %v2542
    %v2554 = vadd.s32 %v2553, %v2544
    %v2555 = vmul.u32 %v2510, %v2501
    %v2556 = vadd.s32 %v2532, %v2551
    %vm2557 = vc.u32 %v2532, %v2551
    %v2558 = vadd.s32 %v2554, 1
    %v2559 = vsel %vm2557, %v2558, %v2554
    %v2560 = vadd.s32 %v2555, %v2559
    %v2561 = vadd.s32 %v2560, 536870912
    %v2562 = vshrl.u32 %v2561, 30
    %v2563 = vshll.u32 %v2562, 30
    %v2564 = vsub.s32 %v2560, %v2563
    %vm2565 = vcmp.lt.s32.totalorder %v2564, 0
    %v2566 = vsub.s32 0, %v2564
    %v2567 = vsel %vm2565, %v2566, %v2564
    %v2568 = vclz %v2567
    %v2569 = vsub.s32 %v2568, 2
    %vm2570 = vcmp.gt.s32.totalorder 0, %v2569
    %v2571 = vsel %vm2570, 0, %v2569
    %v2572 = vsub.s32 32, %v2571
    %v2573 = vshll.u32 %v2564, %v2571
    %v2574 = vshrl.u32 %v2556, %v2572
    %v2575 = vor.u32 %v2573, %v2574
    %v2576 = vsub.s32 4294967266, %v2571
    %v2577 = vadd.s32 %v2576, 127
    %v2578 = vshll.u32 %v2577, 23
    %v2579 = vor.u32 4788187, %v2578
    %v2580 = vand.u32 2147483647, %v2579
    %v2582 = vcvt.s32.f32 %v2575
    %v2583 = vmul.f32 %v2582, %v2580
    %v2584 = vxor.u32 %v2583, 2147483648
    %v2585 = vsel %vm2464, %v2584, %v2583
    %v2586 = vsub.s32 4, %v2562
    %v2587 = vsel %vm2464, %v2586, %v2562
    %v2588 = vsel %vm2463, %v281, %v2585
    %v2589 = vsel %vm2463, 0, %v2587
    %v2590 = vmul.f32 %v2588, %v2588
    %v2591 = vmul.f32 %v2590, -0.001358992
    %v2592 = vadd.f32 %v2591, 0.041655596
    %v2593 = vmul.f32 %v2590, %v2592
    %v2594 = vadd.f32 %v2593, -0.4999988
    %v2595 = vmul.f32 %v2590, %v2594
    %v2596 = vadd.f32 1.0, %v2595
    %v2597 = vmul.f32 %v2588, %v2588
    %v2598 = vmul.f32 %v2597, -0.00019511016
    %v2599 = vadd.f32 %v2598, 0.008332121
    %v2600 = vmul.f32 %v2597, %v2599
    %v2601 = vadd.f32 %v2600, -0.16666654
    %v2602 = vmul.f32 %v2597, %v2601
    %v2603 = vadd.f32 %v2602, 1.0
    %v2604 = vmul.f32 %v2603, %v2588
    %vm2605 = vweird.f32 %v281
    %v2606 = vadd.s32 %v2589, 3
    %v2607 = vand.u32 %v2606, 3
    %vm2608 = vcmp.lt.s32.totalorder %v2607, 2
    %vm2609 = vcmp.eq.s32.totalorder %v2607, 0
    %v2610 = vxor.u32 %v2604, 2147483648
    %v2611 = vsel %vm2609, %v2596, %v2610
    %vm2612 = vcmp.eq.s32.totalorder %v2607, 2
    %v2613 = vxor.u32 %v2596, 2147483648
    %v2614 = vsel %vm2612, %v2613, %v2604
    %v2615 = vsel %vm2608, %v2611, %v2614
    %v2616 = vsel %vm2605, nan, %v2615
    %v2617 = vand.u32 2147483647, %v282
    %vm2618 = vcmp.le.f32.partialorder %v2617, 0.7853982
    %vm2619 = vcmp.lt.s32.totalorder %v282, 0
    %v2620 = vand.u32 %v282, 2139095040
    %v2621 = vshrl.u32 %v2620, 23
    %v2622 = vsub.s32 %v2621, 127
    %v2623 = vand.u32 2147483647, %v282
    %v2624 = vand.u32 %v2623, 8388607
    %v2625 = vor.u32 %v2624, 8388608
    %v2626 = vsub.s32 0, %v2625
    %v2627 = vadd.s32 %v2622, 1
    %vm2628 = vcmp.gt.s32.totalorder %v2627, 0
    %v2629 = vsel %vm2628, %v2627, 0
    %v2630 = vshrl.u32 %v2629, 5
    %v2631 = vand.u32 %v2629, 31
    %v2632 = vsub.s32 32, %v2631
    %v2633 = vshrl.u32 683565275, %v2632
    %v2634 = vshll.u32 683565275, %v2631
    %v2635 = vshrl.u32 2475754826, %v2632
    %v2636 = vor.u32 %v2634, %v2635
    %v2637 = vshll.u32 2475754826, %v2631
    %v2638 = vshrl.u32 2131351028, %v2632
    %v2639 = vor.u32 %v2637, %v2638
    %v2640 = vshll.u32 2131351028, %v2631
    %v2641 = vshrl.u32 2102212464, %v2632
    %v2642 = vor.u32 %v2640, %v2641
    %v2643 = vshll.u32 2102212464, %v2631
    %v2644 = vshrl.u32 920167782, %v2632
    %v2645 = vor.u32 %v2643, %v2644
    %v2646 = vshll.u32 920167782, %v2631
    %v2647 = vshrl.u32 1326507024, %v2632
    %v2648 = vor.u32 %v2646, %v2647
    %vm2649 = vcmp.lt.s32.totalorder %v2630, 1
    %vm2650 = vcmp.lt.s32.totalorder %v2630, 2
    %vm2651 = vcmp.lt.s32.totalorder %v2630, 3
    %vm2652 = vcmp.lt.s32.totalorder %v2630, 4
    %v2653 = vsel %vm2649, %v2633, %v2636
    %v2654 = vsel %vm2652, %v2642, 2102212464
    %v2655 = vsel %vm2651, %v2639, %v2654
    %v2656 = vsel %vm2650, %v2653, %v2655
    %v2657 = vsel %vm2649, %v2636, %v2639
    %v2658 = vsel %vm2652, %v2645, 920167782
    %v2659 = vsel %vm2651, %v2642, %v2658
    %v2660 = vsel %vm2650, %v2657, %v2659
    %v2661 = vsel %vm2649, %v2639, %v2642
    %v2662 = vsel %vm2652, %v2648, 1326507024
    %v2663 = vsel %vm2651, %v2645, %v2662
    %v2664 = vsel %vm2650, %v2661, %v2663
    %v2665 = vshll.u32 %v2625, 8
    %v2666 = vand.u32 %v2665, 65535
    %v2667 = vshrl.u32 %v2665, 16
    %v2668 = vand.u32 %v2664, 65535
    %v2669 = vshrl.u32 %v2664, 16
    %v2670 = vmul.u32 %v2666, %v2668
    %v2671 = vmul.u32 %v2666, %v2669
    %v2672 = vmul.u32 %v2667, %v2668
    %v2673 = vmul.u32 %v2667, %v2669
    %v2674 = vshll.u32 %v2671, 16
    %v2675 = vshrl.u32 %v2671, 16
    %v2676 = vshll.u32 %v2672, 16
    %v2677 = vshrl.u32 %v2672, 16
    %vm2678 = vc.u32 %v2670, %v2674
    %v2679 = vsel %vm2678, 1, 0
    %v2680 = vadd.s32 %v2670, %v2674
    %v2681 = vadd.s32 %v2673, %v2679
    %vm2682 = vc.u32 %v2680, %v2676
    %v2683 = vsel %vm2682, 1, 0
    %v2684 = vadd.s32 %v2680, %v2676
    %v2685 = vadd.s32 %v2681, %v2683
    %v2686 = vadd.s32 %v2685, %v2675
    %v2687 = vadd.s32 %v2686, %v2677
    %v2688 = vand.u32 %v2665, 65535
    %v2689 = vshrl.u32 %v2665, 16
    %v2690 = vand.u32 %v2660, 65535
    %v2691 = vshrl.u32 %v2660, 16
    %v2692 = vmul.u32 %v2688, %v2690
    %v2693 = vmul.u32 %v2688, %v2691
    %v2694 = vmul.u32 %v2689, %v2690
    %v2695 = vmul.u32 %v2689, %v2691
    %v2696 = vshll.u32 %v2693, 16
    %v2697 = vshrl.u32 %v2693, 16
    %v2698 = vshll.u32 %v2694, 16
    %v2699 = vshrl.u32 %v2694, 16
    %vm2700 = vc.u32 %v2692, %v2696
    %v2701 = vsel %vm2700, 1, 0
    %v2702 = vadd.s32 %v2692, %v2696
    %v2703 = vadd.s32 %v2695, %v2701
    %vm2704 = vc.u32 %v2702, %v2698
    %v2705 = vsel %vm2704, 1, 0
    %v2706 = vadd.s32 %v2702, %v2698
    %v2707 = vadd.s32 %v2703, %v2705
    %v2708 = vadd.s32 %v2707, %v2697
    %v2709 = vadd.s32 %v2708, %v2699
    %v2710 = vmul.u32 %v2665, %v2656
    %v2711 = vadd.s32 %v2687, %v2706
    %vm2712 = vc.u32 %v2687, %v2706
    %v2713 = vadd.s32 %v2709, 1
    %v2714 = vsel %vm2712, %v2713, %v2709
    %v2715 = vadd.s32 %v2710, %v2714
    %v2716 = vadd.s32 %v2715, 536870912
    %v2717 = vshrl.u32 %v2716, 30
    %v2718 = vshll.u32 %v2717, 30
    %v2719 = vsub.s32 %v2715, %v2718
    %vm2720 = vcmp.lt.s32.totalorder %v2719, 0
    %v2721 = vsub.s32 0, %v2719
    %v2722 = vsel %vm2720, %v2721, %v2719
    %v2723 = vclz %v2722
    %v2724 = vsub.s32 %v2723, 2
    %vm2725 = vcmp.gt.s32.totalorder 0, %v2724
    %v2726 = vsel %vm2725, 0, %v2724
    %v2727 = vsub.s32 32, %v2726
    %v2728 = vshll.u32 %v2719, %v2726
    %v2729 = vshrl.u32 %v2711, %v2727
    %v2730 = vor.u32 %v2728, %v2729
    %v2731 = vsub.s32 4294967266, %v2726
    %v2732 = vadd.s32 %v2731, 127
    %v2733 = vshll.u32 %v2732, 23
    %v2734 = vor.u32 4788187, %v2733
    %v2735 = vand.u32 2147483647, %v2734
    %v2737 = vcvt.s32.f32 %v2730
    %v2738 = vmul.f32 %v2737, %v2735
    %v2739 = vxor.u32 %v2738, 2147483648
    %v2740 = vsel %vm2619, %v2739, %v2738
    %v2741 = vsub.s32 4, %v2717
    %v2742 = vsel %vm2619, %v2741, %v2717
    %v2743 = vsel %vm2618, %v282, %v2740
    %v2744 = vsel %vm2618, 0, %v2742
    %v2745 = vmul.f32 %v2743, %v2743
    %v2746 = vmul.f32 %v2745, -0.001358992
    %v2747 = vadd.f32 %v2746, 0.041655596
    %v2748 = vmul.f32 %v2745, %v2747
    %v2749 = vadd.f32 %v2748, -0.4999988
    %v2750 = vmul.f32 %v2745, %v2749
    %v2751 = vadd.f32 1.0, %v2750
    %v2752 = vmul.f32 %v2743, %v2743
    %v2753 = vmul.f32 %v2752, -0.00019511016
    %v2754 = vadd.f32 %v2753, 0.008332121
    %v2755 = vmul.f32 %v2752, %v2754
    %v2756 = vadd.f32 %v2755, -0.16666654
    %v2757 = vmul.f32 %v2752, %v2756
    %v2758 = vadd.f32 %v2757, 1.0
    %v2759 = vmul.f32 %v2758, %v2743
    %vm2760 = vweird.f32 %v282
    %v2761 = vadd.s32 %v2744, 3
    %v2762 = vand.u32 %v2761, 3
    %vm2763 = vcmp.lt.s32.totalorder %v2762, 2
    %vm2764 = vcmp.eq.s32.totalorder %v2762, 0
    %v2765 = vxor.u32 %v2759, 2147483648
    %v2766 = vsel %vm2764, %v2751, %v2765
    %vm2767 = vcmp.eq.s32.totalorder %v2762, 2
    %v2768 = vxor.u32 %v2751, 2147483648
    %v2769 = vsel %vm2767, %v2768, %v2759
    %v2770 = vsel %vm2763, %v2766, %v2769
    %v2771 = vsel %vm2760, nan, %v2770
    %v2772 = vand.u32 2147483647, %v283
    %vm2773 = vcmp.le.f32.partialorder %v2772, 0.7853982
    %vm2774 = vcmp.lt.s32.totalorder %v283, 0
    %v2775 = vand.u32 %v283, 2139095040
    %v2776 = vshrl.u32 %v2775, 23
    %v2777 = vsub.s32 %v2776, 127
    %v2778 = vand.u32 2147483647, %v283
    %v2779 = vand.u32 %v2778, 8388607
    %v2780 = vor.u32 %v2779, 8388608
    %v2781 = vsub.s32 0, %v2780
    %v2782 = vadd.s32 %v2777, 1
    %vm2783 = vcmp.gt.s32.totalorder %v2782, 0
    %v2784 = vsel %vm2783, %v2782, 0
    %v2785 = vshrl.u32 %v2784, 5
    %v2786 = vand.u32 %v2784, 31
    %v2787 = vsub.s32 32, %v2786
    %v2788 = vshrl.u32 683565275, %v2787
    %v2789 = vshll.u32 683565275, %v2786
    %v2790 = vshrl.u32 2475754826, %v2787
    %v2791 = vor.u32 %v2789, %v2790
    %v2792 = vshll.u32 2475754826, %v2786
    %v2793 = vshrl.u32 2131351028, %v2787
    %v2794 = vor.u32 %v2792, %v2793
    %v2795 = vshll.u32 2131351028, %v2786
    %v2796 = vshrl.u32 2102212464, %v2787
    %v2797 = vor.u32 %v2795, %v2796
    %v2798 = vshll.u32 2102212464, %v2786
    %v2799 = vshrl.u32 920167782, %v2787
    %v2800 = vor.u32 %v2798, %v2799
    %v2801 = vshll.u32 920167782, %v2786
    %v2802 = vshrl.u32 1326507024, %v2787
    %v2803 = vor.u32 %v2801, %v2802
    %vm2804 = vcmp.lt.s32.totalorder %v2785, 1
    %vm2805 = vcmp.lt.s32.totalorder %v2785, 2
    %vm2806 = vcmp.lt.s32.totalorder %v2785, 3
    %vm2807 = vcmp.lt.s32.totalorder %v2785, 4
    %v2808 = vsel %vm2804, %v2788, %v2791
    %v2809 = vsel %vm2807, %v2797, 2102212464
    %v2810 = vsel %vm2806, %v2794, %v2809
    %v2811 = vsel %vm2805, %v2808, %v2810
    %v2812 = vsel %vm2804, %v2791, %v2794
    %v2813 = vsel %vm2807, %v2800, 920167782
    %v2814 = vsel %vm2806, %v2797, %v2813
    %v2815 = vsel %vm2805, %v2812, %v2814
    %v2816 = vsel %vm2804, %v2794, %v2797
    %v2817 = vsel %vm2807, %v2803, 1326507024
    %v2818 = vsel %vm2806, %v2800, %v2817
    %v2819 = vsel %vm2805, %v2816, %v2818
    %v2820 = vshll.u32 %v2780, 8
    %v2821 = vand.u32 %v2820, 65535
    %v2822 = vshrl.u32 %v2820, 16
    %v2823 = vand.u32 %v2819, 65535
    %v2824 = vshrl.u32 %v2819, 16
    %v2825 = vmul.u32 %v2821, %v2823
    %v2826 = vmul.u32 %v2821, %v2824
    %v2827 = vmul.u32 %v2822, %v2823
    %v2828 = vmul.u32 %v2822, %v2824
    %v2829 = vshll.u32 %v2826, 16
    %v2830 = vshrl.u32 %v2826, 16
    %v2831 = vshll.u32 %v2827, 16
    %v2832 = vshrl.u32 %v2827, 16
    %vm2833 = vc.u32 %v2825, %v2829
    %v2834 = vsel %vm2833, 1, 0
    %v2835 = vadd.s32 %v2825, %v2829
    %v2836 = vadd.s32 %v2828, %v2834
    %vm2837 = vc.u32 %v2835, %v2831
    %v2838 = vsel %vm2837, 1, 0
    %v2839 = vadd.s32 %v2835, %v2831
    %v2840 = vadd.s32 %v2836, %v2838
    %v2841 = vadd.s32 %v2840, %v2830
    %v2842 = vadd.s32 %v2841, %v2832
    %v2843 = vand.u32 %v2820, 65535
    %v2844 = vshrl.u32 %v2820, 16
    %v2845 = vand.u32 %v2815, 65535
    %v2846 = vshrl.u32 %v2815, 16
    %v2847 = vmul.u32 %v2843, %v2845
    %v2848 = vmul.u32 %v2843, %v2846
    %v2849 = vmul.u32 %v2844, %v2845
    %v2850 = vmul.u32 %v2844, %v2846
    %v2851 = vshll.u32 %v2848, 16
    %v2852 = vshrl.u32 %v2848, 16
    %v2853 = vshll.u32 %v2849, 16
    %v2854 = vshrl.u32 %v2849, 16
    %vm2855 = vc.u32 %v2847, %v2851
    %v2856 = vsel %vm2855, 1, 0
    %v2857 = vadd.s32 %v2847, %v2851
    %v2858 = vadd.s32 %v2850, %v2856
    %vm2859 = vc.u32 %v2857, %v2853
    %v2860 = vsel %vm2859, 1, 0
    %v2861 = vadd.s32 %v2857, %v2853
    %v2862 = vadd.s32 %v2858, %v2860
    %v2863 = vadd.s32 %v2862, %v2852
    %v2864 = vadd.s32 %v2863, %v2854
    %v2865 = vmul.u32 %v2820, %v2811
    %v2866 = vadd.s32 %v2842, %v2861
    %vm2867 = vc.u32 %v2842, %v2861
    %v2868 = vadd.s32 %v2864, 1
    %v2869 = vsel %vm2867, %v2868, %v2864
    %v2870 = vadd.s32 %v2865, %v2869
    %v2871 = vadd.s32 %v2870, 536870912
    %v2872 = vshrl.u32 %v2871, 30
    %v2873 = vshll.u32 %v2872, 30
    %v2874 = vsub.s32 %v2870, %v2873
    %vm2875 = vcmp.lt.s32.totalorder %v2874, 0
    %v2876 = vsub.s32 0, %v2874
    %v2877 = vsel %vm2875, %v2876, %v2874
    %v2878 = vclz %v2877
    %v2879 = vsub.s32 %v2878, 2
    %vm2880 = vcmp.gt.s32.totalorder 0, %v2879
    %v2881 = vsel %vm2880, 0, %v2879
    %v2882 = vsub.s32 32, %v2881
    %v2883 = vshll.u32 %v2874, %v2881
    %v2884 = vshrl.u32 %v2866, %v2882
    %v2885 = vor.u32 %v2883, %v2884
    %v2886 = vsub.s32 4294967266, %v2881
    %v2887 = vadd.s32 %v2886, 127
    %v2888 = vshll.u32 %v2887, 23
    %v2889 = vor.u32 4788187, %v2888
    %v2890 = vand.u32 2147483647, %v2889
    %v2892 = vcvt.s32.f32 %v2885
    %v2893 = vmul.f32 %v2892, %v2890
    %v2894 = vxor.u32 %v2893, 2147483648
    %v2895 = vsel %vm2774, %v2894, %v2893
    %v2896 = vsub.s32 4, %v2872
    %v2897 = vsel %vm2774, %v2896, %v2872
    %v2898 = vsel %vm2773, %v283, %v2895
    %v2899 = vsel %vm2773, 0, %v2897
    %v2900 = vmul.f32 %v2898, %v2898
    %v2901 = vmul.f32 %v2900, -0.001358992
    %v2902 = vadd.f32 %v2901, 0.041655596
    %v2903 = vmul.f32 %v2900, %v2902
    %v2904 = vadd.f32 %v2903, -0.4999988
    %v2905 = vmul.f32 %v2900, %v2904
    %v2906 = vadd.f32 1.0, %v2905
    %v2907 = vmul.f32 %v2898, %v2898
    %v2908 = vmul.f32 %v2907, -0.00019511016
    %v2909 = vadd.f32 %v2908, 0.008332121
    %v2910 = vmul.f32 %v2907, %v2909
    %v2911 = vadd.f32 %v2910, -0.16666654
    %v2912 = vmul.f32 %v2907, %v2911
    %v2913 = vadd.f32 %v2912, 1.0
    %v2914 = vmul.f32 %v2913, %v2898
    %vm2915 = vweird.f32 %v283
    %v2916 = vadd.s32 %v2899, 3
    %v2917 = vand.u32 %v2916, 3
    %vm2918 = vcmp.lt.s32.totalorder %v2917, 2
    %vm2919 = vcmp.eq.s32.totalorder %v2917, 0
    %v2920 = vxor.u32 %v2914, 2147483648
    %v2921 = vsel %vm2919, %v2906, %v2920
    %vm2922 = vcmp.eq.s32.totalorder %v2917, 2
    %v2923 = vxor.u32 %v2906, 2147483648
    %v2924 = vsel %vm2922, %v2923, %v2914
    %v2925 = vsel %vm2918, %v2921, %v2924
    %v2926 = vsel %vm2915, nan, %v2925
    %v2927 = vand.u32 2147483647, %v284
    %vm2928 = vcmp.le.f32.partialorder %v2927, 0.7853982
    %vm2929 = vcmp.lt.s32.totalorder %v284, 0
    %v2930 = vand.u32 %v284, 2139095040
    %v2931 = vshrl.u32 %v2930, 23
    %v2932 = vsub.s32 %v2931, 127
    %v2933 = vand.u32 2147483647, %v284
    %v2934 = vand.u32 %v2933, 8388607
    %v2935 = vor.u32 %v2934, 8388608
    %v2936 = vsub.s32 0, %v2935
    %v2937 = vadd.s32 %v2932, 1
    %vm2938 = vcmp.gt.s32.totalorder %v2937, 0
    %v2939 = vsel %vm2938, %v2937, 0
    %v2940 = vshrl.u32 %v2939, 5
    %v2941 = vand.u32 %v2939, 31
    %v2942 = vsub.s32 32, %v2941
    %v2943 = vshrl.u32 683565275, %v2942
    %v2944 = vshll.u32 683565275, %v2941
    %v2945 = vshrl.u32 2475754826, %v2942
    %v2946 = vor.u32 %v2944, %v2945
    %v2947 = vshll.u32 2475754826, %v2941
    %v2948 = vshrl.u32 2131351028, %v2942
    %v2949 = vor.u32 %v2947, %v2948
    %v2950 = vshll.u32 2131351028, %v2941
    %v2951 = vshrl.u32 2102212464, %v2942
    %v2952 = vor.u32 %v2950, %v2951
    %v2953 = vshll.u32 2102212464, %v2941
    %v2954 = vshrl.u32 920167782, %v2942
    %v2955 = vor.u32 %v2953, %v2954
    %v2956 = vshll.u32 920167782, %v2941
    %v2957 = vshrl.u32 1326507024, %v2942
    %v2958 = vor.u32 %v2956, %v2957
    %vm2959 = vcmp.lt.s32.totalorder %v2940, 1
    %vm2960 = vcmp.lt.s32.totalorder %v2940, 2
    %vm2961 = vcmp.lt.s32.totalorder %v2940, 3
    %vm2962 = vcmp.lt.s32.totalorder %v2940, 4
    %v2963 = vsel %vm2959, %v2943, %v2946
    %v2964 = vsel %vm2962, %v2952, 2102212464
    %v2965 = vsel %vm2961, %v2949, %v2964
    %v2966 = vsel %vm2960, %v2963, %v2965
    %v2967 = vsel %vm2959, %v2946, %v2949
    %v2968 = vsel %vm2962, %v2955, 920167782
    %v2969 = vsel %vm2961, %v2952, %v2968
    %v2970 = vsel %vm2960, %v2967, %v2969
    %v2971 = vsel %vm2959, %v2949, %v2952
    %v2972 = vsel %vm2962, %v2958, 1326507024
    %v2973 = vsel %vm2961, %v2955, %v2972
    %v2974 = vsel %vm2960, %v2971, %v2973
    %v2975 = vshll.u32 %v2935, 8
    %v2976 = vand.u32 %v2975, 65535
    %v2977 = vshrl.u32 %v2975, 16
    %v2978 = vand.u32 %v2974, 65535
    %v2979 = vshrl.u32 %v2974, 16
    %v2980 = vmul.u32 %v2976, %v2978
    %v2981 = vmul.u32 %v2976, %v2979
    %v2982 = vmul.u32 %v2977, %v2978
    %v2983 = vmul.u32 %v2977, %v2979
    %v2984 = vshll.u32 %v2981, 16
    %v2985 = vshrl.u32 %v2981, 16
    %v2986 = vshll.u32 %v2982, 16
    %v2987 = vshrl.u32 %v2982, 16
    %vm2988 = vc.u32 %v2980, %v2984
    %v2989 = vsel %vm2988, 1, 0
    %v2990 = vadd.s32 %v2980, %v2984
    %v2991 = vadd.s32 %v2983, %v2989
    %vm2992 = vc.u32 %v2990, %v2986
    %v2993 = vsel %vm2992, 1, 0
    %v2994 = vadd.s32 %v2990, %v2986
    %v2995 = vadd.s32 %v2991, %v2993
    %v2996 = vadd.s32 %v2995, %v2985
    %v2997 = vadd.s32 %v2996, %v2987
    %v2998 = vand.u32 %v2975, 65535
    %v2999 = vshrl.u32 %v2975, 16
    %v3000 = vand.u32 %v2970, 65535
    %v3001 = vshrl.u32 %v2970, 16
    %v3002 = vmul.u32 %v2998, %v3000
    %v3003 = vmul.u32 %v2998, %v3001
    %v3004 = vmul.u32 %v2999, %v3000
    %v3005 = vmul.u32 %v2999, %v3001
    %v3006 = vshll.u32 %v3003, 16
    %v3007 = vshrl.u32 %v3003, 16
    %v3008 = vshll.u32 %v3004, 16
    %v3009 = vshrl.u32 %v3004, 16
    %vm3010 = vc.u32 %v3002, %v3006
    %v3011 = vsel %vm3010, 1, 0
    %v3012 = vadd.s32 %v3002, %v3006
    %v3013 = vadd.s32 %v3005, %v3011
    %vm3014 = vc.u32 %v3012, %v3008
    %v3015 = vsel %vm3014, 1, 0
    %v3016 = vadd.s32 %v3012, %v3008
    %v3017 = vadd.s32 %v3013, %v3015
    %v3018 = vadd.s32 %v3017, %v3007
    %v3019 = vadd.s32 %v3018, %v3009
    %v3020 = vmul.u32 %v2975, %v2966
    %v3021 = vadd.s32 %v2997, %v3016
    %vm3022 = vc.u32 %v2997, %v3016
    %v3023 = vadd.s32 %v3019, 1
    %v3024 = vsel %vm3022, %v3023, %v3019
    %v3025 = vadd.s32 %v3020, %v3024
    %v3026 = vadd.s32 %v3025, 536870912
    %v3027 = vshrl.u32 %v3026, 30
    %v3028 = vshll.u32 %v3027, 30
    %v3029 = vsub.s32 %v3025, %v3028
    %vm3030 = vcmp.lt.s32.totalorder %v3029, 0
    %v3031 = vsub.s32 0, %v3029
    %v3032 = vsel %vm3030, %v3031, %v3029
    %v3033 = vclz %v3032
    %v3034 = vsub.s32 %v3033, 2
    %vm3035 = vcmp.gt.s32.totalorder 0, %v3034
    %v3036 = vsel %vm3035, 0, %v3034
    %v3037 = vsub.s32 32, %v3036
    %v3038 = vshll.u32 %v3029, %v3036
    %v3039 = vshrl.u32 %v3021, %v3037
    %v3040 = vor.u32 %v3038, %v3039
    %v3041 = vsub.s32 4294967266, %v3036
    %v3042 = vadd.s32 %v3041, 127
    %v3043 = vshll.u32 %v3042, 23
    %v3044 = vor.u32 4788187, %v3043
    %v3045 = vand.u32 2147483647, %v3044
    %v3047 = vcvt.s32.f32 %v3040
    %v3048 = vmul.f32 %v3047, %v3045
    %v3049 = vxor.u32 %v3048, 2147483648
    %v3050 = vsel %vm2929, %v3049, %v3048
    %v3051 = vsub.s32 4, %v3027
    %v3052 = vsel %vm2929, %v3051, %v3027
    %v3053 = vsel %vm2928, %v284, %v3050
    %v3054 = vsel %vm2928, 0, %v3052
    %v3055 = vmul.f32 %v3053, %v3053
    %v3056 = vmul.f32 %v3055, -0.001358992
    %v3057 = vadd.f32 %v3056, 0.041655596
    %v3058 = vmul.f32 %v3055, %v3057
    %v3059 = vadd.f32 %v3058, -0.4999988
    %v3060 = vmul.f32 %v3055, %v3059
    %v3061 = vadd.f32 1.0, %v3060
    %v3062 = vmul.f32 %v3053, %v3053
    %v3063 = vmul.f32 %v3062, -0.00019511016
    %v3064 = vadd.f32 %v3063, 0.008332121
    %v3065 = vmul.f32 %v3062, %v3064
    %v3066 = vadd.f32 %v3065, -0.16666654
    %v3067 = vmul.f32 %v3062, %v3066
    %v3068 = vadd.f32 %v3067, 1.0
    %v3069 = vmul.f32 %v3068, %v3053
    %vm3070 = vweird.f32 %v284
    %v3071 = vadd.s32 %v3054, 3
    %v3072 = vand.u32 %v3071, 3
    %vm3073 = vcmp.lt.s32.totalorder %v3072, 2
    %vm3074 = vcmp.eq.s32.totalorder %v3072, 0
    %v3075 = vxor.u32 %v3069, 2147483648
    %v3076 = vsel %vm3074, %v3061, %v3075
    %vm3077 = vcmp.eq.s32.totalorder %v3072, 2
    %v3078 = vxor.u32 %v3061, 2147483648
    %v3079 = vsel %vm3077, %v3078, %v3069
    %v3080 = vsel %vm3073, %v3076, %v3079
    %v3081 = vsel %vm3070, nan, %v3080
    %v3082 = vand.u32 2147483647, %v285
    %vm3083 = vcmp.le.f32.partialorder %v3082, 0.7853982
    %vm3084 = vcmp.lt.s32.totalorder %v285, 0
    %v3085 = vand.u32 %v285, 2139095040
    %v3086 = vshrl.u32 %v3085, 23
    %v3087 = vsub.s32 %v3086, 127
    %v3088 = vand.u32 2147483647, %v285
    %v3089 = vand.u32 %v3088, 8388607
    %v3090 = vor.u32 %v3089, 8388608
    %v3091 = vsub.s32 0, %v3090
    %v3092 = vadd.s32 %v3087, 1
    %vm3093 = vcmp.gt.s32.totalorder %v3092, 0
    %v3094 = vsel %vm3093, %v3092, 0
    %v3095 = vshrl.u32 %v3094, 5
    %v3096 = vand.u32 %v3094, 31
    %v3097 = vsub.s32 32, %v3096
    %v3098 = vshrl.u32 683565275, %v3097
    %v3099 = vshll.u32 683565275, %v3096
    %v3100 = vshrl.u32 2475754826, %v3097
    %v3101 = vor.u32 %v3099, %v3100
    %v3102 = vshll.u32 2475754826, %v3096
    %v3103 = vshrl.u32 2131351028, %v3097
    %v3104 = vor.u32 %v3102, %v3103
    %v3105 = vshll.u32 2131351028, %v3096
    %v3106 = vshrl.u32 2102212464, %v3097
    %v3107 = vor.u32 %v3105, %v3106
    %v3108 = vshll.u32 2102212464, %v3096
    %v3109 = vshrl.u32 920167782, %v3097
    %v3110 = vor.u32 %v3108, %v3109
    %v3111 = vshll.u32 920167782, %v3096
    %v3112 = vshrl.u32 1326507024, %v3097
    %v3113 = vor.u32 %v3111, %v3112
    %vm3114 = vcmp.lt.s32.totalorder %v3095, 1
    %vm3115 = vcmp.lt.s32.totalorder %v3095, 2
    %vm3116 = vcmp.lt.s32.totalorder %v3095, 3
    %vm3117 = vcmp.lt.s32.totalorder %v3095, 4
    %v3118 = vsel %vm3114, %v3098, %v3101
    %v3119 = vsel %vm3117, %v3107, 2102212464
    %v3120 = vsel %vm3116, %v3104, %v3119
    %v3121 = vsel %vm3115, %v3118, %v3120
    %v3122 = vsel %vm3114, %v3101, %v3104
    %v3123 = vsel %vm3117, %v3110, 920167782
    %v3124 = vsel %vm3116, %v3107, %v3123
    %v3125 = vsel %vm3115, %v3122, %v3124
    %v3126 = vsel %vm3114, %v3104, %v3107
    %v3127 = vsel %vm3117, %v3113, 1326507024
    %v3128 = vsel %vm3116, %v3110, %v3127
    %v3129 = vsel %vm3115, %v3126, %v3128
    %v3130 = vshll.u32 %v3090, 8
    %v3131 = vand.u32 %v3130, 65535
    %v3132 = vshrl.u32 %v3130, 16
    %v3133 = vand.u32 %v3129, 65535
    %v3134 = vshrl.u32 %v3129, 16
    %v3135 = vmul.u32 %v3131, %v3133
    %v3136 = vmul.u32 %v3131, %v3134
    %v3137 = vmul.u32 %v3132, %v3133
    %v3138 = vmul.u32 %v3132, %v3134
    %v3139 = vshll.u32 %v3136, 16
    %v3140 = vshrl.u32 %v3136, 16
    %v3141 = vshll.u32 %v3137, 16
    %v3142 = vshrl.u32 %v3137, 16
    %vm3143 = vc.u32 %v3135, %v3139
    %v3144 = vsel %vm3143, 1, 0
    %v3145 = vadd.s32 %v3135, %v3139
    %v3146 = vadd.s32 %v3138, %v3144
    %vm3147 = vc.u32 %v3145, %v3141
    %v3148 = vsel %vm3147, 1, 0
    %v3149 = vadd.s32 %v3145, %v3141
    %v3150 = vadd.s32 %v3146, %v3148
    %v3151 = vadd.s32 %v3150, %v3140
    %v3152 = vadd.s32 %v3151, %v3142
    %v3153 = vand.u32 %v3130, 65535
    %v3154 = vshrl.u32 %v3130, 16
    %v3155 = vand.u32 %v3125, 65535
    %v3156 = vshrl.u32 %v3125, 16
    %v3157 = vmul.u32 %v3153, %v3155
    %v3158 = vmul.u32 %v3153, %v3156
    %v3159 = vmul.u32 %v3154, %v3155
    %v3160 = vmul.u32 %v3154, %v3156
    %v3161 = vshll.u32 %v3158, 16
    %v3162 = vshrl.u32 %v3158, 16
    %v3163 = vshll.u32 %v3159, 16
    %v3164 = vshrl.u32 %v3159, 16
    %vm3165 = vc.u32 %v3157, %v3161
    %v3166 = vsel %vm3165, 1, 0
    %v3167 = vadd.s32 %v3157, %v3161
    %v3168 = vadd.s32 %v3160, %v3166
    %vm3169 = vc.u32 %v3167, %v3163
    %v3170 = vsel %vm3169, 1, 0
    %v3171 = vadd.s32 %v3167, %v3163
    %v3172 = vadd.s32 %v3168, %v3170
    %v3173 = vadd.s32 %v3172, %v3162
    %v3174 = vadd.s32 %v3173, %v3164
    %v3175 = vmul.u32 %v3130, %v3121
    %v3176 = vadd.s32 %v3152, %v3171
    %vm3177 = vc.u32 %v3152, %v3171
    %v3178 = vadd.s32 %v3174, 1
    %v3179 = vsel %vm3177, %v3178, %v3174
    %v3180 = vadd.s32 %v3175, %v3179
    %v3181 = vadd.s32 %v3180, 536870912
    %v3182 = vshrl.u32 %v3181, 30
    %v3183 = vshll.u32 %v3182, 30
    %v3184 = vsub.s32 %v3180, %v3183
    %vm3185 = vcmp.lt.s32.totalorder %v3184, 0
    %v3186 = vsub.s32 0, %v3184
    %v3187 = vsel %vm3185, %v3186, %v3184
    %v3188 = vclz %v3187
    %v3189 = vsub.s32 %v3188, 2
    %vm3190 = vcmp.gt.s32.totalorder 0, %v3189
    %v3191 = vsel %vm3190, 0, %v3189
    %v3192 = vsub.s32 32, %v3191
    %v3193 = vshll.u32 %v3184, %v3191
    %v3194 = vshrl.u32 %v3176, %v3192
    %v3195 = vor.u32 %v3193, %v3194
    %v3196 = vsub.s32 4294967266, %v3191
    %v3197 = vadd.s32 %v3196, 127
    %v3198 = vshll.u32 %v3197, 23
    %v3199 = vor.u32 4788187, %v3198
    %v3200 = vand.u32 2147483647, %v3199
    %v3202 = vcvt.s32.f32 %v3195
    %v3203 = vmul.f32 %v3202, %v3200
    %v3204 = vxor.u32 %v3203, 2147483648
    %v3205 = vsel %vm3084, %v3204, %v3203
    %v3206 = vsub.s32 4, %v3182
    %v3207 = vsel %vm3084, %v3206, %v3182
    %v3208 = vsel %vm3083, %v285, %v3205
    %v3209 = vsel %vm3083, 0, %v3207
    %v3210 = vmul.f32 %v3208, %v3208
    %v3211 = vmul.f32 %v3210, -0.001358992
    %v3212 = vadd.f32 %v3211, 0.041655596
    %v3213 = vmul.f32 %v3210, %v3212
    %v3214 = vadd.f32 %v3213, -0.4999988
    %v3215 = vmul.f32 %v3210, %v3214
    %v3216 = vadd.f32 1.0, %v3215
    %v3217 = vmul.f32 %v3208, %v3208
    %v3218 = vmul.f32 %v3217, -0.00019511016
    %v3219 = vadd.f32 %v3218, 0.008332121
    %v3220 = vmul.f32 %v3217, %v3219
    %v3221 = vadd.f32 %v3220, -0.16666654
    %v3222 = vmul.f32 %v3217, %v3221
    %v3223 = vadd.f32 %v3222, 1.0
    %v3224 = vmul.f32 %v3223, %v3208
    %vm3225 = vweird.f32 %v285
    %v3226 = vadd.s32 %v3209, 3
    %v3227 = vand.u32 %v3226, 3
    %vm3228 = vcmp.lt.s32.totalorder %v3227, 2
    %vm3229 = vcmp.eq.s32.totalorder %v3227, 0
    %v3230 = vxor.u32 %v3224, 2147483648
    %v3231 = vsel %vm3229, %v3216, %v3230
    %vm3232 = vcmp.eq.s32.totalorder %v3227, 2
    %v3233 = vxor.u32 %v3216, 2147483648
    %v3234 = vsel %vm3232, %v3233, %v3224
    %v3235 = vsel %vm3228, %v3231, %v3234
    %v3236 = vsel %vm3225, nan, %v3235
    %v3237 = vand.u32 2147483647, %v286
    %vm3238 = vcmp.le.f32.partialorder %v3237, 0.7853982
    %vm3239 = vcmp.lt.s32.totalorder %v286, 0
    %v3240 = vand.u32 %v286, 2139095040
    %v3241 = vshrl.u32 %v3240, 23
    %v3242 = vsub.s32 %v3241, 127
    %v3243 = vand.u32 2147483647, %v286
    %v3244 = vand.u32 %v3243, 8388607
    %v3245 = vor.u32 %v3244, 8388608
    %v3246 = vsub.s32 0, %v3245
    %v3247 = vadd.s32 %v3242, 1
    %vm3248 = vcmp.gt.s32.totalorder %v3247, 0
    %v3249 = vsel %vm3248, %v3247, 0
    %v3250 = vshrl.u32 %v3249, 5
    %v3251 = vand.u32 %v3249, 31
    %v3252 = vsub.s32 32, %v3251
    %v3253 = vshrl.u32 683565275, %v3252
    %v3254 = vshll.u32 683565275, %v3251
    %v3255 = vshrl.u32 2475754826, %v3252
    %v3256 = vor.u32 %v3254, %v3255
    %v3257 = vshll.u32 2475754826, %v3251
    %v3258 = vshrl.u32 2131351028, %v3252
    %v3259 = vor.u32 %v3257, %v3258
    %v3260 = vshll.u32 2131351028, %v3251
    %v3261 = vshrl.u32 2102212464, %v3252
    %v3262 = vor.u32 %v3260, %v3261
    %v3263 = vshll.u32 2102212464, %v3251
    %v3264 = vshrl.u32 920167782, %v3252
    %v3265 = vor.u32 %v3263, %v3264
    %v3266 = vshll.u32 920167782, %v3251
    %v3267 = vshrl.u32 1326507024, %v3252
    %v3268 = vor.u32 %v3266, %v3267
    %vm3269 = vcmp.lt.s32.totalorder %v3250, 1
    %vm3270 = vcmp.lt.s32.totalorder %v3250, 2
    %vm3271 = vcmp.lt.s32.totalorder %v3250, 3
    %vm3272 = vcmp.lt.s32.totalorder %v3250, 4
    %v3273 = vsel %vm3269, %v3253, %v3256
    %v3274 = vsel %vm3272, %v3262, 2102212464
    %v3275 = vsel %vm3271, %v3259, %v3274
    %v3276 = vsel %vm3270, %v3273, %v3275
    %v3277 = vsel %vm3269, %v3256, %v3259
    %v3278 = vsel %vm3272, %v3265, 920167782
    %v3279 = vsel %vm3271, %v3262, %v3278
    %v3280 = vsel %vm3270, %v3277, %v3279
    %v3281 = vsel %vm3269, %v3259, %v3262
    %v3282 = vsel %vm3272, %v3268, 1326507024
    %v3283 = vsel %vm3271, %v3265, %v3282
    %v3284 = vsel %vm3270, %v3281, %v3283
    %v3285 = vshll.u32 %v3245, 8
    %v3286 = vand.u32 %v3285, 65535
    %v3287 = vshrl.u32 %v3285, 16
    %v3288 = vand.u32 %v3284, 65535
    %v3289 = vshrl.u32 %v3284, 16
    %v3290 = vmul.u32 %v3286, %v3288
    %v3291 = vmul.u32 %v3286, %v3289
    %v3292 = vmul.u32 %v3287, %v3288
    %v3293 = vmul.u32 %v3287, %v3289
    %v3294 = vshll.u32 %v3291, 16
    %v3295 = vshrl.u32 %v3291, 16
    %v3296 = vshll.u32 %v3292, 16
    %v3297 = vshrl.u32 %v3292, 16
    %vm3298 = vc.u32 %v3290, %v3294
    %v3299 = vsel %vm3298, 1, 0
    %v3300 = vadd.s32 %v3290, %v3294
    %v3301 = vadd.s32 %v3293, %v3299
    %vm3302 = vc.u32 %v3300, %v3296
    %v3303 = vsel %vm3302, 1, 0
    %v3304 = vadd.s32 %v3300, %v3296
    %v3305 = vadd.s32 %v3301, %v3303
    %v3306 = vadd.s32 %v3305, %v3295
    %v3307 = vadd.s32 %v3306, %v3297
    %v3308 = vand.u32 %v3285, 65535
    %v3309 = vshrl.u32 %v3285, 16
    %v3310 = vand.u32 %v3280, 65535
    %v3311 = vshrl.u32 %v3280, 16
    %v3312 = vmul.u32 %v3308, %v3310
    %v3313 = vmul.u32 %v3308, %v3311
    %v3314 = vmul.u32 %v3309, %v3310
    %v3315 = vmul.u32 %v3309, %v3311
    %v3316 = vshll.u32 %v3313, 16
    %v3317 = vshrl.u32 %v3313, 16
    %v3318 = vshll.u32 %v3314, 16
    %v3319 = vshrl.u32 %v3314, 16
    %vm3320 = vc.u32 %v3312, %v3316
    %v3321 = vsel %vm3320, 1, 0
    %v3322 = vadd.s32 %v3312, %v3316
    %v3323 = vadd.s32 %v3315, %v3321
    %vm3324 = vc.u32 %v3322, %v3318
    %v3325 = vsel %vm3324, 1, 0
    %v3326 = vadd.s32 %v3322, %v3318
    %v3327 = vadd.s32 %v3323, %v3325
    %v3328 = vadd.s32 %v3327, %v3317
    %v3329 = vadd.s32 %v3328, %v3319
    %v3330 = vmul.u32 %v3285, %v3276
    %v3331 = vadd.s32 %v3307, %v3326
    %vm3332 = vc.u32 %v3307, %v3326
    %v3333 = vadd.s32 %v3329, 1
    %v3334 = vsel %vm3332, %v3333, %v3329
    %v3335 = vadd.s32 %v3330, %v3334
    %v3336 = vadd.s32 %v3335, 536870912
    %v3337 = vshrl.u32 %v3336, 30
    %v3338 = vshll.u32 %v3337, 30
    %v3339 = vsub.s32 %v3335, %v3338
    %vm3340 = vcmp.lt.s32.totalorder %v3339, 0
    %v3341 = vsub.s32 0, %v3339
    %v3342 = vsel %vm3340, %v3341, %v3339
    %v3343 = vclz %v3342
    %v3344 = vsub.s32 %v3343, 2
    %vm3345 = vcmp.gt.s32.totalorder 0, %v3344
    %v3346 = vsel %vm3345, 0, %v3344
    %v3347 = vsub.s32 32, %v3346
    %v3348 = vshll.u32 %v3339, %v3346
    %v3349 = vshrl.u32 %v3331, %v3347
    %v3350 = vor.u32 %v3348, %v3349
    %v3351 = vsub.s32 4294967266, %v3346
    %v3352 = vadd.s32 %v3351, 127
    %v3353 = vshll.u32 %v3352, 23
    %v3354 = vor.u32 4788187, %v3353
    %v3355 = vand.u32 2147483647, %v3354
    %v3357 = vcvt.s32.f32 %v3350
    %v3358 = vmul.f32 %v3357, %v3355
    %v3359 = vxor.u32 %v3358, 2147483648
    %v3360 = vsel %vm3239, %v3359, %v3358
    %v3361 = vsub.s32 4, %v3337
    %v3362 = vsel %vm3239, %v3361, %v3337
    %v3363 = vsel %vm3238, %v286, %v3360
    %v3364 = vsel %vm3238, 0, %v3362
    %v3365 = vmul.f32 %v3363, %v3363
    %v3366 = vmul.f32 %v3365, -0.001358992
    %v3367 = vadd.f32 %v3366, 0.041655596
    %v3368 = vmul.f32 %v3365, %v3367
    %v3369 = vadd.f32 %v3368, -0.4999988
    %v3370 = vmul.f32 %v3365, %v3369
    %v3371 = vadd.f32 1.0, %v3370
    %v3372 = vmul.f32 %v3363, %v3363
    %v3373 = vmul.f32 %v3372, -0.00019511016
    %v3374 = vadd.f32 %v3373, 0.008332121
    %v3375 = vmul.f32 %v3372, %v3374
    %v3376 = vadd.f32 %v3375, -0.16666654
    %v3377 = vmul.f32 %v3372, %v3376
    %v3378 = vadd.f32 %v3377, 1.0
    %v3379 = vmul.f32 %v3378, %v3363
    %vm3380 = vweird.f32 %v286
    %v3381 = vadd.s32 %v3364, 3
    %v3382 = vand.u32 %v3381, 3
    %vm3383 = vcmp.lt.s32.totalorder %v3382, 2
    %vm3384 = vcmp.eq.s32.totalorder %v3382, 0
    %v3385 = vxor.u32 %v3379, 2147483648
    %v3386 = vsel %vm3384, %v3371, %v3385
    %vm3387 = vcmp.eq.s32.totalorder %v3382, 2
    %v3388 = vxor.u32 %v3371, 2147483648
    %v3389 = vsel %vm3387, %v3388, %v3379
    %v3390 = vsel %vm3383, %v3386, %v3389
    %v3391 = vsel %vm3380, nan, %v3390
    %v3392 = vand.u32 2147483647, %v287
    %vm3393 = vcmp.le.f32.partialorder %v3392, 0.7853982
    %vm3394 = vcmp.lt.s32.totalorder %v287, 0
    %v3395 = vand.u32 %v287, 2139095040
    %v3396 = vshrl.u32 %v3395, 23
    %v3397 = vsub.s32 %v3396, 127
    %v3398 = vand.u32 2147483647, %v287
    %v3399 = vand.u32 %v3398, 8388607
    %v3400 = vor.u32 %v3399, 8388608
    %v3401 = vsub.s32 0, %v3400
    %v3402 = vadd.s32 %v3397, 1
    %vm3403 = vcmp.gt.s32.totalorder %v3402, 0
    %v3404 = vsel %vm3403, %v3402, 0
    %v3405 = vshrl.u32 %v3404, 5
    %v3406 = vand.u32 %v3404, 31
    %v3407 = vsub.s32 32, %v3406
    %v3408 = vshrl.u32 683565275, %v3407
    %v3409 = vshll.u32 683565275, %v3406
    %v3410 = vshrl.u32 2475754826, %v3407
    %v3411 = vor.u32 %v3409, %v3410
    %v3412 = vshll.u32 2475754826, %v3406
    %v3413 = vshrl.u32 2131351028, %v3407
    %v3414 = vor.u32 %v3412, %v3413
    %v3415 = vshll.u32 2131351028, %v3406
    %v3416 = vshrl.u32 2102212464, %v3407
    %v3417 = vor.u32 %v3415, %v3416
    %v3418 = vshll.u32 2102212464, %v3406
    %v3419 = vshrl.u32 920167782, %v3407
    %v3420 = vor.u32 %v3418, %v3419
    %v3421 = vshll.u32 920167782, %v3406
    %v3422 = vshrl.u32 1326507024, %v3407
    %v3423 = vor.u32 %v3421, %v3422
    %vm3424 = vcmp.lt.s32.totalorder %v3405, 1
    %vm3425 = vcmp.lt.s32.totalorder %v3405, 2
    %vm3426 = vcmp.lt.s32.totalorder %v3405, 3
    %vm3427 = vcmp.lt.s32.totalorder %v3405, 4
    %v3428 = vsel %vm3424, %v3408, %v3411
    %v3429 = vsel %vm3427, %v3417, 2102212464
    %v3430 = vsel %vm3426, %v3414, %v3429
    %v3431 = vsel %vm3425, %v3428, %v3430
    %v3432 = vsel %vm3424, %v3411, %v3414
    %v3433 = vsel %vm3427, %v3420, 920167782
    %v3434 = vsel %vm3426, %v3417, %v3433
    %v3435 = vsel %vm3425, %v3432, %v3434
    %v3436 = vsel %vm3424, %v3414, %v3417
    %v3437 = vsel %vm3427, %v3423, 1326507024
    %v3438 = vsel %vm3426, %v3420, %v3437
    %v3439 = vsel %vm3425, %v3436, %v3438
    %v3440 = vshll.u32 %v3400, 8
    %v3441 = vand.u32 %v3440, 65535
    %v3442 = vshrl.u32 %v3440, 16
    %v3443 = vand.u32 %v3439, 65535
    %v3444 = vshrl.u32 %v3439, 16
    %v3445 = vmul.u32 %v3441, %v3443
    %v3446 = vmul.u32 %v3441, %v3444
    %v3447 = vmul.u32 %v3442, %v3443
    %v3448 = vmul.u32 %v3442, %v3444
    %v3449 = vshll.u32 %v3446, 16
    %v3450 = vshrl.u32 %v3446, 16
    %v3451 = vshll.u32 %v3447, 16
    %v3452 = vshrl.u32 %v3447, 16
    %vm3453 = vc.u32 %v3445, %v3449
    %v3454 = vsel %vm3453, 1, 0
    %v3455 = vadd.s32 %v3445, %v3449
    %v3456 = vadd.s32 %v3448, %v3454
    %vm3457 = vc.u32 %v3455, %v3451
    %v3458 = vsel %vm3457, 1, 0
    %v3459 = vadd.s32 %v3455, %v3451
    %v3460 = vadd.s32 %v3456, %v3458
    %v3461 = vadd.s32 %v3460, %v3450
    %v3462 = vadd.s32 %v3461, %v3452
    %v3463 = vand.u32 %v3440, 65535
    %v3464 = vshrl.u32 %v3440, 16
    %v3465 = vand.u32 %v3435, 65535
    %v3466 = vshrl.u32 %v3435, 16
    %v3467 = vmul.u32 %v3463, %v3465
    %v3468 = vmul.u32 %v3463, %v3466
    %v3469 = vmul.u32 %v3464, %v3465
    %v3470 = vmul.u32 %v3464, %v3466
    %v3471 = vshll.u32 %v3468, 16
    %v3472 = vshrl.u32 %v3468, 16
    %v3473 = vshll.u32 %v3469, 16
    %v3474 = vshrl.u32 %v3469, 16
    %vm3475 = vc.u32 %v3467, %v3471
    %v3476 = vsel %vm3475, 1, 0
    %v3477 = vadd.s32 %v3467, %v3471
    %v3478 = vadd.s32 %v3470, %v3476
    %vm3479 = vc.u32 %v3477, %v3473
    %v3480 = vsel %vm3479, 1, 0
    %v3481 = vadd.s32 %v3477, %v3473
    %v3482 = vadd.s32 %v3478, %v3480
    %v3483 = vadd.s32 %v3482, %v3472
    %v3484 = vadd.s32 %v3483, %v3474
    %v3485 = vmul.u32 %v3440, %v3431
    %v3486 = vadd.s32 %v3462, %v3481
    %vm3487 = vc.u32 %v3462, %v3481
    %v3488 = vadd.s32 %v3484, 1
    %v3489 = vsel %vm3487, %v3488, %v3484
    %v3490 = vadd.s32 %v3485, %v3489
    %v3491 = vadd.s32 %v3490, 536870912
    %v3492 = vshrl.u32 %v3491, 30
    %v3493 = vshll.u32 %v3492, 30
    %v3494 = vsub.s32 %v3490, %v3493
    %vm3495 = vcmp.lt.s32.totalorder %v3494, 0
    %v3496 = vsub.s32 0, %v3494
    %v3497 = vsel %vm3495, %v3496, %v3494
    %v3498 = vclz %v3497
    %v3499 = vsub.s32 %v3498, 2
    %vm3500 = vcmp.gt.s32.totalorder 0, %v3499
    %v3501 = vsel %vm3500, 0, %v3499
    %v3502 = vsub.s32 32, %v3501
    %v3503 = vshll.u32 %v3494, %v3501
    %v3504 = vshrl.u32 %v3486, %v3502
    %v3505 = vor.u32 %v3503, %v3504
    %v3506 = vsub.s32 4294967266, %v3501
    %v3507 = vadd.s32 %v3506, 127
    %v3508 = vshll.u32 %v3507, 23
    %v3509 = vor.u32 4788187, %v3508
    %v3510 = vand.u32 2147483647, %v3509
    %v3512 = vcvt.s32.f32 %v3505
    %v3513 = vmul.f32 %v3512, %v3510
    %v3514 = vxor.u32 %v3513, 2147483648
    %v3515 = vsel %vm3394, %v3514, %v3513
    %v3516 = vsub.s32 4, %v3492
    %v3517 = vsel %vm3394, %v3516, %v3492
    %v3518 = vsel %vm3393, %v287, %v3515
    %v3519 = vsel %vm3393, 0, %v3517
    %v3520 = vmul.f32 %v3518, %v3518
    %v3521 = vmul.f32 %v3520, -0.001358992
    %v3522 = vadd.f32 %v3521, 0.041655596
    %v3523 = vmul.f32 %v3520, %v3522
    %v3524 = vadd.f32 %v3523, -0.4999988
    %v3525 = vmul.f32 %v3520, %v3524
    %v3526 = vadd.f32 1.0, %v3525
    %v3527 = vmul.f32 %v3518, %v3518
    %v3528 = vmul.f32 %v3527, -0.00019511016
    %v3529 = vadd.f32 %v3528, 0.008332121
    %v3530 = vmul.f32 %v3527, %v3529
    %v3531 = vadd.f32 %v3530, -0.16666654
    %v3532 = vmul.f32 %v3527, %v3531
    %v3533 = vadd.f32 %v3532, 1.0
    %v3534 = vmul.f32 %v3533, %v3518
    %vm3535 = vweird.f32 %v287
    %v3536 = vadd.s32 %v3519, 3
    %v3537 = vand.u32 %v3536, 3
    %vm3538 = vcmp.lt.s32.totalorder %v3537, 2
    %vm3539 = vcmp.eq.s32.totalorder %v3537, 0
    %v3540 = vxor.u32 %v3534, 2147483648
    %v3541 = vsel %vm3539, %v3526, %v3540
    %vm3542 = vcmp.eq.s32.totalorder %v3537, 2
    %v3543 = vxor.u32 %v3526, 2147483648
    %v3544 = vsel %vm3542, %v3543, %v3534
    %v3545 = vsel %vm3538, %v3541, %v3544
    %v3546 = vsel %vm3535, nan, %v3545
    %v3547 = vand.u32 2147483647, %v288
    %vm3548 = vcmp.le.f32.partialorder %v3547, 0.7853982
    %vm3549 = vcmp.lt.s32.totalorder %v288, 0
    %v3550 = vand.u32 %v288, 2139095040
    %v3551 = vshrl.u32 %v3550, 23
    %v3552 = vsub.s32 %v3551, 127
    %v3553 = vand.u32 2147483647, %v288
    %v3554 = vand.u32 %v3553, 8388607
    %v3555 = vor.u32 %v3554, 8388608
    %v3556 = vsub.s32 0, %v3555
    %v3557 = vadd.s32 %v3552, 1
    %vm3558 = vcmp.gt.s32.totalorder %v3557, 0
    %v3559 = vsel %vm3558, %v3557, 0
    %v3560 = vshrl.u32 %v3559, 5
    %v3561 = vand.u32 %v3559, 31
    %v3562 = vsub.s32 32, %v3561
    %v3563 = vshrl.u32 683565275, %v3562
    %v3564 = vshll.u32 683565275, %v3561
    %v3565 = vshrl.u32 2475754826, %v3562
    %v3566 = vor.u32 %v3564, %v3565
    %v3567 = vshll.u32 2475754826, %v3561
    %v3568 = vshrl.u32 2131351028, %v3562
    %v3569 = vor.u32 %v3567, %v3568
    %v3570 = vshll.u32 2131351028, %v3561
    %v3571 = vshrl.u32 2102212464, %v3562
    %v3572 = vor.u32 %v3570, %v3571
    %v3573 = vshll.u32 2102212464, %v3561
    %v3574 = vshrl.u32 920167782, %v3562
    %v3575 = vor.u32 %v3573, %v3574
    %v3576 = vshll.u32 920167782, %v3561
    %v3577 = vshrl.u32 1326507024, %v3562
    %v3578 = vor.u32 %v3576, %v3577
    %vm3579 = vcmp.lt.s32.totalorder %v3560, 1
    %vm3580 = vcmp.lt.s32.totalorder %v3560, 2
    %vm3581 = vcmp.lt.s32.totalorder %v3560, 3
    %vm3582 = vcmp.lt.s32.totalorder %v3560, 4
    %v3583 = vsel %vm3579, %v3563, %v3566
    %v3584 = vsel %vm3582, %v3572, 2102212464
    %v3585 = vsel %vm3581, %v3569, %v3584
    %v3586 = vsel %vm3580, %v3583, %v3585
    %v3587 = vsel %vm3579, %v3566, %v3569
    %v3588 = vsel %vm3582, %v3575, 920167782
    %v3589 = vsel %vm3581, %v3572, %v3588
    %v3590 = vsel %vm3580, %v3587, %v3589
    %v3591 = vsel %vm3579, %v3569, %v3572
    %v3592 = vsel %vm3582, %v3578, 1326507024
    %v3593 = vsel %vm3581, %v3575, %v3592
    %v3594 = vsel %vm3580, %v3591, %v3593
    %v3595 = vshll.u32 %v3555, 8
    %v3596 = vand.u32 %v3595, 65535
    %v3597 = vshrl.u32 %v3595, 16
    %v3598 = vand.u32 %v3594, 65535
    %v3599 = vshrl.u32 %v3594, 16
    %v3600 = vmul.u32 %v3596, %v3598
    %v3601 = vmul.u32 %v3596, %v3599
    %v3602 = vmul.u32 %v3597, %v3598
    %v3603 = vmul.u32 %v3597, %v3599
    %v3604 = vshll.u32 %v3601, 16
    %v3605 = vshrl.u32 %v3601, 16
    %v3606 = vshll.u32 %v3602, 16
    %v3607 = vshrl.u32 %v3602, 16
    %vm3608 = vc.u32 %v3600, %v3604
    %v3609 = vsel %vm3608, 1, 0
    %v3610 = vadd.s32 %v3600, %v3604
    %v3611 = vadd.s32 %v3603, %v3609
    %vm3612 = vc.u32 %v3610, %v3606
    %v3613 = vsel %vm3612, 1, 0
    %v3614 = vadd.s32 %v3610, %v3606
    %v3615 = vadd.s32 %v3611, %v3613
    %v3616 = vadd.s32 %v3615, %v3605
    %v3617 = vadd.s32 %v3616, %v3607
    %v3618 = vand.u32 %v3595, 65535
    %v3619 = vshrl.u32 %v3595, 16
    %v3620 = vand.u32 %v3590, 65535
    %v3621 = vshrl.u32 %v3590, 16
    %v3622 = vmul.u32 %v3618, %v3620
    %v3623 = vmul.u32 %v3618, %v3621
    %v3624 = vmul.u32 %v3619, %v3620
    %v3625 = vmul.u32 %v3619, %v3621
    %v3626 = vshll.u32 %v3623, 16
    %v3627 = vshrl.u32 %v3623, 16
    %v3628 = vshll.u32 %v3624, 16
    %v3629 = vshrl.u32 %v3624, 16
    %vm3630 = vc.u32 %v3622, %v3626
    %v3631 = vsel %vm3630, 1, 0
    %v3632 = vadd.s32 %v3622, %v3626
    %v3633 = vadd.s32 %v3625, %v3631
    %vm3634 = vc.u32 %v3632, %v3628
    %v3635 = vsel %vm3634, 1, 0
    %v3636 = vadd.s32 %v3632, %v3628
    %v3637 = vadd.s32 %v3633, %v3635
    %v3638 = vadd.s32 %v3637, %v3627
    %v3639 = vadd.s32 %v3638, %v3629
    %v3640 = vmul.u32 %v3595, %v3586
    %v3641 = vadd.s32 %v3617, %v3636
    %vm3642 = vc.u32 %v3617, %v3636
    %v3643 = vadd.s32 %v3639, 1
    %v3644 = vsel %vm3642, %v3643, %v3639
    %v3645 = vadd.s32 %v3640, %v3644
    %v3646 = vadd.s32 %v3645, 536870912
    %v3647 = vshrl.u32 %v3646, 30
    %v3648 = vshll.u32 %v3647, 30
    %v3649 = vsub.s32 %v3645, %v3648
    %vm3650 = vcmp.lt.s32.totalorder %v3649, 0
    %v3651 = vsub.s32 0, %v3649
    %v3652 = vsel %vm3650, %v3651, %v3649
    %v3653 = vclz %v3652
    %v3654 = vsub.s32 %v3653, 2
    %vm3655 = vcmp.gt.s32.totalorder 0, %v3654
    %v3656 = vsel %vm3655, 0, %v3654
    %v3657 = vsub.s32 32, %v3656
    %v3658 = vshll.u32 %v3649, %v3656
    %v3659 = vshrl.u32 %v3641, %v3657
    %v3660 = vor.u32 %v3658, %v3659
    %v3661 = vsub.s32 4294967266, %v3656
    %v3662 = vadd.s32 %v3661, 127
    %v3663 = vshll.u32 %v3662, 23
    %v3664 = vor.u32 4788187, %v3663
    %v3665 = vand.u32 2147483647, %v3664
    %v3667 = vcvt.s32.f32 %v3660
    %v3668 = vmul.f32 %v3667, %v3665
    %v3669 = vxor.u32 %v3668, 2147483648
    %v3670 = vsel %vm3549, %v3669, %v3668
    %v3671 = vsub.s32 4, %v3647
    %v3672 = vsel %vm3549, %v3671, %v3647
    %v3673 = vsel %vm3548, %v288, %v3670
    %v3674 = vsel %vm3548, 0, %v3672
    %v3675 = vmul.f32 %v3673, %v3673
    %v3676 = vmul.f32 %v3675, -0.001358992
    %v3677 = vadd.f32 %v3676, 0.041655596
    %v3678 = vmul.f32 %v3675, %v3677
    %v3679 = vadd.f32 %v3678, -0.4999988
    %v3680 = vmul.f32 %v3675, %v3679
    %v3681 = vadd.f32 1.0, %v3680
    %v3682 = vmul.f32 %v3673, %v3673
    %v3683 = vmul.f32 %v3682, -0.00019511016
    %v3684 = vadd.f32 %v3683, 0.008332121
    %v3685 = vmul.f32 %v3682, %v3684
    %v3686 = vadd.f32 %v3685, -0.16666654
    %v3687 = vmul.f32 %v3682, %v3686
    %v3688 = vadd.f32 %v3687, 1.0
    %v3689 = vmul.f32 %v3688, %v3673
    %vm3690 = vweird.f32 %v288
    %v3691 = vadd.s32 %v3674, 3
    %v3692 = vand.u32 %v3691, 3
    %vm3693 = vcmp.lt.s32.totalorder %v3692, 2
    %vm3694 = vcmp.eq.s32.totalorder %v3692, 0
    %v3695 = vxor.u32 %v3689, 2147483648
    %v3696 = vsel %vm3694, %v3681, %v3695
    %vm3697 = vcmp.eq.s32.totalorder %v3692, 2
    %v3698 = vxor.u32 %v3681, 2147483648
    %v3699 = vsel %vm3697, %v3698, %v3689
    %v3700 = vsel %vm3693, %v3696, %v3699
    %v3701 = vsel %vm3690, nan, %v3700
    %v3702 = vand.u32 2147483647, %v289
    %vm3703 = vcmp.le.f32.partialorder %v3702, 0.7853982
    %vm3704 = vcmp.lt.s32.totalorder %v289, 0
    %v3705 = vand.u32 %v289, 2139095040
    %v3706 = vshrl.u32 %v3705, 23
    %v3707 = vsub.s32 %v3706, 127
    %v3708 = vand.u32 2147483647, %v289
    %v3709 = vand.u32 %v3708, 8388607
    %v3710 = vor.u32 %v3709, 8388608
    %v3711 = vsub.s32 0, %v3710
    %v3712 = vadd.s32 %v3707, 1
    %vm3713 = vcmp.gt.s32.totalorder %v3712, 0
    %v3714 = vsel %vm3713, %v3712, 0
    %v3715 = vshrl.u32 %v3714, 5
    %v3716 = vand.u32 %v3714, 31
    %v3717 = vsub.s32 32, %v3716
    %v3718 = vshrl.u32 683565275, %v3717
    %v3719 = vshll.u32 683565275, %v3716
    %v3720 = vshrl.u32 2475754826, %v3717
    %v3721 = vor.u32 %v3719, %v3720
    %v3722 = vshll.u32 2475754826, %v3716
    %v3723 = vshrl.u32 2131351028, %v3717
    %v3724 = vor.u32 %v3722, %v3723
    %v3725 = vshll.u32 2131351028, %v3716
    %v3726 = vshrl.u32 2102212464, %v3717
    %v3727 = vor.u32 %v3725, %v3726
    %v3728 = vshll.u32 2102212464, %v3716
    %v3729 = vshrl.u32 920167782, %v3717
    %v3730 = vor.u32 %v3728, %v3729
    %v3731 = vshll.u32 920167782, %v3716
    %v3732 = vshrl.u32 1326507024, %v3717
    %v3733 = vor.u32 %v3731, %v3732
    %vm3734 = vcmp.lt.s32.totalorder %v3715, 1
    %vm3735 = vcmp.lt.s32.totalorder %v3715, 2
    %vm3736 = vcmp.lt.s32.totalorder %v3715, 3
    %vm3737 = vcmp.lt.s32.totalorder %v3715, 4
    %v3738 = vsel %vm3734, %v3718, %v3721
    %v3739 = vsel %vm3737, %v3727, 2102212464
    %v3740 = vsel %vm3736, %v3724, %v3739
    %v3741 = vsel %vm3735, %v3738, %v3740
    %v3742 = vsel %vm3734, %v3721, %v3724
    %v3743 = vsel %vm3737, %v3730, 920167782
    %v3744 = vsel %vm3736, %v3727, %v3743
    %v3745 = vsel %vm3735, %v3742, %v3744
    %v3746 = vsel %vm3734, %v3724, %v3727
    %v3747 = vsel %vm3737, %v3733, 1326507024
    %v3748 = vsel %vm3736, %v3730, %v3747
    %v3749 = vsel %vm3735, %v3746, %v3748
    %v3750 = vshll.u32 %v3710, 8
    %v3751 = vand.u32 %v3750, 65535
    %v3752 = vshrl.u32 %v3750, 16
    %v3753 = vand.u32 %v3749, 65535
    %v3754 = vshrl.u32 %v3749, 16
    %v3755 = vmul.u32 %v3751, %v3753
    %v3756 = vmul.u32 %v3751, %v3754
    %v3757 = vmul.u32 %v3752, %v3753
    %v3758 = vmul.u32 %v3752, %v3754
    %v3759 = vshll.u32 %v3756, 16
    %v3760 = vshrl.u32 %v3756, 16
    %v3761 = vshll.u32 %v3757, 16
    %v3762 = vshrl.u32 %v3757, 16
    %vm3763 = vc.u32 %v3755, %v3759
    %v3764 = vsel %vm3763, 1, 0
    %v3765 = vadd.s32 %v3755, %v3759
    %v3766 = vadd.s32 %v3758, %v3764
    %vm3767 = vc.u32 %v3765, %v3761
    %v3768 = vsel %vm3767, 1, 0
    %v3769 = vadd.s32 %v3765, %v3761
    %v3770 = vadd.s32 %v3766, %v3768
    %v3771 = vadd.s32 %v3770, %v3760
    %v3772 = vadd.s32 %v3771, %v3762
    %v3773 = vand.u32 %v3750, 65535
    %v3774 = vshrl.u32 %v3750, 16
    %v3775 = vand.u32 %v3745, 65535
    %v3776 = vshrl.u32 %v3745, 16
    %v3777 = vmul.u32 %v3773, %v3775
    %v3778 = vmul.u32 %v3773, %v3776
    %v3779 = vmul.u32 %v3774, %v3775
    %v3780 = vmul.u32 %v3774, %v3776
    %v3781 = vshll.u32 %v3778, 16
    %v3782 = vshrl.u32 %v3778, 16
    %v3783 = vshll.u32 %v3779, 16
    %v3784 = vshrl.u32 %v3779, 16
    %vm3785 = vc.u32 %v3777, %v3781
    %v3786 = vsel %vm3785, 1, 0
    %v3787 = vadd.s32 %v3777, %v3781
    %v3788 = vadd.s32 %v3780, %v3786
    %vm3789 = vc.u32 %v3787, %v3783
    %v3790 = vsel %vm3789, 1, 0
    %v3791 = vadd.s32 %v3787, %v3783
    %v3792 = vadd.s32 %v3788, %v3790
    %v3793 = vadd.s32 %v3792, %v3782
    %v3794 = vadd.s32 %v3793, %v3784
    %v3795 = vmul.u32 %v3750, %v3741
    %v3796 = vadd.s32 %v3772, %v3791
    %vm3797 = vc.u32 %v3772, %v3791
    %v3798 = vadd.s32 %v3794, 1
    %v3799 = vsel %vm3797, %v3798, %v3794
    %v3800 = vadd.s32 %v3795, %v3799
    %v3801 = vadd.s32 %v3800, 536870912
    %v3802 = vshrl.u32 %v3801, 30
    %v3803 = vshll.u32 %v3802, 30
    %v3804 = vsub.s32 %v3800, %v3803
    %vm3805 = vcmp.lt.s32.totalorder %v3804, 0
    %v3806 = vsub.s32 0, %v3804
    %v3807 = vsel %vm3805, %v3806, %v3804
    %v3808 = vclz %v3807
    %v3809 = vsub.s32 %v3808, 2
    %vm3810 = vcmp.gt.s32.totalorder 0, %v3809
    %v3811 = vsel %vm3810, 0, %v3809
    %v3812 = vsub.s32 32, %v3811
    %v3813 = vshll.u32 %v3804, %v3811
    %v3814 = vshrl.u32 %v3796, %v3812
    %v3815 = vor.u32 %v3813, %v3814
    %v3816 = vsub.s32 4294967266, %v3811
    %v3817 = vadd.s32 %v3816, 127
    %v3818 = vshll.u32 %v3817, 23
    %v3819 = vor.u32 4788187, %v3818
    %v3820 = vand.u32 2147483647, %v3819
    %v3822 = vcvt.s32.f32 %v3815
    %v3823 = vmul.f32 %v3822, %v3820
    %v3824 = vxor.u32 %v3823, 2147483648
    %v3825 = vsel %vm3704, %v3824, %v3823
    %v3826 = vsub.s32 4, %v3802
    %v3827 = vsel %vm3704, %v3826, %v3802
    %v3828 = vsel %vm3703, %v289, %v3825
    %v3829 = vsel %vm3703, 0, %v3827
    %v3830 = vmul.f32 %v3828, %v3828
    %v3831 = vmul.f32 %v3830, -0.001358992
    %v3832 = vadd.f32 %v3831, 0.041655596
    %v3833 = vmul.f32 %v3830, %v3832
    %v3834 = vadd.f32 %v3833, -0.4999988
    %v3835 = vmul.f32 %v3830, %v3834
    %v3836 = vadd.f32 1.0, %v3835
    %v3837 = vmul.f32 %v3828, %v3828
    %v3838 = vmul.f32 %v3837, -0.00019511016
    %v3839 = vadd.f32 %v3838, 0.008332121
    %v3840 = vmul.f32 %v3837, %v3839
    %v3841 = vadd.f32 %v3840, -0.16666654
    %v3842 = vmul.f32 %v3837, %v3841
    %v3843 = vadd.f32 %v3842, 1.0
    %v3844 = vmul.f32 %v3843, %v3828
    %vm3845 = vweird.f32 %v289
    %v3846 = vadd.s32 %v3829, 3
    %v3847 = vand.u32 %v3846, 3
    %vm3848 = vcmp.lt.s32.totalorder %v3847, 2
    %vm3849 = vcmp.eq.s32.totalorder %v3847, 0
    %v3850 = vxor.u32 %v3844, 2147483648
    %v3851 = vsel %vm3849, %v3836, %v3850
    %vm3852 = vcmp.eq.s32.totalorder %v3847, 2
    %v3853 = vxor.u32 %v3836, 2147483648
    %v3854 = vsel %vm3852, %v3853, %v3844
    %v3855 = vsel %vm3848, %v3851, %v3854
    %v3856 = vsel %vm3845, nan, %v3855
    %v3857 = vand.u32 2147483647, %v290
    %vm3858 = vcmp.le.f32.partialorder %v3857, 0.7853982
    %vm3859 = vcmp.lt.s32.totalorder %v290, 0
    %v3860 = vand.u32 %v290, 2139095040
    %v3861 = vshrl.u32 %v3860, 23
    %v3862 = vsub.s32 %v3861, 127
    %v3863 = vand.u32 2147483647, %v290
    %v3864 = vand.u32 %v3863, 8388607
    %v3865 = vor.u32 %v3864, 8388608
    %v3866 = vsub.s32 0, %v3865
    %v3867 = vadd.s32 %v3862, 1
    %vm3868 = vcmp.gt.s32.totalorder %v3867, 0
    %v3869 = vsel %vm3868, %v3867, 0
    %v3870 = vshrl.u32 %v3869, 5
    %v3871 = vand.u32 %v3869, 31
    %v3872 = vsub.s32 32, %v3871
    %v3873 = vshrl.u32 683565275, %v3872
    %v3874 = vshll.u32 683565275, %v3871
    %v3875 = vshrl.u32 2475754826, %v3872
    %v3876 = vor.u32 %v3874, %v3875
    %v3877 = vshll.u32 2475754826, %v3871
    %v3878 = vshrl.u32 2131351028, %v3872
    %v3879 = vor.u32 %v3877, %v3878
    %v3880 = vshll.u32 2131351028, %v3871
    %v3881 = vshrl.u32 2102212464, %v3872
    %v3882 = vor.u32 %v3880, %v3881
    %v3883 = vshll.u32 2102212464, %v3871
    %v3884 = vshrl.u32 920167782, %v3872
    %v3885 = vor.u32 %v3883, %v3884
    %v3886 = vshll.u32 920167782, %v3871
    %v3887 = vshrl.u32 1326507024, %v3872
    %v3888 = vor.u32 %v3886, %v3887
    %vm3889 = vcmp.lt.s32.totalorder %v3870, 1
    %vm3890 = vcmp.lt.s32.totalorder %v3870, 2
    %vm3891 = vcmp.lt.s32.totalorder %v3870, 3
    %vm3892 = vcmp.lt.s32.totalorder %v3870, 4
    %v3893 = vsel %vm3889, %v3873, %v3876
    %v3894 = vsel %vm3892, %v3882, 2102212464
    %v3895 = vsel %vm3891, %v3879, %v3894
    %v3896 = vsel %vm3890, %v3893, %v3895
    %v3897 = vsel %vm3889, %v3876, %v3879
    %v3898 = vsel %vm3892, %v3885, 920167782
    %v3899 = vsel %vm3891, %v3882, %v3898
    %v3900 = vsel %vm3890, %v3897, %v3899
    %v3901 = vsel %vm3889, %v3879, %v3882
    %v3902 = vsel %vm3892, %v3888, 1326507024
    %v3903 = vsel %vm3891, %v3885, %v3902
    %v3904 = vsel %vm3890, %v3901, %v3903
    %v3905 = vshll.u32 %v3865, 8
    %v3906 = vand.u32 %v3905, 65535
    %v3907 = vshrl.u32 %v3905, 16
    %v3908 = vand.u32 %v3904, 65535
    %v3909 = vshrl.u32 %v3904, 16
    %v3910 = vmul.u32 %v3906, %v3908
    %v3911 = vmul.u32 %v3906, %v3909
    %v3912 = vmul.u32 %v3907, %v3908
    %v3913 = vmul.u32 %v3907, %v3909
    %v3914 = vshll.u32 %v3911, 16
    %v3915 = vshrl.u32 %v3911, 16
    %v3916 = vshll.u32 %v3912, 16
    %v3917 = vshrl.u32 %v3912, 16
    %vm3918 = vc.u32 %v3910, %v3914
    %v3919 = vsel %vm3918, 1, 0
    %v3920 = vadd.s32 %v3910, %v3914
    %v3921 = vadd.s32 %v3913, %v3919
    %vm3922 = vc.u32 %v3920, %v3916
    %v3923 = vsel %vm3922, 1, 0
    %v3924 = vadd.s32 %v3920, %v3916
    %v3925 = vadd.s32 %v3921, %v3923
    %v3926 = vadd.s32 %v3925, %v3915
    %v3927 = vadd.s32 %v3926, %v3917
    %v3928 = vand.u32 %v3905, 65535
    %v3929 = vshrl.u32 %v3905, 16
    %v3930 = vand.u32 %v3900, 65535
    %v3931 = vshrl.u32 %v3900, 16
    %v3932 = vmul.u32 %v3928, %v3930
    %v3933 = vmul.u32 %v3928, %v3931
    %v3934 = vmul.u32 %v3929, %v3930
    %v3935 = vmul.u32 %v3929, %v3931
    %v3936 = vshll.u32 %v3933, 16
    %v3937 = vshrl.u32 %v3933, 16
    %v3938 = vshll.u32 %v3934, 16
    %v3939 = vshrl.u32 %v3934, 16
    %vm3940 = vc.u32 %v3932, %v3936
    %v3941 = vsel %vm3940, 1, 0
    %v3942 = vadd.s32 %v3932, %v3936
    %v3943 = vadd.s32 %v3935, %v3941
    %vm3944 = vc.u32 %v3942, %v3938
    %v3945 = vsel %vm3944, 1, 0
    %v3946 = vadd.s32 %v3942, %v3938
    %v3947 = vadd.s32 %v3943, %v3945
    %v3948 = vadd.s32 %v3947, %v3937
    %v3949 = vadd.s32 %v3948, %v3939
    %v3950 = vmul.u32 %v3905, %v3896
    %v3951 = vadd.s32 %v3927, %v3946
    %vm3952 = vc.u32 %v3927, %v3946
    %v3953 = vadd.s32 %v3949, 1
    %v3954 = vsel %vm3952, %v3953, %v3949
    %v3955 = vadd.s32 %v3950, %v3954
    %v3956 = vadd.s32 %v3955, 536870912
    %v3957 = vshrl.u32 %v3956, 30
    %v3958 = vshll.u32 %v3957, 30
    %v3959 = vsub.s32 %v3955, %v3958
    %vm3960 = vcmp.lt.s32.totalorder %v3959, 0
    %v3961 = vsub.s32 0, %v3959
    %v3962 = vsel %vm3960, %v3961, %v3959
    %v3963 = vclz %v3962
    %v3964 = vsub.s32 %v3963, 2
    %vm3965 = vcmp.gt.s32.totalorder 0, %v3964
    %v3966 = vsel %vm3965, 0, %v3964
    %v3967 = vsub.s32 32, %v3966
    %v3968 = vshll.u32 %v3959, %v3966
    %v3969 = vshrl.u32 %v3951, %v3967
    %v3970 = vor.u32 %v3968, %v3969
    %v3971 = vsub.s32 4294967266, %v3966
    %v3972 = vadd.s32 %v3971, 127
    %v3973 = vshll.u32 %v3972, 23
    %v3974 = vor.u32 4788187, %v3973
    %v3975 = vand.u32 2147483647, %v3974
    %v3977 = vcvt.s32.f32 %v3970
    %v3978 = vmul.f32 %v3977, %v3975
    %v3979 = vxor.u32 %v3978, 2147483648
    %v3980 = vsel %vm3859, %v3979, %v3978
    %v3981 = vsub.s32 4, %v3957
    %v3982 = vsel %vm3859, %v3981, %v3957
    %v3983 = vsel %vm3858, %v290, %v3980
    %v3984 = vsel %vm3858, 0, %v3982
    %v3985 = vmul.f32 %v3983, %v3983
    %v3986 = vmul.f32 %v3985, -0.001358992
    %v3987 = vadd.f32 %v3986, 0.041655596
    %v3988 = vmul.f32 %v3985, %v3987
    %v3989 = vadd.f32 %v3988, -0.4999988
    %v3990 = vmul.f32 %v3985, %v3989
    %v3991 = vadd.f32 1.0, %v3990
    %v3992 = vmul.f32 %v3983, %v3983
    %v3993 = vmul.f32 %v3992, -0.00019511016
    %v3994 = vadd.f32 %v3993, 0.008332121
    %v3995 = vmul.f32 %v3992, %v3994
    %v3996 = vadd.f32 %v3995, -0.16666654
    %v3997 = vmul.f32 %v3992, %v3996
    %v3998 = vadd.f32 %v3997, 1.0
    %v3999 = vmul.f32 %v3998, %v3983
    %vm4000 = vweird.f32 %v290
    %v4001 = vadd.s32 %v3984, 3
    %v4002 = vand.u32 %v4001, 3
    %vm4003 = vcmp.lt.s32.totalorder %v4002, 2
    %vm4004 = vcmp.eq.s32.totalorder %v4002, 0
    %v4005 = vxor.u32 %v3999, 2147483648
    %v4006 = vsel %vm4004, %v3991, %v4005
    %vm4007 = vcmp.eq.s32.totalorder %v4002, 2
    %v4008 = vxor.u32 %v3991, 2147483648
    %v4009 = vsel %vm4007, %v4008, %v3999
    %v4010 = vsel %vm4003, %v4006, %v4009
    %v4011 = vsel %vm4000, nan, %v4010
    %v4012 = vand.u32 2147483647, %v291
    %vm4013 = vcmp.le.f32.partialorder %v4012, 0.7853982
    %vm4014 = vcmp.lt.s32.totalorder %v291, 0
    %v4015 = vand.u32 %v291, 2139095040
    %v4016 = vshrl.u32 %v4015, 23
    %v4017 = vsub.s32 %v4016, 127
    %v4018 = vand.u32 2147483647, %v291
    %v4019 = vand.u32 %v4018, 8388607
    %v4020 = vor.u32 %v4019, 8388608
    %v4021 = vsub.s32 0, %v4020
    %v4022 = vadd.s32 %v4017, 1
    %vm4023 = vcmp.gt.s32.totalorder %v4022, 0
    %v4024 = vsel %vm4023, %v4022, 0
    %v4025 = vshrl.u32 %v4024, 5
    %v4026 = vand.u32 %v4024, 31
    %v4027 = vsub.s32 32, %v4026
    %v4028 = vshrl.u32 683565275, %v4027
    %v4029 = vshll.u32 683565275, %v4026
    %v4030 = vshrl.u32 2475754826, %v4027
    %v4031 = vor.u32 %v4029, %v4030
    %v4032 = vshll.u32 2475754826, %v4026
    %v4033 = vshrl.u32 2131351028, %v4027
    %v4034 = vor.u32 %v4032, %v4033
    %v4035 = vshll.u32 2131351028, %v4026
    %v4036 = vshrl.u32 2102212464, %v4027
    %v4037 = vor.u32 %v4035, %v4036
    %v4038 = vshll.u32 2102212464, %v4026
    %v4039 = vshrl.u32 920167782, %v4027
    %v4040 = vor.u32 %v4038, %v4039
    %v4041 = vshll.u32 920167782, %v4026
    %v4042 = vshrl.u32 1326507024, %v4027
    %v4043 = vor.u32 %v4041, %v4042
    %vm4044 = vcmp.lt.s32.totalorder %v4025, 1
    %vm4045 = vcmp.lt.s32.totalorder %v4025, 2
    %vm4046 = vcmp.lt.s32.totalorder %v4025, 3
    %vm4047 = vcmp.lt.s32.totalorder %v4025, 4
    %v4048 = vsel %vm4044, %v4028, %v4031
    %v4049 = vsel %vm4047, %v4037, 2102212464
    %v4050 = vsel %vm4046, %v4034, %v4049
    %v4051 = vsel %vm4045, %v4048, %v4050
    %v4052 = vsel %vm4044, %v4031, %v4034
    %v4053 = vsel %vm4047, %v4040, 920167782
    %v4054 = vsel %vm4046, %v4037, %v4053
    %v4055 = vsel %vm4045, %v4052, %v4054
    %v4056 = vsel %vm4044, %v4034, %v4037
    %v4057 = vsel %vm4047, %v4043, 1326507024
    %v4058 = vsel %vm4046, %v4040, %v4057
    %v4059 = vsel %vm4045, %v4056, %v4058
    %v4060 = vshll.u32 %v4020, 8
    %v4061 = vand.u32 %v4060, 65535
    %v4062 = vshrl.u32 %v4060, 16
    %v4063 = vand.u32 %v4059, 65535
    %v4064 = vshrl.u32 %v4059, 16
    %v4065 = vmul.u32 %v4061, %v4063
    %v4066 = vmul.u32 %v4061, %v4064
    %v4067 = vmul.u32 %v4062, %v4063
    %v4068 = vmul.u32 %v4062, %v4064
    %v4069 = vshll.u32 %v4066, 16
    %v4070 = vshrl.u32 %v4066, 16
    %v4071 = vshll.u32 %v4067, 16
    %v4072 = vshrl.u32 %v4067, 16
    %vm4073 = vc.u32 %v4065, %v4069
    %v4074 = vsel %vm4073, 1, 0
    %v4075 = vadd.s32 %v4065, %v4069
    %v4076 = vadd.s32 %v4068, %v4074
    %vm4077 = vc.u32 %v4075, %v4071
    %v4078 = vsel %vm4077, 1, 0
    %v4079 = vadd.s32 %v4075, %v4071
    %v4080 = vadd.s32 %v4076, %v4078
    %v4081 = vadd.s32 %v4080, %v4070
    %v4082 = vadd.s32 %v4081, %v4072
    %v4083 = vand.u32 %v4060, 65535
    %v4084 = vshrl.u32 %v4060, 16
    %v4085 = vand.u32 %v4055, 65535
    %v4086 = vshrl.u32 %v4055, 16
    %v4087 = vmul.u32 %v4083, %v4085
    %v4088 = vmul.u32 %v4083, %v4086
    %v4089 = vmul.u32 %v4084, %v4085
    %v4090 = vmul.u32 %v4084, %v4086
    %v4091 = vshll.u32 %v4088, 16
    %v4092 = vshrl.u32 %v4088, 16
    %v4093 = vshll.u32 %v4089, 16
    %v4094 = vshrl.u32 %v4089, 16
    %vm4095 = vc.u32 %v4087, %v4091
    %v4096 = vsel %vm4095, 1, 0
    %v4097 = vadd.s32 %v4087, %v4091
    %v4098 = vadd.s32 %v4090, %v4096
    %vm4099 = vc.u32 %v4097, %v4093
    %v4100 = vsel %vm4099, 1, 0
    %v4101 = vadd.s32 %v4097, %v4093
    %v4102 = vadd.s32 %v4098, %v4100
    %v4103 = vadd.s32 %v4102, %v4092
    %v4104 = vadd.s32 %v4103, %v4094
    %v4105 = vmul.u32 %v4060, %v4051
    %v4106 = vadd.s32 %v4082, %v4101
    %vm4107 = vc.u32 %v4082, %v4101
    %v4108 = vadd.s32 %v4104, 1
    %v4109 = vsel %vm4107, %v4108, %v4104
    %v4110 = vadd.s32 %v4105, %v4109
    %v4111 = vadd.s32 %v4110, 536870912
    %v4112 = vshrl.u32 %v4111, 30
    %v4113 = vshll.u32 %v4112, 30
    %v4114 = vsub.s32 %v4110, %v4113
    %vm4115 = vcmp.lt.s32.totalorder %v4114, 0
    %v4116 = vsub.s32 0, %v4114
    %v4117 = vsel %vm4115, %v4116, %v4114
    %v4118 = vclz %v4117
    %v4119 = vsub.s32 %v4118, 2
    %vm4120 = vcmp.gt.s32.totalorder 0, %v4119
    %v4121 = vsel %vm4120, 0, %v4119
    %v4122 = vsub.s32 32, %v4121
    %v4123 = vshll.u32 %v4114, %v4121
    %v4124 = vshrl.u32 %v4106, %v4122
    %v4125 = vor.u32 %v4123, %v4124
    %v4126 = vsub.s32 4294967266, %v4121
    %v4127 = vadd.s32 %v4126, 127
    %v4128 = vshll.u32 %v4127, 23
    %v4129 = vor.u32 4788187, %v4128
    %v4130 = vand.u32 2147483647, %v4129
    %v4132 = vcvt.s32.f32 %v4125
    %v4133 = vmul.f32 %v4132, %v4130
    %v4134 = vxor.u32 %v4133, 2147483648
    %v4135 = vsel %vm4014, %v4134, %v4133
    %v4136 = vsub.s32 4, %v4112
    %v4137 = vsel %vm4014, %v4136, %v4112
    %v4138 = vsel %vm4013, %v291, %v4135
    %v4139 = vsel %vm4013, 0, %v4137
    %v4140 = vmul.f32 %v4138, %v4138
    %v4141 = vmul.f32 %v4140, -0.001358992
    %v4142 = vadd.f32 %v4141, 0.041655596
    %v4143 = vmul.f32 %v4140, %v4142
    %v4144 = vadd.f32 %v4143, -0.4999988
    %v4145 = vmul.f32 %v4140, %v4144
    %v4146 = vadd.f32 1.0, %v4145
    %v4147 = vmul.f32 %v4138, %v4138
    %v4148 = vmul.f32 %v4147, -0.00019511016
    %v4149 = vadd.f32 %v4148, 0.008332121
    %v4150 = vmul.f32 %v4147, %v4149
    %v4151 = vadd.f32 %v4150, -0.16666654
    %v4152 = vmul.f32 %v4147, %v4151
    %v4153 = vadd.f32 %v4152, 1.0
    %v4154 = vmul.f32 %v4153, %v4138
    %vm4155 = vweird.f32 %v291
    %v4156 = vadd.s32 %v4139, 3
    %v4157 = vand.u32 %v4156, 3
    %vm4158 = vcmp.lt.s32.totalorder %v4157, 2
    %vm4159 = vcmp.eq.s32.totalorder %v4157, 0
    %v4160 = vxor.u32 %v4154, 2147483648
    %v4161 = vsel %vm4159, %v4146, %v4160
    %vm4162 = vcmp.eq.s32.totalorder %v4157, 2
    %v4163 = vxor.u32 %v4146, 2147483648
    %v4164 = vsel %vm4162, %v4163, %v4154
    %v4165 = vsel %vm4158, %v4161, %v4164
    %v4166 = vsel %vm4155, nan, %v4165
    %4167 = vst [vmem:[#allocation2] sm:$0xff] %v446
    %4168 = vst [vmem:[#allocation2 + $0x8] sm:$0xff] %v601
    %4169 = vst [vmem:[#allocation2 + $0x10] sm:$0xff] %v756
    %4170 = vst [vmem:[#allocation2 + $0x18] sm:$0xff] %v911
    %4171 = vst [vmem:[#allocation2 + $0x20] sm:$0xff] %v1066
    %4172 = vst [vmem:[#allocation2 + $0x28] sm:$0xff] %v1221
    %4173 = vst [vmem:[#allocation2 + $0x30] sm:$0xff] %v1376
    %4174 = vst [vmem:[#allocation2 + $0x38] sm:$0xff] %v1531
    %4175 = vst [vmem:[#allocation2 + $0x40] sm:$0xff] %v1686
    %4176 = vst [vmem:[#allocation2 + $0x48] sm:$0xff] %v1841
    %4177 = vst [vmem:[#allocation2 + $0x50] sm:$0xff] %v1996
    %4178 = vst [vmem:[#allocation2 + $0x58] sm:$0xff] %v2151
    %4179 = vst [vmem:[#allocation2 + $0x60] sm:$0xff] %v2306
    %4180 = vst [vmem:[#allocation2 + $0x68] sm:$0xff] %v2461
    %4181 = vst [vmem:[#allocation2 + $0x70] sm:$0xff] %v2616
    %4182 = vst [vmem:[#allocation2 + $0x78] sm:$0xff] %v2771
    %4183 = vst [vmem:[#allocation2 + $0x80] sm:$0xff] %v2926
    %4184 = vst [vmem:[#allocation2 + $0x88] sm:$0xff] %v3081
    %4185 = vst [vmem:[#allocation2 + $0x90] sm:$0xff] %v3236
    %4186 = vst [vmem:[#allocation2 + $0x98] sm:$0xff] %v3391
    %4187 = vst [vmem:[#allocation2 + $0xa0] sm:$0xff] %v3546
    %4188 = vst [vmem:[#allocation2 + $0xa8] sm:$0xff] %v3701
    %4189 = vst [vmem:[#allocation2 + $0xb0] sm:$0xff] %v3856
    %4190 = vst [vmem:[#allocation2 + $0xb8] sm:$0xff] %v4011
    %4191 = vst [vmem:[#allocation2 + $0xc0] sm:$0xff] %v4166
    // Predicated region
    $region14: #{tpu_custom_call.1} parent=1 // pred_check
      _
    $region15: #{tpu_custom_call.1} parent=1 // pred_check_branch
      %4193 = sbr.rel (0) target = $region17
    $region16: #{tpu_custom_call.1} parent=1 // pred_region
      %4195 = vsyncadd [#allocation3], 0
      %s4196 = sshll.u32 [#allocation2], 4
      %s4197 = int_to_ptr.vmem [resolvable:$true] %s4196
      %s4198 = sshll.u32 %s3, 4
      %s4199 = int_to_ptr.hbm [resolvable:$true] %s4198
      %4204 = dma.vmem_to_hbm [thread:$0]  %s4197, 3200, %s4199, [#allocation3], 128, 128, 8
    $region17: #{tpu_custom_call.1} parent=1 // pred_fallthru
      _
    // Predicated region
    $region18: #{tpu_custom_call.1} parent=1 // pred_check
      _
    $region19: #{tpu_custom_call.1} parent=1 // pred_check_branch
      %4206 = sbr.rel (0) target = $region21
    $region20: #{tpu_custom_call.1} parent=1 // pred_region
      %4208 = dma.done [#allocation3], 3200
    $region21: #{tpu_custom_call.1} parent=1 // pred_fallthru
      _
    %4209 = vsyncpa [#allocation3], 1

</llo_original>
